<compile_context>
chip_gen: v7x
topology: tpu7x:2x2x1
jax: 0.10.0
libtpu: 0.0.40
codegen_flags: <defaults>
</compile_context>

<pallas_src>
import math

import jax
import jax.numpy as jnp
import numpy as np
from jax.experimental import pallas as pl
from jax.experimental.pallas import tpu as pltpu

# ----- ConvDANN hyper-parameters (is_dann=True branch) -----------------------
C_IN, C_OUT = 3, 64
KH = KW = 3
NI_CONV = int(C_OUT * 0.1)                 # 6 inhibitory conv channels
NUM_CLASS = 10
NI_FC = max(1, int(NUM_CLASS * 0.1))       # 1 inhibitory dense unit
H = W = 32                                 # torch hard-codes fc1 in = 64*16*16 -> 32x32 input
HP, WP = H // 2, W // 2                    # 16 x 16 after MaxPool2d(2)
ROWS_POOL = HP * WP                        # 256 pooled spatial positions
ROWS_CONV = 4 * ROWS_POOL                  # 1024 conv positions (pool-parity major)
FEAT = C_OUT * HP * WP                     # 16384  (= 64*16*16, matches the module)
KCOL = C_IN * KH * KW                      # 27  (im2col contraction dim)


def _pick_img_tile(batch):
    """Images per conv grid step.

    Cap at 8: with the (27, IT*1024) layout one image costs ~0.2 MiB of
    double-buffered VMEM plus a 256 KiB f32 matmul intermediate, so 8 images
    stay well below v5e's 16 MiB / v7x's 32 MiB default scoped VMEM.  Prefer
    >= 2 grid steps so both v7x TensorCores get work (on v6e the extra step is
    ~0.35 us of overhead -- negligible here).
    """
    for t in (8, 4, 2, 1):
        if batch % t == 0 and batch // t >= 2:
            return t
    return batch                            # batch == 1


def _pick_dense_tile(batch):
    """Batch rows per dense grid step (bounds the (bt, 16384) activation block)."""
    if batch <= 128:
        return batch
    for t in (128, 64, 32, 16, 8):
        if batch % t == 0:
            return t
    return batch


# ----------------------------- Pallas kernels --------------------------------
def conv_relu_pool_kernel(p_ref, w_ref, o_ref):
    """Folded EiConv(3x3, pad=1) + ReLU + MaxPool2d(2) for IMG_TILE images.

    p_ref : (KCOL, IMG_TILE*ROWS_CONV) bf16 im2col patches.  Column layout is
            image-major, then pool parity, then pooled position:
            col = i*ROWS_CONV + t*ROWS_POOL + hp*WP + wp,  t = dy*2 + dx.
    w_ref : (C_OUT, KCOL) bf16 folded conv weight (Wex - Wei @ Wix).
    o_ref : (IMG_TILE, C_OUT, ROWS_POOL) bf16 pooled activations (NCHW rows).
    """
    it, _, rows_pool = o_ref.shape
    rows_conv = 4 * rows_pool
    # One MXU push per grid step: M=64, K=27, N=IT*1024, f32 accumulation.
    z = jnp.dot(w_ref[...], p_ref[...], preferred_element_type=jnp.float32)
    z = jnp.maximum(z, 0.0)                 # ReLU in f32 (relu-then-max == max-then-relu)
    for i in range(it):                     # static unroll (IT <= 8)
        base = i * rows_conv
        p0 = z[:, base + 0 * rows_pool:base + 1 * rows_pool]
        p1 = z[:, base + 1 * rows_pool:base + 2 * rows_pool]
        p2 = z[:, base + 2 * rows_pool:base + 3 * rows_pool]
        p3 = z[:, base + 3 * rows_pool:base + 4 * rows_pool]
        # MaxPool2d(2): max over the four parity blocks (static, 128-aligned
        # lane slices); lane-dense (64, 256) store per image.
        o_ref[i] = jnp.maximum(jnp.maximum(p0, p1),
                               jnp.maximum(p2, p3)).astype(o_ref.dtype)


def eidense_kernel(x_ref, w_ref, b_ref, o_ref):
    """Folded EiDenseLayer: y = x @ (Wex - Wei@Wix)^T + b.

    x_ref : (BT, FEAT)        bf16, conv output flattened in NCHW order.
    w_ref : (NUM_CLASS, FEAT) bf16 folded dense weight in its native layout.
    """
    y = jax.lax.dot_general(
        x_ref[...], w_ref[...],
        dimension_numbers=(((1,), (1,)), ((), ())),   # x @ w^T, f32 accumulate
        preferred_element_type=jnp.float32)
    o_ref[...] = (y + b_ref[...]).astype(o_ref.dtype)


# ------------------------------ wrapper (glue) --------------------------------
def conv_dann_forward(x_nchw, params):
    (wex_c, wix_c, wei_c, wex_f, wix_f, wei_f, b_f) = params
    B = x_nchw.shape[0]
    img_tile = _pick_img_tile(B)
    bt = _pick_dense_tile(B)

    # --- host-side E/I weight folds (forward-identical to the torch module) ---
    w_eff_c = wex_c - jnp.tensordot(wei_c, wix_c, axes=[[1], [0]])   # (C_OUT, C_IN, 3, 3)
    w_conv = w_eff_c.reshape(C_OUT, KCOL).astype(jnp.bfloat16)       # (64, 27)
    w_dense = (wex_f - wei_f @ wix_f).astype(jnp.bfloat16)           # (10, 16384), NCHW feat order

    # --- glue: im2col for 3x3/stride-1/pad-1, columns split by 2x2 pool parity.
    # Final layout (KCOL, B*ROWS_CONV):
    #   kcol = ci*9 + ky*3 + kx   (matches the (C_OUT, C_IN, 3, 3) weight reshape)
    #   col  = b*1024 + (dy*2+dx)*256 + hp*16 + wp
    xp = jnp.pad(x_nchw, ((0, 0), (0, 0), (1, 1), (1, 1)))
    taps = [xp[:, :, ky:ky + H, kx:kx + W] for ky in range(KH) for kx in range(KW)]
    pat = jnp.stack(taps, axis=2)                       # (B, C_IN, 9, H, W), tap = ky*3+kx
    pat = pat.reshape(B, KCOL, HP, 2, WP, 2)            # axes (b, k, hp, dy, wp, dx)
    pat = pat.transpose(1, 0, 3, 5, 2, 4)               # (k, b, dy, dx, hp, wp) — single transpose
    pat = pat.reshape(KCOL, B * ROWS_CONV).astype(jnp.bfloat16)

    pooled = pl.pallas_call(
        conv_relu_pool_kernel,
        out_shape=jax.ShapeDtypeStruct((B, C_OUT, ROWS_POOL), jnp.bfloat16),
        grid=(B // img_tile,),
        in_specs=[
            pl.BlockSpec((KCOL, img_tile * ROWS_CONV), lambda g: (0, g)),
            pl.BlockSpec((C_OUT, KCOL), lambda g: (0, 0)),
        ],
        out_specs=pl.BlockSpec((img_tile, C_OUT, ROWS_POOL), lambda g: (g, 0, 0)),
        compiler_params=pltpu.CompilerParams(dimension_semantics=("parallel",)),
    )(pat, w_conv)

    # Plain reshape: (B, 64, 256) -> (B, 16384) is exactly torch's NCHW flatten,
    # so the dense weight is used in its native (10, 16384) layout (no permute,
    # no transpose between the two kernels).
    xf = pooled.reshape(B, FEAT)

    out = pl.pallas_call(
        eidense_kernel,
        out_shape=jax.ShapeDtypeStruct((B, NUM_CLASS), jnp.float32),
        grid=(B // bt,),
        in_specs=[
            pl.BlockSpec((bt, FEAT), lambda i: (i, 0)),
            pl.BlockSpec((NUM_CLASS, FEAT), lambda i: (0, 0)),   # constant block: no re-DMA
            pl.BlockSpec((1, NUM_CLASS), lambda i: (0, 0)),
        ],
        out_specs=pl.BlockSpec((bt, NUM_CLASS), lambda i: (i, 0)),
        compiler_params=pltpu.CompilerParams(dimension_semantics=("parallel",)),
    )(xf, w_dense, b_f.reshape(1, NUM_CLASS))
    return out


# --------------------------- pure-JAX reference -------------------------------
def reference_forward(x_nchw, params):
    (wex_c, wix_c, wei_c, wex_f, wix_f, wei_f, b_f) = params
    w_eff_c = wex_c - jnp.tensordot(wei_c, wix_c, axes=[[1], [0]])   # (C_OUT, C_IN, 3, 3)
    y = jax.lax.conv_general_dilated(
        x_nchw, w_eff_c, window_strides=(1, 1), padding=((1, 1), (1, 1)),
        dimension_numbers=("NCHW", "OIHW", "NCHW"))
    y = jnp.maximum(y, 0.0)
    y = jax.lax.reduce_window(y, -jnp.inf, jax.lax.max,
                              (1, 1, 2, 2), (1, 1, 2, 2), "VALID")
    y = y.reshape(y.shape[0], -1)
    w_eff_f = wex_f - wei_f @ wix_f
    return y @ w_eff_f.T + b_f


# ----------------------------------- main --------------------------------------
if __name__ == "__main__":
    key = jax.random.PRNGKey(0)
    keys = jax.random.split(key, 8)
    B = 2
    x = jax.random.normal(keys[0], (B, C_IN, H, W), jnp.float32)

    # Deterministic synthetic Dale's-law parameters (non-negative E/I weights).
    wex_c = jnp.abs(jax.random.normal(keys[1], (C_OUT, C_IN, KH, KW), jnp.float32)) / math.sqrt(KCOL)
    wix_c = jnp.abs(jax.random.normal(keys[2], (NI_CONV, C_IN, KH, KW), jnp.float32)) / math.sqrt(KCOL)
    wei_c = jnp.abs(jax.random.normal(keys[3], (C_OUT, NI_CONV), jnp.float32)) / NI_CONV
    wex_f = jnp.abs(jax.random.normal(keys[4], (NUM_CLASS, FEAT), jnp.float32)) / math.sqrt(FEAT)
    wix_f = jnp.abs(jax.random.normal(keys[5], (NI_FC, FEAT), jnp.float32)) / math.sqrt(FEAT)
    wei_f = jnp.abs(jax.random.normal(keys[6], (NUM_CLASS, NI_FC), jnp.float32)) / NI_FC
    b_f = 0.01 * jax.random.normal(keys[7], (NUM_CLASS,), jnp.float32)
    params = (wex_c, wix_c, wei_c, wex_f, wix_f, wei_f, b_f)

    out = jax.jit(conv_dann_forward)(x, params)
    out = jax.block_until_ready(out)

    ref = reference_forward(x, params)
    # Conv patches/weights, pooled activations and the dense weight stream in
    # bf16 (f32 MXU accumulation) -> loosened tolerance vs. the f32 reference.
    np.testing.assert_allclose(np.asarray(out), np.asarray(ref), rtol=3e-2, atol=1e-1)
    print("KERNEL_OK")
</pallas_src>

<mosaic_0001>
module attributes {stable_mosaic.version = 11 : i64} {
  func.func @conv_relu_pool_kernel(%arg0: i32, %arg1: memref<27x1024xbf16, #tpu.memory_space<vmem>>, %arg2: memref<64x27xbf16, #tpu.memory_space<vmem>>, %arg3: memref<1x64x256xbf16, #tpu.memory_space<vmem>>) attributes {dimension_semantics = [#tpu.dimension_semantics<parallel>], iteration_bounds = array<i64: 2>, scalar_prefetch = 0 : i64, scratch_operands = 0 : i64, tpu.core_type = #tpu.core_type<tc>, window_params = [{transform_indices = @transform_0, window_bounds = array<i64: 27, 1024>}, {pipeline_mode = #tpu.pipeline_mode<synchronous>, transform_indices = @transform_1, window_bounds = array<i64: 64, 27>}, {transform_indices = @transform_2, window_bounds = array<i64: 1, 64, 256>}]} {
    %c0 = arith.constant 0 : index
    %c0_0 = arith.constant 0 : index
    %0 = vector.load %arg2[%c0, %c0_0] : memref<64x27xbf16, #tpu.memory_space<vmem>>, vector<64x27xbf16>
    %c0_1 = arith.constant 0 : index
    %c0_2 = arith.constant 0 : index
    %1 = vector.load %arg1[%c0_1, %c0_2] : memref<27x1024xbf16, #tpu.memory_space<vmem>>, vector<27x1024xbf16>
    %cst = arith.constant dense<0.000000e+00> : vector<64x1024xf32>
    %2 = tpu.matmul %0, %1, %cst {dimension_numbers = #tpu.dot_dimension_numbers<[1], [0], [0], [1], [0, 0, 1, 1], [], []>} : vector<64x27xbf16>, vector<27x1024xbf16>, vector<64x1024xf32> -> vector<64x1024xf32>
    %cst_3 = arith.constant 0.000000e+00 : f32
    %3 = vector.broadcast %cst_3 : f32 to vector<64x1024xf32>
    %4 = arith.maximumf %2, %3 : vector<64x1024xf32>
    %5 = vector.extract_strided_slice %4 {offsets = [0, 0], sizes = [64, 256], strides = [1, 1]} : vector<64x1024xf32> to vector<64x256xf32>
    %6 = vector.extract_strided_slice %4 {offsets = [0, 256], sizes = [64, 256], strides = [1, 1]} : vector<64x1024xf32> to vector<64x256xf32>
    %7 = vector.extract_strided_slice %4 {offsets = [0, 512], sizes = [64, 256], strides = [1, 1]} : vector<64x1024xf32> to vector<64x256xf32>
    %8 = vector.extract_strided_slice %4 {offsets = [0, 768], sizes = [64, 256], strides = [1, 1]} : vector<64x1024xf32> to vector<64x256xf32>
    %9 = arith.maximumf %5, %6 : vector<64x256xf32>
    %10 = arith.maximumf %7, %8 : vector<64x256xf32>
    %11 = arith.maximumf %9, %10 : vector<64x256xf32>
    %12 = arith.truncf %11 : vector<64x256xf32> to vector<64x256xbf16>
    %c0_4 = arith.constant 0 : index
    %c0_5 = arith.constant 0 : index
    %c0_6 = arith.constant 0 : index
    %13 = vector.load %arg3[%c0_4, %c0_5, %c0_6] : memref<1x64x256xbf16, #tpu.memory_space<vmem>>, vector<1x64x256xbf16>
    %14 = vector.shape_cast %13 : vector<1x64x256xbf16> to vector<64x256xbf16>
    %15 = vector.shape_cast %12 : vector<64x256xbf16> to vector<1x64x256xbf16>
    tpu.vector_store %arg3[%c0_4, %c0_5, %c0_6], %15 {strides = array<i32>} : memref<1x64x256xbf16, #tpu.memory_space<vmem>>, vector<1x64x256xbf16>,
    return
  }
  func.func @transform_0(%arg0: i32) -> (i32, i32) {
    %c0_i32 = arith.constant 0 : i32
    %c0_i32_0 = arith.constant 0 : i32
    return %c0_i32, %arg0 : i32, i32
  }
  func.func @transform_1(%arg0: i32) -> (i32, i32) {
    %c0_i32 = arith.constant 0 : i32
    %c0_i32_0 = arith.constant 0 : i32
    %c0_i32_1 = arith.constant 0 : i32
    return %c0_i32, %c0_i32_0 : i32, i32
  }
  func.func @transform_2(%arg0: i32) -> (i32, i32, i32) {
    %c0_i32 = arith.constant 0 : i32
    %c0_i32_0 = arith.constant 0 : i32
    %c0_i32_1 = arith.constant 0 : i32
    return %arg0, %c0_i32, %c0_i32_0 : i32, i32, i32
  }
}

module attributes {stable_mosaic.version = 11 : i64} {
  func.func @eidense_kernel(%arg0: i32, %arg1: memref<2x16384xbf16, #tpu.memory_space<vmem>>, %arg2: memref<10x16384xbf16, #tpu.memory_space<vmem>>, %arg3: memref<1x10xf32, #tpu.memory_space<vmem>>, %arg4: memref<2x10xf32, #tpu.memory_space<vmem>>) attributes {dimension_semantics = [#tpu.dimension_semantics<parallel>], iteration_bounds = array<i64: 1>, scalar_prefetch = 0 : i64, scratch_operands = 0 : i64, tpu.core_type = #tpu.core_type<tc>, window_params = [{transform_indices = @transform_0, window_bounds = array<i64: 2, 16384>}, {pipeline_mode = #tpu.pipeline_mode<synchronous>, transform_indices = @transform_1, window_bounds = array<i64: 10, 16384>}, {pipeline_mode = #tpu.pipeline_mode<synchronous>, transform_indices = @transform_2, window_bounds = array<i64: 1, 10>}, {transform_indices = @transform_3, window_bounds = array<i64: 2, 10>}]} {
    %c0 = arith.constant 0 : index
    %c0_0 = arith.constant 0 : index
    %0 = vector.load %arg1[%c0, %c0_0] : memref<2x16384xbf16, #tpu.memory_space<vmem>>, vector<2x16384xbf16>
    %c0_1 = arith.constant 0 : index
    %c0_2 = arith.constant 0 : index
    %1 = vector.load %arg2[%c0_1, %c0_2] : memref<10x16384xbf16, #tpu.memory_space<vmem>>, vector<10x16384xbf16>
    %cst = arith.constant dense<0.000000e+00> : vector<2x10xf32>
    %2 = tpu.matmul %0, %1, %cst {dimension_numbers = #tpu.dot_dimension_numbers<[1], [1], [0], [0], [0, 0, 1, 0], [], []>} : vector<2x16384xbf16>, vector<10x16384xbf16>, vector<2x10xf32> -> vector<2x10xf32>
    %c0_3 = arith.constant 0 : index
    %c0_4 = arith.constant 0 : index
    %3 = vector.load %arg3[%c0_3, %c0_4] : memref<1x10xf32, #tpu.memory_space<vmem>>, vector<1x10xf32>
    %4 = vector.broadcast %3 : vector<1x10xf32> to vector<2x10xf32>
    %5 = arith.addf %2, %4 : vector<2x10xf32>
    %c0_5 = arith.constant 0 : index
    %c0_6 = arith.constant 0 : index
    %6 = vector.load %arg4[%c0_5, %c0_6] : memref<2x10xf32, #tpu.memory_space<vmem>>, vector<2x10xf32>
    tpu.vector_store %arg4[%c0_5, %c0_6], %5 {strides = array<i32>} : memref<2x10xf32, #tpu.memory_space<vmem>>, vector<2x10xf32>,
    return
  }
  func.func @transform_0(%arg0: i32) -> (i32, i32) {
    %c0_i32 = arith.constant 0 : i32
    %c0_i32_0 = arith.constant 0 : i32
    return %arg0, %c0_i32 : i32, i32
  }
  func.func @transform_1(%arg0: i32) -> (i32, i32) {
    %c0_i32 = arith.constant 0 : i32
    %c0_i32_0 = arith.constant 0 : i32
    %c0_i32_1 = arith.constant 0 : i32
    return %c0_i32, %c0_i32_0 : i32, i32
  }
  func.func @transform_2(%arg0: i32) -> (i32, i32) {
    %c0_i32 = arith.constant 0 : i32
    %c0_i32_0 = arith.constant 0 : i32
    %c0_i32_1 = arith.constant 0 : i32
    return %c0_i32, %c0_i32_0 : i32, i32
  }
  func.func @transform_3(%arg0: i32) -> (i32, i32) {
    %c0_i32 = arith.constant 0 : i32
    %c0_i32_0 = arith.constant 0 : i32
    return %arg0, %c0_i32 : i32, i32
  }
}

</mosaic_0001>

<llo_original>
// kernel: conv_dann_forward.2
$region0: #{conv_dann_forward.2}
  #allocation0 [shape = 'u32[]', space=smem, size = 0x4, offset = 0x4, fixed_abs, tag = 'smem constant byte address 0x4 - core index']
  #allocation1 [shape = 'u32[144,128]{1,0:T(1,128)}', space=vmem, size = 0x12000, scoped, tag = 'internal scratch']
  %s0 = inlined_call_operand.vmem [shape: bf16[27,2048], index: 0, kind: input, shape index: {}]
  %s1 = inlined_call_operand.vmem [shape: bf16[64,27], index: 1, kind: input, shape index: {}]
  %s2 = inlined_call_operand.vmem [shape: bf16[2,64,256], index: 2, kind: output, shape index: {}]
  %s3 = sld [smem:[#allocation0]]
  $region64: #{conv_dann_forward.2} parent=0
    _
  %s5 = ssub.s32 1, %s3
  %s6 = scalar_select 0, %s5, %s3
  $region1: #{conv_dann_forward.2} parent=0
    #allocation2 [shape = 'u8[131072]{0}', space=vmem, size = 0x20000, scoped, tag = 'input window, operand 0']
    loop: start=0, step=1, limit=4
    $region2: #{conv_dann_forward.2} parent=1 // loop_pre_header
      _
    $region3: #{conv_dann_forward.2} parent=1 // loop_header
      %s8 = sphi 0, %s12
      %p9 = scmp.ge.s32.totalorder %s8, 4
      %s18 = sphi 0, %s20
      %s21 = sphi 0, %s18
      %s22 = sphi 0, %s21
      %s38 = sphi 0, %s22
      %s42 = sphi 0, %s42
      %s44 = sphi 0, %s42
      %s45 = sphi 0, %s44
      %s59 = sphi 0, %s45
      %s65 = sphi 0, %s67
      %s68 = sphi 0, %s65
      %s69 = sphi 0, %s68
      %s85 = sphi 0, %s69
    $region4: #{conv_dann_forward.2} parent=1 // loop_header_branch
      %11 = sbr.rel (%p9) target = $region8
    $region5: #{conv_dann_forward.2} parent=1 // loop_body
      %s13 = ssub.s32 %s8, 1
      %s14 = ssub.s32 %s8, 2
      %s15 = sadd.s32 %s8, 1
      %s16 = ssub.s32 %s8, %s15
      %p17 = scmp.eq.s32.totalorder %s16, 0
      %s19 = sadd.s32 %s18, 1
      %s20 = scalar_select %p17, %s18, %s19
      %p23 = pneg %p17
      %p24 = scmp.eq.s32.totalorder %s8, 1
      %p25 = por %p23, %p24
      %p26 = scmp.ne.s32.totalorder %s18, %s21
      %p27 = scmp.eq.s32.totalorder %s8, 0
      %p28 = por %p26, %p27
      %p29 = scmp.ne.s32.totalorder %s18, %s21
      %p30 = scmp.eq.s32.totalorder %s13, 1
      %p31 = por %p29, %p30
      %p32 = scmp.ne.s32.totalorder %s21, %s22
      %p33 = scmp.eq.s32.totalorder %s13, 0
      %p34 = por %p32, %p33
      %p35 = scmp.ne.s32.totalorder %s21, %s22
      %p36 = scmp.eq.s32.totalorder %s14, 1
      %p37 = por %p35, %p36
      %p39 = scmp.ne.s32.totalorder %s22, %s38
      %p40 = scmp.eq.s32.totalorder %s14, 0
      %p41 = por %p39, %p40
      %s43 = sadd.s32 %s42, 1
      %p46 = scmp.eq.s32.totalorder %s8, 1
      %p47 = scmp.ne.s32.totalorder %s42, %s44
      %p48 = scmp.eq.s32.totalorder %s8, 0
      %p49 = por %p47, %p48
      %p50 = scmp.ne.s32.totalorder %s42, %s44
      %p51 = scmp.eq.s32.totalorder %s13, 1
      %p52 = por %p50, %p51
      %p53 = scmp.ne.s32.totalorder %s44, %s45
      %p54 = scmp.eq.s32.totalorder %s13, 0
      %p55 = por %p53, %p54
      %p56 = scmp.ne.s32.totalorder %s44, %s45
      %p57 = scmp.eq.s32.totalorder %s14, 1
      %p58 = por %p56, %p57
      %p60 = scmp.ne.s32.totalorder %s45, %s59
      %p61 = scmp.eq.s32.totalorder %s14, 0
      %p62 = por %p60, %p61
      %s63 = ssub.s32 %s8, %s15
      %p64 = scmp.eq.s32.totalorder %s63, 0
      %s66 = sadd.s32 %s65, 1
      %s67 = scalar_select %p64, %s65, %s66
      %p70 = pneg %p64
      %p71 = scmp.eq.s32.totalorder %s8, 1
      %p72 = por %p70, %p71
      %p73 = scmp.ne.s32.totalorder %s65, %s68
      %p74 = scmp.eq.s32.totalorder %s8, 0
      %p75 = por %p73, %p74
      %p76 = scmp.ne.s32.totalorder %s65, %s68
      %p77 = scmp.eq.s32.totalorder %s13, 1
      %p78 = por %p76, %p77
      %p79 = scmp.ne.s32.totalorder %s68, %s69
      %p80 = scmp.eq.s32.totalorder %s13, 0
      %p81 = por %p79, %p80
      %p82 = scmp.ne.s32.totalorder %s68, %s69
      %p83 = scmp.eq.s32.totalorder %s14, 1
      %p84 = por %p82, %p83
      %p86 = scmp.ne.s32.totalorder %s69, %s85
      %p87 = scmp.eq.s32.totalorder %s14, 0
      %p88 = por %p86, %p87
      %p89 = scmp.le.s32.totalorder 1, %s8
      %p90 = scmp.lt.s32.totalorder %s8, 3
      %p91 = pnand %p89, %p90
      %p92 = pneg %p91
      // Predicated region
      $region9: #{conv_dann_forward.2} parent=5 // pred_check
        _
      $region10: #{conv_dann_forward.2} parent=5 // pred_check_branch
        %94 = sbr.rel (%p91) target = $region12
      $region11: #{conv_dann_forward.2} parent=5 // pred_region
        %s95 = ssub.s32 %s8, 1
        // Predicated region
        $region13: #{conv_dann_forward.2} parent=11 // pred_check
          %p96 = pneg %p55
        $region14: #{conv_dann_forward.2} parent=11 // pred_check_branch
          %98 = sbr.rel (%p96) target = $region16
        $region15: #{conv_dann_forward.2} parent=11 // pred_region
          _
        $region16: #{conv_dann_forward.2} parent=11 // pred_fallthru
          _
      $region12: #{conv_dann_forward.2} parent=5 // pred_fallthru
        _
      %p99 = scmp.lt.s32.totalorder %s8, 2
      // Predicated region
      $region17: #{conv_dann_forward.2} parent=5 // pred_check
        %p100 = pneg %p99
      $region18: #{conv_dann_forward.2} parent=5 // pred_check_branch
        %102 = sbr.rel (%p100) target = $region20
      $region19: #{conv_dann_forward.2} parent=5 // pred_region
        // Predicated region
        $region21: #{conv_dann_forward.2} parent=19 // pred_check
          %p103 = pneg %p28
        $region22: #{conv_dann_forward.2} parent=19 // pred_check_branch
          %105 = sbr.rel (%p103) target = $region24
        $region23: #{conv_dann_forward.2} parent=19 // pred_region
          %s106 = sand.u32 %s18, 1
          %s107 = sand.u32 %s18, 1
          %s108 = smul.addr %s107, 128
          %s109 = scalar_lea.vmem [#allocation2], %s108
          %s110 = smul.u32 8, %s8
          %s111 = smul.addr %s110, 4
          %s112 = scalar_lea.vmem %s0, %s111
          // Predicated region
          $region25: #{conv_dann_forward.2} parent=23 // pred_check
            _
          $region26: #{conv_dann_forward.2} parent=23 // pred_check_branch
            %114 = sbr.rel (0) target = $region28
          $region27: #{conv_dann_forward.2} parent=23 // pred_region
            // Predicated region
            $region29: #{conv_dann_forward.2} parent=27 // pred_check
              _
            $region30: #{conv_dann_forward.2} parent=27 // pred_check_branch
              %116 = sbr.rel (0) target = $region32
            $region31: #{conv_dann_forward.2} parent=27 // pred_region
              loop: start=0, step=1, limit=1
              $region33: #{conv_dann_forward.2} parent=31 // loop_pre_header
                _
              $region34: #{conv_dann_forward.2} parent=31 // loop_header
                %s118 = sphi 0, %s122
                %p119 = scmp.ge.s32.totalorder %s118, 1
                %s123 = sphi %s112, %s112
                %s124 = sphi %s109, %s109
              $region35: #{conv_dann_forward.2} parent=31 // loop_header_branch
                %121 = sbr.rel (%p119) target = $region39
              $region36: #{conv_dann_forward.2} parent=31 // loop_body
                %v125 = vld [vmem:[%s123] sm:$0xff]
                %126 = vst [vmem:[%s124] sm:$0xff] %v125
                %v127 = vld [vmem:[%s123 + $0x8] sm:$0xff]
                %128 = vst [vmem:[%s124 + $0x8] sm:$0xff] %v127
                %v129 = vld [vmem:[%s123 + $0x10] sm:$0xff]
                %130 = vst [vmem:[%s124 + $0x10] sm:$0xff] %v129
                %v131 = vld [vmem:[%s123 + $0x18] sm:$0xff]
                %132 = vst [vmem:[%s124 + $0x18] sm:$0xff] %v131
                %v133 = vld [vmem:[%s123 + $0x40] sm:$0xff]
                %134 = vst [vmem:[%s124 + $0x20] sm:$0xff] %v133
                %v135 = vld [vmem:[%s123 + $0x48] sm:$0xff]
                %136 = vst [vmem:[%s124 + $0x28] sm:$0xff] %v135
                %v137 = vld [vmem:[%s123 + $0x50] sm:$0xff]
                %138 = vst [vmem:[%s124 + $0x30] sm:$0xff] %v137
                %v139 = vld [vmem:[%s123 + $0x58] sm:$0xff]
                %140 = vst [vmem:[%s124 + $0x38] sm:$0xff] %v139
                %v141 = vld [vmem:[%s123 + $0x80] sm:$0xff]
                %142 = vst [vmem:[%s124 + $0x40] sm:$0xff] %v141
                %v143 = vld [vmem:[%s123 + $0x88] sm:$0xff]
                %144 = vst [vmem:[%s124 + $0x48] sm:$0xff] %v143
                %v145 = vld [vmem:[%s123 + $0x90] sm:$0xff]
                %146 = vst [vmem:[%s124 + $0x50] sm:$0xff] %v145
                %v147 = vld [vmem:[%s123 + $0x98] sm:$0xff]
                %148 = vst [vmem:[%s124 + $0x58] sm:$0xff] %v147
                %v149 = vld [vmem:[%s123 + $0xc0] sm:$0xff]
                %150 = vst [vmem:[%s124 + $0x60] sm:$0xff] %v149
                %v151 = vld [vmem:[%s123 + $0xc8] sm:$0xff]
                %152 = vst [vmem:[%s124 + $0x68] sm:$0xff] %v151
                %v153 = vld [vmem:[%s123 + $0xd0] sm:$0xff]
                %154 = vst [vmem:[%s124 + $0x70] sm:$0xff] %v153
                %v155 = vld [vmem:[%s123 + $0xd8] sm:$0xff]
                %156 = vst [vmem:[%s124 + $0x78] sm:$0xff] %v155
              $region37: #{conv_dann_forward.2} parent=31 // loop_footer
                %s122 = sadd.s32 1, %s118
              $region38: #{conv_dann_forward.2} parent=31 // loop_footer_branch
                %117 = sbr.rel target = $region34
              $region39: #{conv_dann_forward.2} parent=31 // loop_exit
                _
            $region32: #{conv_dann_forward.2} parent=27 // pred_fallthru
              _
            // Predicated region
            $region40: #{conv_dann_forward.2} parent=27 // pred_check
              _
            $region41: #{conv_dann_forward.2} parent=27 // pred_check_branch
              %158 = sbr.rel target = $region43
            $region42: #{conv_dann_forward.2} parent=27 // pred_region
              _
            $region43: #{conv_dann_forward.2} parent=27 // pred_fallthru
              _
          $region28: #{conv_dann_forward.2} parent=23 // pred_fallthru
            _
          %159 = vnop
        $region24: #{conv_dann_forward.2} parent=19 // pred_fallthru
          _
      $region20: #{conv_dann_forward.2} parent=5 // pred_fallthru
        _
      %p160 = scmp.le.s32.totalorder 1, %s8
      %p161 = scmp.lt.s32.totalorder %s8, 3
      %p162 = pnand %p160, %p161
      %p163 = pneg %p162
      // Predicated region
      $region44: #{conv_dann_forward.2} parent=5 // pred_check
        _
      $region45: #{conv_dann_forward.2} parent=5 // pred_check_branch
        %165 = sbr.rel (%p162) target = $region47
      $region46: #{conv_dann_forward.2} parent=5 // pred_region
        %s166 = ssub.s32 %s8, 1
        %s167 = sand.u32 %s21, 1
        %s168 = sand.u32 %s21, 1
        %s169 = smul.addr %s168, 128
        %s170 = scalar_lea.vmem [#allocation2], %s169
        // Predicated region
        $region48: #{conv_dann_forward.2} parent=46 // pred_check
          %p171 = pneg %p34
        $region49: #{conv_dann_forward.2} parent=46 // pred_check_branch
          %173 = sbr.rel (%p171) target = $region51
        $region50: #{conv_dann_forward.2} parent=46 // pred_region
          _
        $region51: #{conv_dann_forward.2} parent=46 // pred_fallthru
          _
        %s174 = sand.u32 %s21, 1
        %s175 = sand.u32 %s21, 1
        %s176 = smul.addr %s175, 128
        %s177 = scalar_lea.vmem [#allocation2], %s176
        %p178 = pneg %p34
        %p179 = pneg %p31
        %p180 = pneg %p55
        %p181 = pneg %p52
        %p182 = pneg %p81
        %p183 = pneg %p78
        %p184 = scmp.lt.s32.totalorder %s13, 1
        %s185 = scalar_select %p184, %s13, 1
        %s186 = smul.addr %s185, 16
        %s187 = smul.addr %s186, 4
        %s188 = scalar_lea.vmem %s2, %s187
        %s189 = smul.u32 8, %s13
        %p190 = scmp.lt.s32.totalorder %s13, 1
        %s191 = scalar_select %p190, %s13, 1
        %s192 = smul.addr %s191, 16
        %s193 = smul.addr %s192, 4
        %s194 = scalar_lea.vmem %s2, %s193
        %v196 = vld [vmem:[%s1] sm:$0xf]
        %v197 = vld [vmem:[%s1 + $0x4] sm:$0xf]
        %v198 = vld [vmem:[%s1 + $0x8] sm:$0xf]
        %v199 = vld [vmem:[%s1 + $0xc] sm:$0xf]
        %v200 = vld [vmem:[%s1 + $0x10] sm:$0xf]
        %v201 = vld [vmem:[%s1 + $0x14] sm:$0xf]
        %v202 = vld [vmem:[%s1 + $0x18] sm:$0xf]
        %v203 = vld [vmem:[%s1 + $0x1c] sm:$0xf]
        %v204 = vld [vmem:[%s170] sm:$0xff]
        %v205 = vld [vmem:[%s170 + $0x8] sm:$0xff]
        %v206 = vld [vmem:[%s170 + $0x10] sm:$0xff]
        %v207 = vld [vmem:[%s170 + $0x18] sm:$0xff]
        %v208 = vld [vmem:[%s170 + $0x20] sm:$0xff]
        %v209 = vld [vmem:[%s170 + $0x28] sm:$0xff]
        %v210 = vld [vmem:[%s170 + $0x30] sm:$0xff]
        %v211 = vld [vmem:[%s170 + $0x38] sm:$0xff]
        %v212 = vld [vmem:[%s170 + $0x40] sm:$0xff]
        %v213 = vld [vmem:[%s170 + $0x48] sm:$0xff]
        %v214 = vld [vmem:[%s170 + $0x50] sm:$0xff]
        %v215 = vld [vmem:[%s170 + $0x58] sm:$0xff]
        %v216 = vld [vmem:[%s170 + $0x60] sm:$0x33]
        %v217 = vld [vmem:[%s170 + $0x68] sm:$0x33]
        %v218 = vld [vmem:[%s170 + $0x70] sm:$0x33]
        %v219 = vld [vmem:[%s170 + $0x78] sm:$0x33]
        %v228 = vunpack.c.l.b16 %v196
        %v229 = vunpack.c.l.b16 %v197
        %v230 = vunpack.c.l.b16 %v198
        %v231 = vunpack.c.l.b16 %v199
        %v232 = vunpack.c.l.b16 %v200
        %v233 = vunpack.c.l.b16 %v201
        %v234 = vunpack.c.l.b16 %v202
        %v235 = vunpack.c.l.b16 %v203
        %v236 = vpack.c.b16 %v229, %v228
        %v237 = vpack.c.b16 %v231, %v230
        %v238 = vpack.c.b16 %v233, %v232
        %v239 = vpack.c.b16 %v235, %v234
        %v256 = vunpack.c.l.b16 %v204
        %v257 = vunpack.c.h.b16 %v204
        %v258 = vunpack.c.l.b16 %v205
        %v259 = vunpack.c.h.b16 %v205
        %v260 = vunpack.c.l.b16 %v206
        %v261 = vunpack.c.h.b16 %v206
        %v262 = vunpack.c.l.b16 %v207
        %v263 = vunpack.c.h.b16 %v207
        %v264 = vunpack.c.l.b16 %v208
        %v265 = vunpack.c.h.b16 %v208
        %v266 = vunpack.c.l.b16 %v209
        %v267 = vunpack.c.h.b16 %v209
        %v268 = vunpack.c.l.b16 %v210
        %v269 = vunpack.c.h.b16 %v210
        %v270 = vunpack.c.l.b16 %v211
        %v271 = vunpack.c.h.b16 %v211
        %v272 = vunpack.c.l.b16 %v212
        %v273 = vunpack.c.h.b16 %v212
        %v274 = vunpack.c.l.b16 %v213
        %v275 = vunpack.c.h.b16 %v213
        %v276 = vunpack.c.l.b16 %v214
        %v277 = vunpack.c.h.b16 %v214
        %v278 = vunpack.c.l.b16 %v215
        %v279 = vunpack.c.h.b16 %v215
        %v280 = vunpack.c.l.b16 %v216
        %v281 = vunpack.c.h.b16 %v216
        %v282 = vunpack.c.l.b16 %v217
        %v283 = vunpack.c.h.b16 %v217
        %v284 = vunpack.c.l.b16 %v218
        %v285 = vunpack.c.h.b16 %v218
        %v286 = vunpack.c.l.b16 %v219
        %v287 = vunpack.c.h.b16 %v219
        %v288 = vpack.c.b16 %v264, %v256
        %v289 = vpack.c.b16 %v265, %v257
        %v290 = vpack.c.b16 %v266, %v258
        %v291 = vpack.c.b16 %v267, %v259
        %v292 = vpack.c.b16 %v268, %v260
        %v293 = vpack.c.b16 %v269, %v261
        %v294 = vpack.c.b16 %v270, %v262
        %v295 = vpack.c.b16 %v271, %v263
        %v296 = vpack.c.b16 %v280, %v272
        %v297 = vpack.c.b16 %v281, %v273
        %v298 = vpack.c.b16 %v282, %v274
        %v299 = vpack.c.b16 %v283, %v275
        %v300 = vpack.c.b16 %v284, %v276
        %v301 = vpack.c.b16 %v285, %v277
        %v302 = vpack.c.b16 %v286, %v278
        %v303 = vpack.c.b16 %v287, %v279
        %vm312 = vcmask 220160
        %v314 = vsel %vm312, %v236, 0
        %v317 = vsel %vm312, %v237, 0
        %v320 = vsel %vm312, %v238, 0
        %v323 = vsel %vm312, %v239, 0
        %vm325 = vcmask 1044480
        %vm326 = vcmask 1045504
        %v327 = vsel %vm325, 4294967295, 65535
        %v328 = vsel %vm326, %v327, 0
        %v330 = vand.u32 %v296, %v328
        %v333 = vand.u32 %v297, %v328
        %v336 = vand.u32 %v298, %v328
        %v339 = vand.u32 %v299, %v328
        %v342 = vand.u32 %v300, %v328
        %v345 = vand.u32 %v301, %v328
        %v348 = vand.u32 %v302, %v328
        %v351 = vand.u32 %v303, %v328
        %353 = vmatprep.subr.bf16.mxu0 %v289
        %354 = vmatpush1.bf16.msra.mxu0 %v288
        %355 = vmatprep.subr.bf16.mxu0 %v333
        %356 = vmatpush1.bf16.msra.mxu0 %v330
        %357 = vmatprep.subr.bf16.mxu0 0
        %358 = vmatpush1.bf16.msra.mxu0 0
        %359 = vmatprep.subr.bf16.mxu0 0
        %360 = vmatpush1.bf16.msra.mxu0 0
        %361 = vmatprep.subr.bf16.mxu0 0
        %362 = vmatpush1.bf16.msra.mxu0 0
        %363 = vmatprep.subr.bf16.mxu0 0
        %364 = vmatpush1.bf16.msra.mxu0 0
        %365 = vmatprep.subr.bf16.mxu0 0
        %366 = vmatpush1.bf16.msra.mxu0 0
        %367 = vmatprep.subr.bf16.mxu0 0
        %368 = vmatpush1.bf16.msra.mxu0 0
        %369 = vmatprep.subr.bf16.mxu0 0
        %370 = vmatpush1.bf16.msra.mxu0 0
        %371 = vmatprep.subr.bf16.mxu0 0
        %372 = vmatpush1.bf16.msra.mxu0 0
        %373 = vmatprep.subr.bf16.mxu0 0
        %374 = vmatpush1.bf16.msra.mxu0 0
        %375 = vmatprep.subr.bf16.mxu0 0
        %376 = vmatpush1.bf16.msra.mxu0 0
        %377 = vmatprep.subr.bf16.mxu0 0
        %378 = vmatpush1.bf16.msra.mxu0 0
        %379 = vmatprep.subr.bf16.mxu0 0
        %380 = vmatpush1.bf16.msra.mxu0 0
        %381 = vmatprep.subr.bf16.mxu0 0
        %382 = vmatpush1.bf16.msra.mxu0 0
        %383 = vmatprep.subr.bf16.mxu0 0
        %384 = vmatpush1.bf16.msra.mxu0 0
        %385 = vmatprep.mubr.bf16.mxu0 0
        %386 = vmatmul.mubr.bf16.gmra.mrb[0].mxu0 %v314
        %v387 = vpop.f32.mrb[0].mxu0
        %v388 = vadd.f32 0.0, %v387
        %v389 = vpop.f32.mrb[0].mxu0
        %v390 = vadd.f32 0.0, %v389
        %v391 = vpop.f32.mrb[0].mxu0
        %v392 = vadd.f32 0.0, %v391
        %v393 = vpop.f32.mrb[0].mxu0
        %v394 = vadd.f32 0.0, %v393
        %395 = vmatprep.mubr.bf16.mxu0 0
        %396 = vmatmul.mubr.bf16.gmra.mrb[0].mxu0 %v317
        %v397 = vpop.f32.mrb[0].mxu0
        %v398 = vadd.f32 0.0, %v397
        %v399 = vpop.f32.mrb[0].mxu0
        %v400 = vadd.f32 0.0, %v399
        %v401 = vpop.f32.mrb[0].mxu0
        %v402 = vadd.f32 0.0, %v401
        %v403 = vpop.f32.mrb[0].mxu0
        %v404 = vadd.f32 0.0, %v403
        %405 = vmatprep.mubr.bf16.mxu0 0
        %406 = vmatmul.mubr.bf16.gmra.mrb[0].mxu0 %v320
        %v407 = vpop.f32.mrb[0].mxu0
        %v408 = vadd.f32 0.0, %v407
        %v409 = vpop.f32.mrb[0].mxu0
        %v410 = vadd.f32 0.0, %v409
        %v411 = vpop.f32.mrb[0].mxu0
        %v412 = vadd.f32 0.0, %v411
        %v413 = vpop.f32.mrb[0].mxu0
        %v414 = vadd.f32 0.0, %v413
        %415 = vmatprep.mubr.bf16.mxu0 0
        %416 = vmatmul.mubr.bf16.gmra.mrb[0].mxu0 %v323
        %v417 = vpop.f32.mrb[0].mxu0
        %v418 = vadd.f32 0.0, %v417
        %v419 = vpop.f32.mrb[0].mxu0
        %v420 = vadd.f32 0.0, %v419
        %v421 = vpop.f32.mrb[0].mxu0
        %v422 = vadd.f32 0.0, %v421
        %v423 = vpop.f32.mrb[0].mxu0
        %v424 = vadd.f32 0.0, %v423
        %425 = vdwg.mxu0
        %426 = vmatprep.subr.bf16.mxu0 %v291
        %427 = vmatpush1.bf16.msra.mxu0 %v290
        %428 = vmatprep.subr.bf16.mxu0 %v339
        %429 = vmatpush1.bf16.msra.mxu0 %v336
        %430 = vmatprep.subr.bf16.mxu0 0
        %431 = vmatpush1.bf16.msra.mxu0 0
        %432 = vmatprep.subr.bf16.mxu0 0
        %433 = vmatpush1.bf16.msra.mxu0 0
        %434 = vmatprep.subr.bf16.mxu0 0
        %435 = vmatpush1.bf16.msra.mxu0 0
        %436 = vmatprep.subr.bf16.mxu0 0
        %437 = vmatpush1.bf16.msra.mxu0 0
        %438 = vmatprep.subr.bf16.mxu0 0
        %439 = vmatpush1.bf16.msra.mxu0 0
        %440 = vmatprep.subr.bf16.mxu0 0
        %441 = vmatpush1.bf16.msra.mxu0 0
        %442 = vmatprep.subr.bf16.mxu0 0
        %443 = vmatpush1.bf16.msra.mxu0 0
        %444 = vmatprep.subr.bf16.mxu0 0
        %445 = vmatpush1.bf16.msra.mxu0 0
        %446 = vmatprep.subr.bf16.mxu0 0
        %447 = vmatpush1.bf16.msra.mxu0 0
        %448 = vmatprep.subr.bf16.mxu0 0
        %449 = vmatpush1.bf16.msra.mxu0 0
        %450 = vmatprep.subr.bf16.mxu0 0
        %451 = vmatpush1.bf16.msra.mxu0 0
        %452 = vmatprep.subr.bf16.mxu0 0
        %453 = vmatpush1.bf16.msra.mxu0 0
        %454 = vmatprep.subr.bf16.mxu0 0
        %455 = vmatpush1.bf16.msra.mxu0 0
        %456 = vmatprep.subr.bf16.mxu0 0
        %457 = vmatpush1.bf16.msra.mxu0 0
        %458 = vmatprep.mubr.bf16.mxu0 0
        %459 = vmatmul.mubr.bf16.gmra.mrb[0].mxu0 %v314
        %v460 = vpop.f32.mrb[0].mxu0
        %v461 = vadd.f32 0.0, %v460
        %v462 = vpop.f32.mrb[0].mxu0
        %v463 = vadd.f32 0.0, %v462
        %v464 = vpop.f32.mrb[0].mxu0
        %v465 = vadd.f32 0.0, %v464
        %v466 = vpop.f32.mrb[0].mxu0
        %v467 = vadd.f32 0.0, %v466
        %468 = vmatprep.mubr.bf16.mxu0 0
        %469 = vmatmul.mubr.bf16.gmra.mrb[0].mxu0 %v317
        %v470 = vpop.f32.mrb[0].mxu0
        %v471 = vadd.f32 0.0, %v470
        %v472 = vpop.f32.mrb[0].mxu0
        %v473 = vadd.f32 0.0, %v472
        %v474 = vpop.f32.mrb[0].mxu0
        %v475 = vadd.f32 0.0, %v474
        %v476 = vpop.f32.mrb[0].mxu0
        %v477 = vadd.f32 0.0, %v476
        %478 = vmatprep.mubr.bf16.mxu0 0
        %479 = vmatmul.mubr.bf16.gmra.mrb[0].mxu0 %v320
        %v480 = vpop.f32.mrb[0].mxu0
        %v481 = vadd.f32 0.0, %v480
        %v482 = vpop.f32.mrb[0].mxu0
        %v483 = vadd.f32 0.0, %v482
        %v484 = vpop.f32.mrb[0].mxu0
        %v485 = vadd.f32 0.0, %v484
        %v486 = vpop.f32.mrb[0].mxu0
        %v487 = vadd.f32 0.0, %v486
        %488 = vmatprep.mubr.bf16.mxu0 0
        %489 = vmatmul.mubr.bf16.gmra.mrb[0].mxu0 %v323
        %v490 = vpop.f32.mrb[0].mxu0
        %v491 = vadd.f32 0.0, %v490
        %v492 = vpop.f32.mrb[0].mxu0
        %v493 = vadd.f32 0.0, %v492
        %v494 = vpop.f32.mrb[0].mxu0
        %v495 = vadd.f32 0.0, %v494
        %v496 = vpop.f32.mrb[0].mxu0
        %v497 = vadd.f32 0.0, %v496
        %498 = vdwg.mxu0
        %499 = vmatprep.subr.bf16.mxu0 %v293
        %500 = vmatpush1.bf16.msra.mxu0 %v292
        %501 = vmatprep.subr.bf16.mxu0 %v345
        %502 = vmatpush1.bf16.msra.mxu0 %v342
        %503 = vmatprep.subr.bf16.mxu0 0
        %504 = vmatpush1.bf16.msra.mxu0 0
        %505 = vmatprep.subr.bf16.mxu0 0
        %506 = vmatpush1.bf16.msra.mxu0 0
        %507 = vmatprep.subr.bf16.mxu0 0
        %508 = vmatpush1.bf16.msra.mxu0 0
        %509 = vmatprep.subr.bf16.mxu0 0
        %510 = vmatpush1.bf16.msra.mxu0 0
        %511 = vmatprep.subr.bf16.mxu0 0
        %512 = vmatpush1.bf16.msra.mxu0 0
        %513 = vmatprep.subr.bf16.mxu0 0
        %514 = vmatpush1.bf16.msra.mxu0 0
        %515 = vmatprep.subr.bf16.mxu0 0
        %516 = vmatpush1.bf16.msra.mxu0 0
        %517 = vmatprep.subr.bf16.mxu0 0
        %518 = vmatpush1.bf16.msra.mxu0 0
        %519 = vmatprep.subr.bf16.mxu0 0
        %520 = vmatpush1.bf16.msra.mxu0 0
        %521 = vmatprep.subr.bf16.mxu0 0
        %522 = vmatpush1.bf16.msra.mxu0 0
        %523 = vmatprep.subr.bf16.mxu0 0
        %524 = vmatpush1.bf16.msra.mxu0 0
        %525 = vmatprep.subr.bf16.mxu0 0
        %526 = vmatpush1.bf16.msra.mxu0 0
        %527 = vmatprep.subr.bf16.mxu0 0
        %528 = vmatpush1.bf16.msra.mxu0 0
        %529 = vmatprep.subr.bf16.mxu0 0
        %530 = vmatpush1.bf16.msra.mxu0 0
        %531 = vmatprep.mubr.bf16.mxu0 0
        %532 = vmatmul.mubr.bf16.gmra.mrb[0].mxu0 %v314
        %v533 = vpop.f32.mrb[0].mxu0
        %v534 = vadd.f32 0.0, %v533
        %v535 = vpop.f32.mrb[0].mxu0
        %v536 = vadd.f32 0.0, %v535
        %v537 = vpop.f32.mrb[0].mxu0
        %v538 = vadd.f32 0.0, %v537
        %v539 = vpop.f32.mrb[0].mxu0
        %v540 = vadd.f32 0.0, %v539
        %541 = vmatprep.mubr.bf16.mxu0 0
        %542 = vmatmul.mubr.bf16.gmra.mrb[0].mxu0 %v317
        %v543 = vpop.f32.mrb[0].mxu0
        %v544 = vadd.f32 0.0, %v543
        %v545 = vpop.f32.mrb[0].mxu0
        %v546 = vadd.f32 0.0, %v545
        %v547 = vpop.f32.mrb[0].mxu0
        %v548 = vadd.f32 0.0, %v547
        %v549 = vpop.f32.mrb[0].mxu0
        %v550 = vadd.f32 0.0, %v549
        %551 = vmatprep.mubr.bf16.mxu0 0
        %552 = vmatmul.mubr.bf16.gmra.mrb[0].mxu0 %v320
        %v553 = vpop.f32.mrb[0].mxu0
        %v554 = vadd.f32 0.0, %v553
        %v555 = vpop.f32.mrb[0].mxu0
        %v556 = vadd.f32 0.0, %v555
        %v557 = vpop.f32.mrb[0].mxu0
        %v558 = vadd.f32 0.0, %v557
        %v559 = vpop.f32.mrb[0].mxu0
        %v560 = vadd.f32 0.0, %v559
        %561 = vmatprep.mubr.bf16.mxu0 0
        %562 = vmatmul.mubr.bf16.gmra.mrb[0].mxu0 %v323
        %v563 = vpop.f32.mrb[0].mxu0
        %v564 = vadd.f32 0.0, %v563
        %v565 = vpop.f32.mrb[0].mxu0
        %v566 = vadd.f32 0.0, %v565
        %v567 = vpop.f32.mrb[0].mxu0
        %v568 = vadd.f32 0.0, %v567
        %v569 = vpop.f32.mrb[0].mxu0
        %v570 = vadd.f32 0.0, %v569
        %571 = vdwg.mxu0
        %572 = vmatprep.subr.bf16.mxu0 %v295
        %573 = vmatpush1.bf16.msra.mxu0 %v294
        %574 = vmatprep.subr.bf16.mxu0 %v351
        %575 = vmatpush1.bf16.msra.mxu0 %v348
        %576 = vmatprep.subr.bf16.mxu0 0
        %577 = vmatpush1.bf16.msra.mxu0 0
        %578 = vmatprep.subr.bf16.mxu0 0
        %579 = vmatpush1.bf16.msra.mxu0 0
        %580 = vmatprep.subr.bf16.mxu0 0
        %581 = vmatpush1.bf16.msra.mxu0 0
        %582 = vmatprep.subr.bf16.mxu0 0
        %583 = vmatpush1.bf16.msra.mxu0 0
        %584 = vmatprep.subr.bf16.mxu0 0
        %585 = vmatpush1.bf16.msra.mxu0 0
        %586 = vmatprep.subr.bf16.mxu0 0
        %587 = vmatpush1.bf16.msra.mxu0 0
        %588 = vmatprep.subr.bf16.mxu0 0
        %589 = vmatpush1.bf16.msra.mxu0 0
        %590 = vmatprep.subr.bf16.mxu0 0
        %591 = vmatpush1.bf16.msra.mxu0 0
        %592 = vmatprep.subr.bf16.mxu0 0
        %593 = vmatpush1.bf16.msra.mxu0 0
        %594 = vmatprep.subr.bf16.mxu0 0
        %595 = vmatpush1.bf16.msra.mxu0 0
        %596 = vmatprep.subr.bf16.mxu0 0
        %597 = vmatpush1.bf16.msra.mxu0 0
        %598 = vmatprep.subr.bf16.mxu0 0
        %599 = vmatpush1.bf16.msra.mxu0 0
        %600 = vmatprep.subr.bf16.mxu0 0
        %601 = vmatpush1.bf16.msra.mxu0 0
        %602 = vmatprep.subr.bf16.mxu0 0
        %603 = vmatpush1.bf16.msra.mxu0 0
        %604 = vmatprep.mubr.bf16.mxu0 0
        %605 = vmatmul.mubr.bf16.gmra.mrb[0].mxu0 %v314
        %v606 = vpop.f32.mrb[0].mxu0
        %v607 = vadd.f32 0.0, %v606
        %v608 = vpop.f32.mrb[0].mxu0
        %v609 = vadd.f32 0.0, %v608
        %v610 = vpop.f32.mrb[0].mxu0
        %v611 = vadd.f32 0.0, %v610
        %v612 = vpop.f32.mrb[0].mxu0
        %v613 = vadd.f32 0.0, %v612
        %614 = vmatprep.mubr.bf16.mxu0 0
        %615 = vmatmul.mubr.bf16.gmra.mrb[0].mxu0 %v317
        %v616 = vpop.f32.mrb[0].mxu0
        %v617 = vadd.f32 0.0, %v616
        %v618 = vpop.f32.mrb[0].mxu0
        %v619 = vadd.f32 0.0, %v618
        %v620 = vpop.f32.mrb[0].mxu0
        %v621 = vadd.f32 0.0, %v620
        %v622 = vpop.f32.mrb[0].mxu0
        %v623 = vadd.f32 0.0, %v622
        %624 = vmatprep.mubr.bf16.mxu0 0
        %625 = vmatmul.mubr.bf16.gmra.mrb[0].mxu0 %v320
        %v626 = vpop.f32.mrb[0].mxu0
        %v627 = vadd.f32 0.0, %v626
        %v628 = vpop.f32.mrb[0].mxu0
        %v629 = vadd.f32 0.0, %v628
        %v630 = vpop.f32.mrb[0].mxu0
        %v631 = vadd.f32 0.0, %v630
        %v632 = vpop.f32.mrb[0].mxu0
        %v633 = vadd.f32 0.0, %v632
        %634 = vmatprep.mubr.bf16.mxu0 0
        %635 = vmatmul.mubr.bf16.gmra.mrb[0].mxu0 %v323
        %v636 = vpop.f32.mrb[0].mxu0
        %v637 = vadd.f32 0.0, %v636
        %v638 = vpop.f32.mrb[0].mxu0
        %v639 = vadd.f32 0.0, %v638
        %v640 = vpop.f32.mrb[0].mxu0
        %v641 = vadd.f32 0.0, %v640
        %v642 = vpop.f32.mrb[0].mxu0
        %v643 = vadd.f32 0.0, %v642
        %644 = vdwg.mxu0
        %v645 = vmax.f32 %v388, 0.0
        %v646 = vmax.f32 %v390, 0.0
        %v647 = vmax.f32 %v461, 0.0
        %v648 = vmax.f32 %v463, 0.0
        %v649 = vmax.f32 %v534, 0.0
        %v650 = vmax.f32 %v536, 0.0
        %v651 = vmax.f32 %v607, 0.0
        %v652 = vmax.f32 %v609, 0.0
        %v653 = vmax.f32 %v392, 0.0
        %v654 = vmax.f32 %v394, 0.0
        %v655 = vmax.f32 %v465, 0.0
        %v656 = vmax.f32 %v467, 0.0
        %v657 = vmax.f32 %v538, 0.0
        %v658 = vmax.f32 %v540, 0.0
        %v659 = vmax.f32 %v611, 0.0
        %v660 = vmax.f32 %v613, 0.0
        %v661 = vmax.f32 %v398, 0.0
        %v662 = vmax.f32 %v400, 0.0
        %v663 = vmax.f32 %v471, 0.0
        %v664 = vmax.f32 %v473, 0.0
        %v665 = vmax.f32 %v544, 0.0
        %v666 = vmax.f32 %v546, 0.0
        %v667 = vmax.f32 %v617, 0.0
        %v668 = vmax.f32 %v619, 0.0
        %v669 = vmax.f32 %v402, 0.0
        %v670 = vmax.f32 %v404, 0.0
        %v671 = vmax.f32 %v475, 0.0
        %v672 = vmax.f32 %v477, 0.0
        %v673 = vmax.f32 %v548, 0.0
        %v674 = vmax.f32 %v550, 0.0
        %v675 = vmax.f32 %v621, 0.0
        %v676 = vmax.f32 %v623, 0.0
        %v677 = vmax.f32 %v408, 0.0
        %v678 = vmax.f32 %v410, 0.0
        %v679 = vmax.f32 %v481, 0.0
        %v680 = vmax.f32 %v483, 0.0
        %v681 = vmax.f32 %v554, 0.0
        %v682 = vmax.f32 %v556, 0.0
        %v683 = vmax.f32 %v627, 0.0
        %v684 = vmax.f32 %v629, 0.0
        %v685 = vmax.f32 %v412, 0.0
        %v686 = vmax.f32 %v414, 0.0
        %v687 = vmax.f32 %v485, 0.0
        %v688 = vmax.f32 %v487, 0.0
        %v689 = vmax.f32 %v558, 0.0
        %v690 = vmax.f32 %v560, 0.0
        %v691 = vmax.f32 %v631, 0.0
        %v692 = vmax.f32 %v633, 0.0
        %v693 = vmax.f32 %v418, 0.0
        %v694 = vmax.f32 %v420, 0.0
        %v695 = vmax.f32 %v491, 0.0
        %v696 = vmax.f32 %v493, 0.0
        %v697 = vmax.f32 %v564, 0.0
        %v698 = vmax.f32 %v566, 0.0
        %v699 = vmax.f32 %v637, 0.0
        %v700 = vmax.f32 %v639, 0.0
        %v701 = vmax.f32 %v422, 0.0
        %v702 = vmax.f32 %v424, 0.0
        %v703 = vmax.f32 %v495, 0.0
        %v704 = vmax.f32 %v497, 0.0
        %v705 = vmax.f32 %v568, 0.0
        %v706 = vmax.f32 %v570, 0.0
        %v707 = vmax.f32 %v641, 0.0
        %v708 = vmax.f32 %v643, 0.0
        %v709 = vmax.f32 %v645, %v647
        %v710 = vmax.f32 %v646, %v648
        %v711 = vmax.f32 %v653, %v655
        %v712 = vmax.f32 %v654, %v656
        %v713 = vmax.f32 %v661, %v663
        %v714 = vmax.f32 %v662, %v664
        %v715 = vmax.f32 %v669, %v671
        %v716 = vmax.f32 %v670, %v672
        %v717 = vmax.f32 %v677, %v679
        %v718 = vmax.f32 %v678, %v680
        %v719 = vmax.f32 %v685, %v687
        %v720 = vmax.f32 %v686, %v688
        %v721 = vmax.f32 %v693, %v695
        %v722 = vmax.f32 %v694, %v696
        %v723 = vmax.f32 %v701, %v703
        %v724 = vmax.f32 %v702, %v704
        %v725 = vmax.f32 %v649, %v651
        %v726 = vmax.f32 %v650, %v652
        %v727 = vmax.f32 %v657, %v659
        %v728 = vmax.f32 %v658, %v660
        %v729 = vmax.f32 %v665, %v667
        %v730 = vmax.f32 %v666, %v668
        %v731 = vmax.f32 %v673, %v675
        %v732 = vmax.f32 %v674, %v676
        %v733 = vmax.f32 %v681, %v683
        %v734 = vmax.f32 %v682, %v684
        %v735 = vmax.f32 %v689, %v691
        %v736 = vmax.f32 %v690, %v692
        %v737 = vmax.f32 %v697, %v699
        %v738 = vmax.f32 %v698, %v700
        %v739 = vmax.f32 %v705, %v707
        %v740 = vmax.f32 %v706, %v708
        %v741 = vmax.f32 %v709, %v725
        %v742 = vmax.f32 %v710, %v726
        %v743 = vmax.f32 %v711, %v727
        %v744 = vmax.f32 %v712, %v728
        %v745 = vmax.f32 %v713, %v729
        %v746 = vmax.f32 %v714, %v730
        %v747 = vmax.f32 %v715, %v731
        %v748 = vmax.f32 %v716, %v732
        %v749 = vmax.f32 %v717, %v733
        %v750 = vmax.f32 %v718, %v734
        %v751 = vmax.f32 %v719, %v735
        %v752 = vmax.f32 %v720, %v736
        %v753 = vmax.f32 %v721, %v737
        %v754 = vmax.f32 %v722, %v738
        %v755 = vmax.f32 %v723, %v739
        %v756 = vmax.f32 %v724, %v740
        %v757 = vpack.c.bf16 %v743, %v741
        %v758 = vpack.c.bf16 %v744, %v742
        %v759 = vpack.c.bf16 %v747, %v745
        %v760 = vpack.c.bf16 %v748, %v746
        %v761 = vpack.c.bf16 %v751, %v749
        %v762 = vpack.c.bf16 %v752, %v750
        %v763 = vpack.c.bf16 %v755, %v753
        %v764 = vpack.c.bf16 %v756, %v754
        %v773 = vunpack.c.l.b16 %v757
        %v774 = vunpack.c.l.b16 %v758
        %v775 = vunpack.c.h.b16 %v757
        %v776 = vunpack.c.h.b16 %v758
        %v777 = vunpack.c.l.b16 %v759
        %v778 = vunpack.c.l.b16 %v760
        %v779 = vunpack.c.h.b16 %v759
        %v780 = vunpack.c.h.b16 %v760
        %v781 = vunpack.c.l.b16 %v761
        %v782 = vunpack.c.l.b16 %v762
        %v783 = vunpack.c.h.b16 %v761
        %v784 = vunpack.c.h.b16 %v762
        %v785 = vunpack.c.l.b16 %v763
        %v786 = vunpack.c.l.b16 %v764
        %v787 = vunpack.c.h.b16 %v763
        %v788 = vunpack.c.h.b16 %v764
        %v789 = vpack.c.b16 %v774, %v773
        %v790 = vpack.c.b16 %v776, %v775
        %v791 = vpack.c.b16 %v778, %v777
        %v792 = vpack.c.b16 %v780, %v779
        %v793 = vpack.c.b16 %v782, %v781
        %v794 = vpack.c.b16 %v784, %v783
        %v795 = vpack.c.b16 %v786, %v785
        %v796 = vpack.c.b16 %v788, %v787
        %805 = vst [vmem:[%s194] sm:$0xff] %v789
        %806 = vst [vmem:[%s194 + $0x8] sm:$0xff] %v790
        %807 = vst [vmem:[%s194 + $0x10] sm:$0xff] %v791
        %808 = vst [vmem:[%s194 + $0x18] sm:$0xff] %v792
        %809 = vst [vmem:[%s194 + $0x20] sm:$0xff] %v793
        %810 = vst [vmem:[%s194 + $0x28] sm:$0xff] %v794
        %811 = vst [vmem:[%s194 + $0x30] sm:$0xff] %v795
        %812 = vst [vmem:[%s194 + $0x38] sm:$0xff] %v796
        %p813 = scmp.lt.s32.totalorder %s13, 1
        %s814 = scalar_select %p813, %s13, 1
        %s815 = smul.addr %s814, 16
        %s816 = smul.addr %s815, 4
        %s817 = scalar_lea.vmem %s2, %s816
        // Predicated region
        $region52: #{conv_dann_forward.2} parent=46 // pred_check
          %p818 = pneg %p78
        $region53: #{conv_dann_forward.2} parent=46 // pred_check_branch
          %820 = sbr.rel (%p818) target = $region55
        $region54: #{conv_dann_forward.2} parent=46 // pred_region
          _
        $region55: #{conv_dann_forward.2} parent=46 // pred_fallthru
          _
      $region47: #{conv_dann_forward.2} parent=5 // pred_fallthru
        _
      %p821 = scmp.le.s32.totalorder 2, %s8
      // Predicated region
      $region56: #{conv_dann_forward.2} parent=5 // pred_check
        %p822 = pneg %p821
      $region57: #{conv_dann_forward.2} parent=5 // pred_check_branch
        %824 = sbr.rel (%p822) target = $region59
      $region58: #{conv_dann_forward.2} parent=5 // pred_region
        %s825 = ssub.s32 %s8, 2
        // Predicated region
        $region60: #{conv_dann_forward.2} parent=58 // pred_check
          %p826 = pneg %p84
        $region61: #{conv_dann_forward.2} parent=58 // pred_check_branch
          %828 = sbr.rel (%p826) target = $region63
        $region62: #{conv_dann_forward.2} parent=58 // pred_region
          %p829 = scmp.lt.s32.totalorder %s14, 1
          %s830 = scalar_select %p829, %s14, 1
          %s831 = smul.addr %s830, 16
          %s832 = smul.addr %s831, 4
          %s833 = scalar_lea.vmem %s2, %s832
        $region63: #{conv_dann_forward.2} parent=58 // pred_fallthru
          _
      $region59: #{conv_dann_forward.2} parent=5 // pred_fallthru
        _
    $region6: #{conv_dann_forward.2} parent=1 // loop_footer
      %s12 = sadd.s32 1, %s8
    $region7: #{conv_dann_forward.2} parent=1 // loop_footer_branch
      %7 = sbr.rel target = $region3
    $region8: #{conv_dann_forward.2} parent=1 // loop_exit
      _

// kernel: conv_dann_forward.3
$region0: #{conv_dann_forward.3}
  #allocation0 [shape = 'u32[]', space=smem, size = 0x4, offset = 0x4, fixed_abs, tag = 'smem constant byte address 0x4 - core index']
  #allocation1 [shape = 'u32[144,128]{1,0:T(1,128)}', space=vmem, size = 0x12000, scoped, tag = 'internal scratch']
  %s0 = inlined_call_operand.vmem [shape: bf16[2,16384], index: 0, kind: input, shape index: {}]
  %s1 = inlined_call_operand.vmem [shape: bf16[10,16384], index: 1, kind: input, shape index: {}]
  %s2 = inlined_call_operand.vmem [shape: f32[1,10], index: 2, kind: input, shape index: {}]
  %s3 = inlined_call_operand.hbm [shape: f32[2,10], index: 3, kind: output, shape index: {}]
  %s4 = sld [smem:[#allocation0]]
  $region22: #{conv_dann_forward.3} parent=0
    _
  %s6 = ssub.s32 1, %s4
  %s7 = scalar_select 0, %s6, %s4
  $region1: #{conv_dann_forward.3} parent=0
    #allocation2 [shape = 'u8[1024]{0}', space=vmem, size = 0x400, scoped, tag = 'output window, operand 0, single buffered']
    #allocation3 [shape = 's32[1]{0}', space=sflag, size = 0x4, scoped, tag = 'scoped memory for conv_dann_forward.3']
    %8 = vsyncpa [#allocation3], 0
    // Predicated region
    $region2: #{conv_dann_forward.3} parent=1 // pred_check
      _
    $region3: #{conv_dann_forward.3} parent=1 // pred_check_branch
      %10 = sbr.rel (0) target = $region5
    $region4: #{conv_dann_forward.3} parent=1 // pred_region
      _
    $region5: #{conv_dann_forward.3} parent=1 // pred_fallthru
      _
    // Predicated region
    $region6: #{conv_dann_forward.3} parent=1 // pred_check
      _
    $region7: #{conv_dann_forward.3} parent=1 // pred_check_branch
      %12 = sbr.rel (0) target = $region9
    $region8: #{conv_dann_forward.3} parent=1 // pred_region
      _
    $region9: #{conv_dann_forward.3} parent=1 // pred_fallthru
      _
    // Predicated region
    $region10: #{conv_dann_forward.3} parent=1 // pred_check
      _
    $region11: #{conv_dann_forward.3} parent=1 // pred_check_branch
      %14 = sbr.rel (0) target = $region13
    $region12: #{conv_dann_forward.3} parent=1 // pred_region
      _
    $region13: #{conv_dann_forward.3} parent=1 // pred_fallthru
      _
    %v16 = vld [vmem:[%s0] sm:$0xff]
    %v17 = vld [vmem:[%s0 + $0x8] sm:$0xff]
    %v18 = vld [vmem:[%s0 + $0x10] sm:$0xff]
    %v19 = vld [vmem:[%s0 + $0x18] sm:$0xff]
    %v20 = vld [vmem:[%s0 + $0x20] sm:$0xff]
    %v21 = vld [vmem:[%s0 + $0x28] sm:$0xff]
    %v22 = vld [vmem:[%s0 + $0x30] sm:$0xff]
    %v23 = vld [vmem:[%s0 + $0x38] sm:$0xff]
    %v24 = vld [vmem:[%s0 + $0x40] sm:$0xff]
    %v25 = vld [vmem:[%s0 + $0x48] sm:$0xff]
    %v26 = vld [vmem:[%s0 + $0x50] sm:$0xff]
    %v27 = vld [vmem:[%s0 + $0x58] sm:$0xff]
    %v28 = vld [vmem:[%s0 + $0x60] sm:$0xff]
    %v29 = vld [vmem:[%s0 + $0x68] sm:$0xff]
    %v30 = vld [vmem:[%s0 + $0x70] sm:$0xff]
    %v31 = vld [vmem:[%s0 + $0x78] sm:$0xff]
    %v32 = vld [vmem:[%s1] sm:$0xff]
    %v33 = vld [vmem:[%s1 + $0x8] sm:$0xff]
    %v34 = vld [vmem:[%s1 + $0x10] sm:$0xff]
    %v35 = vld [vmem:[%s1 + $0x18] sm:$0xff]
    %v36 = vld [vmem:[%s1 + $0x20] sm:$0xff]
    %v37 = vld [vmem:[%s1 + $0x28] sm:$0xff]
    %v38 = vld [vmem:[%s1 + $0x30] sm:$0xff]
    %v39 = vld [vmem:[%s1 + $0x38] sm:$0xff]
    %v40 = vld [vmem:[%s1 + $0x40] sm:$0xff]
    %v41 = vld [vmem:[%s1 + $0x48] sm:$0xff]
    %v42 = vld [vmem:[%s1 + $0x50] sm:$0xff]
    %v43 = vld [vmem:[%s1 + $0x58] sm:$0xff]
    %v44 = vld [vmem:[%s1 + $0x60] sm:$0xff]
    %v45 = vld [vmem:[%s1 + $0x68] sm:$0xff]
    %v46 = vld [vmem:[%s1 + $0x70] sm:$0xff]
    %v47 = vld [vmem:[%s1 + $0x78] sm:$0xff]
    %v48 = vld [vmem:[%s1 + $0x80] sm:$0xff]
    %v49 = vld [vmem:[%s1 + $0x88] sm:$0xff]
    %v50 = vld [vmem:[%s1 + $0x90] sm:$0xff]
    %v51 = vld [vmem:[%s1 + $0x98] sm:$0xff]
    %v52 = vld [vmem:[%s1 + $0xa0] sm:$0xff]
    %v53 = vld [vmem:[%s1 + $0xa8] sm:$0xff]
    %v54 = vld [vmem:[%s1 + $0xb0] sm:$0xff]
    %v55 = vld [vmem:[%s1 + $0xb8] sm:$0xff]
    %v56 = vld [vmem:[%s1 + $0xc0] sm:$0xff]
    %v57 = vld [vmem:[%s1 + $0xc8] sm:$0xff]
    %v58 = vld [vmem:[%s1 + $0xd0] sm:$0xff]
    %v59 = vld [vmem:[%s1 + $0xd8] sm:$0xff]
    %v60 = vld [vmem:[%s1 + $0xe0] sm:$0xff]
    %v61 = vld [vmem:[%s1 + $0xe8] sm:$0xff]
    %v62 = vld [vmem:[%s1 + $0xf0] sm:$0xff]
    %v63 = vld [vmem:[%s1 + $0xf8] sm:$0xff]
    %v64 = vld [vmem:[%s1 + $0x100] sm:$0xff]
    %v65 = vld [vmem:[%s1 + $0x108] sm:$0xff]
    %v66 = vld [vmem:[%s1 + $0x110] sm:$0xff]
    %v67 = vld [vmem:[%s1 + $0x118] sm:$0xff]
    %v68 = vld [vmem:[%s1 + $0x120] sm:$0xff]
    %v69 = vld [vmem:[%s1 + $0x128] sm:$0xff]
    %v70 = vld [vmem:[%s1 + $0x130] sm:$0xff]
    %v71 = vld [vmem:[%s1 + $0x138] sm:$0xff]
    %v72 = vld [vmem:[%s1 + $0x140] sm:$0xff]
    %v73 = vld [vmem:[%s1 + $0x148] sm:$0xff]
    %v74 = vld [vmem:[%s1 + $0x150] sm:$0xff]
    %v75 = vld [vmem:[%s1 + $0x158] sm:$0xff]
    %v76 = vld [vmem:[%s1 + $0x160] sm:$0xff]
    %v77 = vld [vmem:[%s1 + $0x168] sm:$0xff]
    %v78 = vld [vmem:[%s1 + $0x170] sm:$0xff]
    %v79 = vld [vmem:[%s1 + $0x178] sm:$0xff]
    %v80 = vld [vmem:[%s1 + $0x180] sm:$0xff]
    %v81 = vld [vmem:[%s1 + $0x188] sm:$0xff]
    %v82 = vld [vmem:[%s1 + $0x190] sm:$0xff]
    %v83 = vld [vmem:[%s1 + $0x198] sm:$0xff]
    %v84 = vld [vmem:[%s1 + $0x1a0] sm:$0xff]
    %v85 = vld [vmem:[%s1 + $0x1a8] sm:$0xff]
    %v86 = vld [vmem:[%s1 + $0x1b0] sm:$0xff]
    %v87 = vld [vmem:[%s1 + $0x1b8] sm:$0xff]
    %v88 = vld [vmem:[%s1 + $0x1c0] sm:$0xff]
    %v89 = vld [vmem:[%s1 + $0x1c8] sm:$0xff]
    %v90 = vld [vmem:[%s1 + $0x1d0] sm:$0xff]
    %v91 = vld [vmem:[%s1 + $0x1d8] sm:$0xff]
    %v92 = vld [vmem:[%s1 + $0x1e0] sm:$0xff]
    %v93 = vld [vmem:[%s1 + $0x1e8] sm:$0xff]
    %v94 = vld [vmem:[%s1 + $0x1f0] sm:$0xff]
    %v95 = vld [vmem:[%s1 + $0x1f8] sm:$0xff]
    %v96 = vld [vmem:[%s1 + $0x200] sm:$0x11]
    %v97 = vld [vmem:[%s1 + $0x208] sm:$0x11]
    %v98 = vld [vmem:[%s1 + $0x210] sm:$0x11]
    %v99 = vld [vmem:[%s1 + $0x218] sm:$0x11]
    %v100 = vld [vmem:[%s1 + $0x220] sm:$0x11]
    %v101 = vld [vmem:[%s1 + $0x228] sm:$0x11]
    %v102 = vld [vmem:[%s1 + $0x230] sm:$0x11]
    %v103 = vld [vmem:[%s1 + $0x238] sm:$0x11]
    %v104 = vld [vmem:[%s1 + $0x240] sm:$0x11]
    %v105 = vld [vmem:[%s1 + $0x248] sm:$0x11]
    %v106 = vld [vmem:[%s1 + $0x250] sm:$0x11]
    %v107 = vld [vmem:[%s1 + $0x258] sm:$0x11]
    %v108 = vld [vmem:[%s1 + $0x260] sm:$0x11]
    %v109 = vld [vmem:[%s1 + $0x268] sm:$0x11]
    %v110 = vld [vmem:[%s1 + $0x270] sm:$0x11]
    %v111 = vld [vmem:[%s1 + $0x278] sm:$0x11]
    %v112 = vld [vmem:[%s1 + $0x280] sm:$0x11]
    %v113 = vld [vmem:[%s1 + $0x288] sm:$0x11]
    %v114 = vld [vmem:[%s1 + $0x290] sm:$0x11]
    %v115 = vld [vmem:[%s1 + $0x298] sm:$0x11]
    %v116 = vld [vmem:[%s1 + $0x2a0] sm:$0x11]
    %v117 = vld [vmem:[%s1 + $0x2a8] sm:$0x11]
    %v118 = vld [vmem:[%s1 + $0x2b0] sm:$0x11]
    %v119 = vld [vmem:[%s1 + $0x2b8] sm:$0x11]
    %v120 = vld [vmem:[%s1 + $0x2c0] sm:$0x11]
    %v121 = vld [vmem:[%s1 + $0x2c8] sm:$0x11]
    %v122 = vld [vmem:[%s1 + $0x2d0] sm:$0x11]
    %v123 = vld [vmem:[%s1 + $0x2d8] sm:$0x11]
    %v124 = vld [vmem:[%s1 + $0x2e0] sm:$0x11]
    %v125 = vld [vmem:[%s1 + $0x2e8] sm:$0x11]
    %v126 = vld [vmem:[%s1 + $0x2f0] sm:$0x11]
    %v127 = vld [vmem:[%s1 + $0x2f8] sm:$0x11]
    %v128 = vld [vmem:[%s1 + $0x300] sm:$0x11]
    %v129 = vld [vmem:[%s1 + $0x308] sm:$0x11]
    %v130 = vld [vmem:[%s1 + $0x310] sm:$0x11]
    %v131 = vld [vmem:[%s1 + $0x318] sm:$0x11]
    %v132 = vld [vmem:[%s1 + $0x320] sm:$0x11]
    %v133 = vld [vmem:[%s1 + $0x328] sm:$0x11]
    %v134 = vld [vmem:[%s1 + $0x330] sm:$0x11]
    %v135 = vld [vmem:[%s1 + $0x338] sm:$0x11]
    %v136 = vld [vmem:[%s1 + $0x340] sm:$0x11]
    %v137 = vld [vmem:[%s1 + $0x348] sm:$0x11]
    %v138 = vld [vmem:[%s1 + $0x350] sm:$0x11]
    %v139 = vld [vmem:[%s1 + $0x358] sm:$0x11]
    %v140 = vld [vmem:[%s1 + $0x360] sm:$0x11]
    %v141 = vld [vmem:[%s1 + $0x368] sm:$0x11]
    %v142 = vld [vmem:[%s1 + $0x370] sm:$0x11]
    %v143 = vld [vmem:[%s1 + $0x378] sm:$0x11]
    %v144 = vld [vmem:[%s1 + $0x380] sm:$0x11]
    %v145 = vld [vmem:[%s1 + $0x388] sm:$0x11]
    %v146 = vld [vmem:[%s1 + $0x390] sm:$0x11]
    %v147 = vld [vmem:[%s1 + $0x398] sm:$0x11]
    %v148 = vld [vmem:[%s1 + $0x3a0] sm:$0x11]
    %v149 = vld [vmem:[%s1 + $0x3a8] sm:$0x11]
    %v150 = vld [vmem:[%s1 + $0x3b0] sm:$0x11]
    %v151 = vld [vmem:[%s1 + $0x3b8] sm:$0x11]
    %v152 = vld [vmem:[%s1 + $0x3c0] sm:$0x11]
    %v153 = vld [vmem:[%s1 + $0x3c8] sm:$0x11]
    %v154 = vld [vmem:[%s1 + $0x3d0] sm:$0x11]
    %v155 = vld [vmem:[%s1 + $0x3d8] sm:$0x11]
    %v156 = vld [vmem:[%s1 + $0x3e0] sm:$0x11]
    %v157 = vld [vmem:[%s1 + $0x3e8] sm:$0x11]
    %v158 = vld [vmem:[%s1 + $0x3f0] sm:$0x11]
    %v159 = vld [vmem:[%s1 + $0x3f8] sm:$0x11]
    %v160 = vld [vmem:[%s2] sm:$0x1]
    %v162 = vlaneseq
    %v163 = vshrl.u32 %v162, 7
    %v164 = vsub.s32 0, %v163
    %v165 = vrot.slane %v160, %v164
    %v183 = vcombine.high %v16, %v16
    %v185 = vunpack.c.l.s4 1966171168
    %v186 = vunpack.c.0.s8 %v185
    %v187 = vlaneseq
    %v188 = vshrl.u32 %v187, 7
    %v189 = vsub.s32 %v186, %v188
    %v190 = vrot.slane %v16, %v189
    %v192 = vunpack.c.l.s4 1966171168
    %v193 = vunpack.c.0.s8 %v192
    %v194 = vlaneseq
    %v195 = vshrl.u32 %v194, 7
    %v196 = vsub.s32 %v193, %v195
    %v197 = vrot.slane %v183, %v196
    %v198 = vcombine.high %v190, %v190
    %v199 = vcombine.high %v197, %v197
    %v201 = vunpack.c.l.s4 1966171168
    %v202 = vunpack.c.0.s8 %v201
    %v203 = vlaneseq
    %v204 = vshrl.u32 %v203, 7
    %v205 = vsub.s32 %v202, %v204
    %v206 = vrot.slane %v190, %v205
    %v208 = vunpack.c.l.s4 1966171168
    %v209 = vunpack.c.0.s8 %v208
    %v210 = vlaneseq
    %v211 = vshrl.u32 %v210, 7
    %v212 = vsub.s32 %v209, %v211
    %v213 = vrot.slane %v197, %v212
    %v215 = vunpack.c.l.s4 1966171168
    %v216 = vunpack.c.0.s8 %v215
    %v217 = vlaneseq
    %v218 = vshrl.u32 %v217, 7
    %v219 = vsub.s32 %v216, %v218
    %v220 = vrot.slane %v198, %v219
    %v222 = vunpack.c.l.s4 1966171168
    %v223 = vunpack.c.0.s8 %v222
    %v224 = vlaneseq
    %v225 = vshrl.u32 %v224, 7
    %v226 = vsub.s32 %v223, %v225
    %v227 = vrot.slane %v199, %v226
    %v228 = vcombine.high %v206, %v206
    %v229 = vcombine.high %v213, %v213
    %v230 = vcombine.high %v220, %v220
    %v231 = vcombine.high %v227, %v227
    %v232 = vcombine.high %v17, %v17
    %v234 = vunpack.c.l.s4 1966171168
    %v235 = vunpack.c.0.s8 %v234
    %v236 = vlaneseq
    %v237 = vshrl.u32 %v236, 7
    %v238 = vsub.s32 %v235, %v237
    %v239 = vrot.slane %v17, %v238
    %v241 = vunpack.c.l.s4 1966171168
    %v242 = vunpack.c.0.s8 %v241
    %v243 = vlaneseq
    %v244 = vshrl.u32 %v243, 7
    %v245 = vsub.s32 %v242, %v244
    %v246 = vrot.slane %v232, %v245
    %v247 = vcombine.high %v239, %v239
    %v248 = vcombine.high %v246, %v246
    %v250 = vunpack.c.l.s4 1966171168
    %v251 = vunpack.c.0.s8 %v250
    %v252 = vlaneseq
    %v253 = vshrl.u32 %v252, 7
    %v254 = vsub.s32 %v251, %v253
    %v255 = vrot.slane %v239, %v254
    %v257 = vunpack.c.l.s4 1966171168
    %v258 = vunpack.c.0.s8 %v257
    %v259 = vlaneseq
    %v260 = vshrl.u32 %v259, 7
    %v261 = vsub.s32 %v258, %v260
    %v262 = vrot.slane %v246, %v261
    %v264 = vunpack.c.l.s4 1966171168
    %v265 = vunpack.c.0.s8 %v264
    %v266 = vlaneseq
    %v267 = vshrl.u32 %v266, 7
    %v268 = vsub.s32 %v265, %v267
    %v269 = vrot.slane %v247, %v268
    %v271 = vunpack.c.l.s4 1966171168
    %v272 = vunpack.c.0.s8 %v271
    %v273 = vlaneseq
    %v274 = vshrl.u32 %v273, 7
    %v275 = vsub.s32 %v272, %v274
    %v276 = vrot.slane %v248, %v275
    %v277 = vcombine.high %v255, %v255
    %v278 = vcombine.high %v262, %v262
    %v279 = vcombine.high %v269, %v269
    %v280 = vcombine.high %v276, %v276
    %v281 = vcombine.high %v18, %v18
    %v283 = vunpack.c.l.s4 1966171168
    %v284 = vunpack.c.0.s8 %v283
    %v285 = vlaneseq
    %v286 = vshrl.u32 %v285, 7
    %v287 = vsub.s32 %v284, %v286
    %v288 = vrot.slane %v18, %v287
    %v290 = vunpack.c.l.s4 1966171168
    %v291 = vunpack.c.0.s8 %v290
    %v292 = vlaneseq
    %v293 = vshrl.u32 %v292, 7
    %v294 = vsub.s32 %v291, %v293
    %v295 = vrot.slane %v281, %v294
    %v296 = vcombine.high %v288, %v288
    %v297 = vcombine.high %v295, %v295
    %v299 = vunpack.c.l.s4 1966171168
    %v300 = vunpack.c.0.s8 %v299
    %v301 = vlaneseq
    %v302 = vshrl.u32 %v301, 7
    %v303 = vsub.s32 %v300, %v302
    %v304 = vrot.slane %v288, %v303
    %v306 = vunpack.c.l.s4 1966171168
    %v307 = vunpack.c.0.s8 %v306
    %v308 = vlaneseq
    %v309 = vshrl.u32 %v308, 7
    %v310 = vsub.s32 %v307, %v309
    %v311 = vrot.slane %v295, %v310
    %v313 = vunpack.c.l.s4 1966171168
    %v314 = vunpack.c.0.s8 %v313
    %v315 = vlaneseq
    %v316 = vshrl.u32 %v315, 7
    %v317 = vsub.s32 %v314, %v316
    %v318 = vrot.slane %v296, %v317
    %v320 = vunpack.c.l.s4 1966171168
    %v321 = vunpack.c.0.s8 %v320
    %v322 = vlaneseq
    %v323 = vshrl.u32 %v322, 7
    %v324 = vsub.s32 %v321, %v323
    %v325 = vrot.slane %v297, %v324
    %v326 = vcombine.high %v304, %v304
    %v327 = vcombine.high %v311, %v311
    %v328 = vcombine.high %v318, %v318
    %v329 = vcombine.high %v325, %v325
    %v330 = vcombine.high %v19, %v19
    %v332 = vunpack.c.l.s4 1966171168
    %v333 = vunpack.c.0.s8 %v332
    %v334 = vlaneseq
    %v335 = vshrl.u32 %v334, 7
    %v336 = vsub.s32 %v333, %v335
    %v337 = vrot.slane %v19, %v336
    %v339 = vunpack.c.l.s4 1966171168
    %v340 = vunpack.c.0.s8 %v339
    %v341 = vlaneseq
    %v342 = vshrl.u32 %v341, 7
    %v343 = vsub.s32 %v340, %v342
    %v344 = vrot.slane %v330, %v343
    %v345 = vcombine.high %v337, %v337
    %v346 = vcombine.high %v344, %v344
    %v348 = vunpack.c.l.s4 1966171168
    %v349 = vunpack.c.0.s8 %v348
    %v350 = vlaneseq
    %v351 = vshrl.u32 %v350, 7
    %v352 = vsub.s32 %v349, %v351
    %v353 = vrot.slane %v337, %v352
    %v355 = vunpack.c.l.s4 1966171168
    %v356 = vunpack.c.0.s8 %v355
    %v357 = vlaneseq
    %v358 = vshrl.u32 %v357, 7
    %v359 = vsub.s32 %v356, %v358
    %v360 = vrot.slane %v344, %v359
    %v362 = vunpack.c.l.s4 1966171168
    %v363 = vunpack.c.0.s8 %v362
    %v364 = vlaneseq
    %v365 = vshrl.u32 %v364, 7
    %v366 = vsub.s32 %v363, %v365
    %v367 = vrot.slane %v345, %v366
    %v369 = vunpack.c.l.s4 1966171168
    %v370 = vunpack.c.0.s8 %v369
    %v371 = vlaneseq
    %v372 = vshrl.u32 %v371, 7
    %v373 = vsub.s32 %v370, %v372
    %v374 = vrot.slane %v346, %v373
    %v375 = vcombine.high %v353, %v353
    %v376 = vcombine.high %v360, %v360
    %v377 = vcombine.high %v367, %v367
    %v378 = vcombine.high %v374, %v374
    %v379 = vcombine.high %v20, %v20
    %v381 = vunpack.c.l.s4 1966171168
    %v382 = vunpack.c.0.s8 %v381
    %v383 = vlaneseq
    %v384 = vshrl.u32 %v383, 7
    %v385 = vsub.s32 %v382, %v384
    %v386 = vrot.slane %v20, %v385
    %v388 = vunpack.c.l.s4 1966171168
    %v389 = vunpack.c.0.s8 %v388
    %v390 = vlaneseq
    %v391 = vshrl.u32 %v390, 7
    %v392 = vsub.s32 %v389, %v391
    %v393 = vrot.slane %v379, %v392
    %v394 = vcombine.high %v386, %v386
    %v395 = vcombine.high %v393, %v393
    %v397 = vunpack.c.l.s4 1966171168
    %v398 = vunpack.c.0.s8 %v397
    %v399 = vlaneseq
    %v400 = vshrl.u32 %v399, 7
    %v401 = vsub.s32 %v398, %v400
    %v402 = vrot.slane %v386, %v401
    %v404 = vunpack.c.l.s4 1966171168
    %v405 = vunpack.c.0.s8 %v404
    %v406 = vlaneseq
    %v407 = vshrl.u32 %v406, 7
    %v408 = vsub.s32 %v405, %v407
    %v409 = vrot.slane %v393, %v408
    %v411 = vunpack.c.l.s4 1966171168
    %v412 = vunpack.c.0.s8 %v411
    %v413 = vlaneseq
    %v414 = vshrl.u32 %v413, 7
    %v415 = vsub.s32 %v412, %v414
    %v416 = vrot.slane %v394, %v415
    %v418 = vunpack.c.l.s4 1966171168
    %v419 = vunpack.c.0.s8 %v418
    %v420 = vlaneseq
    %v421 = vshrl.u32 %v420, 7
    %v422 = vsub.s32 %v419, %v421
    %v423 = vrot.slane %v395, %v422
    %v424 = vcombine.high %v402, %v402
    %v425 = vcombine.high %v409, %v409
    %v426 = vcombine.high %v416, %v416
    %v427 = vcombine.high %v423, %v423
    %v428 = vcombine.high %v21, %v21
    %v430 = vunpack.c.l.s4 1966171168
    %v431 = vunpack.c.0.s8 %v430
    %v432 = vlaneseq
    %v433 = vshrl.u32 %v432, 7
    %v434 = vsub.s32 %v431, %v433
    %v435 = vrot.slane %v21, %v434
    %v437 = vunpack.c.l.s4 1966171168
    %v438 = vunpack.c.0.s8 %v437
    %v439 = vlaneseq
    %v440 = vshrl.u32 %v439, 7
    %v441 = vsub.s32 %v438, %v440
    %v442 = vrot.slane %v428, %v441
    %v443 = vcombine.high %v435, %v435
    %v444 = vcombine.high %v442, %v442
    %v446 = vunpack.c.l.s4 1966171168
    %v447 = vunpack.c.0.s8 %v446
    %v448 = vlaneseq
    %v449 = vshrl.u32 %v448, 7
    %v450 = vsub.s32 %v447, %v449
    %v451 = vrot.slane %v435, %v450
    %v453 = vunpack.c.l.s4 1966171168
    %v454 = vunpack.c.0.s8 %v453
    %v455 = vlaneseq
    %v456 = vshrl.u32 %v455, 7
    %v457 = vsub.s32 %v454, %v456
    %v458 = vrot.slane %v442, %v457
    %v460 = vunpack.c.l.s4 1966171168
    %v461 = vunpack.c.0.s8 %v460
    %v462 = vlaneseq
    %v463 = vshrl.u32 %v462, 7
    %v464 = vsub.s32 %v461, %v463
    %v465 = vrot.slane %v443, %v464
    %v467 = vunpack.c.l.s4 1966171168
    %v468 = vunpack.c.0.s8 %v467
    %v469 = vlaneseq
    %v470 = vshrl.u32 %v469, 7
    %v471 = vsub.s32 %v468, %v470
    %v472 = vrot.slane %v444, %v471
    %v473 = vcombine.high %v451, %v451
    %v474 = vcombine.high %v458, %v458
    %v475 = vcombine.high %v465, %v465
    %v476 = vcombine.high %v472, %v472
    %v477 = vcombine.high %v22, %v22
    %v479 = vunpack.c.l.s4 1966171168
    %v480 = vunpack.c.0.s8 %v479
    %v481 = vlaneseq
    %v482 = vshrl.u32 %v481, 7
    %v483 = vsub.s32 %v480, %v482
    %v484 = vrot.slane %v22, %v483
    %v486 = vunpack.c.l.s4 1966171168
    %v487 = vunpack.c.0.s8 %v486
    %v488 = vlaneseq
    %v489 = vshrl.u32 %v488, 7
    %v490 = vsub.s32 %v487, %v489
    %v491 = vrot.slane %v477, %v490
    %v492 = vcombine.high %v484, %v484
    %v493 = vcombine.high %v491, %v491
    %v495 = vunpack.c.l.s4 1966171168
    %v496 = vunpack.c.0.s8 %v495
    %v497 = vlaneseq
    %v498 = vshrl.u32 %v497, 7
    %v499 = vsub.s32 %v496, %v498
    %v500 = vrot.slane %v484, %v499
    %v502 = vunpack.c.l.s4 1966171168
    %v503 = vunpack.c.0.s8 %v502
    %v504 = vlaneseq
    %v505 = vshrl.u32 %v504, 7
    %v506 = vsub.s32 %v503, %v505
    %v507 = vrot.slane %v491, %v506
    %v509 = vunpack.c.l.s4 1966171168
    %v510 = vunpack.c.0.s8 %v509
    %v511 = vlaneseq
    %v512 = vshrl.u32 %v511, 7
    %v513 = vsub.s32 %v510, %v512
    %v514 = vrot.slane %v492, %v513
    %v516 = vunpack.c.l.s4 1966171168
    %v517 = vunpack.c.0.s8 %v516
    %v518 = vlaneseq
    %v519 = vshrl.u32 %v518, 7
    %v520 = vsub.s32 %v517, %v519
    %v521 = vrot.slane %v493, %v520
    %v522 = vcombine.high %v500, %v500
    %v523 = vcombine.high %v507, %v507
    %v524 = vcombine.high %v514, %v514
    %v525 = vcombine.high %v521, %v521
    %v526 = vcombine.high %v23, %v23
    %v528 = vunpack.c.l.s4 1966171168
    %v529 = vunpack.c.0.s8 %v528
    %v530 = vlaneseq
    %v531 = vshrl.u32 %v530, 7
    %v532 = vsub.s32 %v529, %v531
    %v533 = vrot.slane %v23, %v532
    %v535 = vunpack.c.l.s4 1966171168
    %v536 = vunpack.c.0.s8 %v535
    %v537 = vlaneseq
    %v538 = vshrl.u32 %v537, 7
    %v539 = vsub.s32 %v536, %v538
    %v540 = vrot.slane %v526, %v539
    %v541 = vcombine.high %v533, %v533
    %v542 = vcombine.high %v540, %v540
    %v544 = vunpack.c.l.s4 1966171168
    %v545 = vunpack.c.0.s8 %v544
    %v546 = vlaneseq
    %v547 = vshrl.u32 %v546, 7
    %v548 = vsub.s32 %v545, %v547
    %v549 = vrot.slane %v533, %v548
    %v551 = vunpack.c.l.s4 1966171168
    %v552 = vunpack.c.0.s8 %v551
    %v553 = vlaneseq
    %v554 = vshrl.u32 %v553, 7
    %v555 = vsub.s32 %v552, %v554
    %v556 = vrot.slane %v540, %v555
    %v558 = vunpack.c.l.s4 1966171168
    %v559 = vunpack.c.0.s8 %v558
    %v560 = vlaneseq
    %v561 = vshrl.u32 %v560, 7
    %v562 = vsub.s32 %v559, %v561
    %v563 = vrot.slane %v541, %v562
    %v565 = vunpack.c.l.s4 1966171168
    %v566 = vunpack.c.0.s8 %v565
    %v567 = vlaneseq
    %v568 = vshrl.u32 %v567, 7
    %v569 = vsub.s32 %v566, %v568
    %v570 = vrot.slane %v542, %v569
    %v571 = vcombine.high %v549, %v549
    %v572 = vcombine.high %v556, %v556
    %v573 = vcombine.high %v563, %v563
    %v574 = vcombine.high %v570, %v570
    %v575 = vcombine.high %v24, %v24
    %v577 = vunpack.c.l.s4 1966171168
    %v578 = vunpack.c.0.s8 %v577
    %v579 = vlaneseq
    %v580 = vshrl.u32 %v579, 7
    %v581 = vsub.s32 %v578, %v580
    %v582 = vrot.slane %v24, %v581
    %v584 = vunpack.c.l.s4 1966171168
    %v585 = vunpack.c.0.s8 %v584
    %v586 = vlaneseq
    %v587 = vshrl.u32 %v586, 7
    %v588 = vsub.s32 %v585, %v587
    %v589 = vrot.slane %v575, %v588
    %v590 = vcombine.high %v582, %v582
    %v591 = vcombine.high %v589, %v589
    %v593 = vunpack.c.l.s4 1966171168
    %v594 = vunpack.c.0.s8 %v593
    %v595 = vlaneseq
    %v596 = vshrl.u32 %v595, 7
    %v597 = vsub.s32 %v594, %v596
    %v598 = vrot.slane %v582, %v597
    %v600 = vunpack.c.l.s4 1966171168
    %v601 = vunpack.c.0.s8 %v600
    %v602 = vlaneseq
    %v603 = vshrl.u32 %v602, 7
    %v604 = vsub.s32 %v601, %v603
    %v605 = vrot.slane %v589, %v604
    %v607 = vunpack.c.l.s4 1966171168
    %v608 = vunpack.c.0.s8 %v607
    %v609 = vlaneseq
    %v610 = vshrl.u32 %v609, 7
    %v611 = vsub.s32 %v608, %v610
    %v612 = vrot.slane %v590, %v611
    %v614 = vunpack.c.l.s4 1966171168
    %v615 = vunpack.c.0.s8 %v614
    %v616 = vlaneseq
    %v617 = vshrl.u32 %v616, 7
    %v618 = vsub.s32 %v615, %v617
    %v619 = vrot.slane %v591, %v618
    %v620 = vcombine.high %v598, %v598
    %v621 = vcombine.high %v605, %v605
    %v622 = vcombine.high %v612, %v612
    %v623 = vcombine.high %v619, %v619
    %v624 = vcombine.high %v25, %v25
    %v626 = vunpack.c.l.s4 1966171168
    %v627 = vunpack.c.0.s8 %v626
    %v628 = vlaneseq
    %v629 = vshrl.u32 %v628, 7
    %v630 = vsub.s32 %v627, %v629
    %v631 = vrot.slane %v25, %v630
    %v633 = vunpack.c.l.s4 1966171168
    %v634 = vunpack.c.0.s8 %v633
    %v635 = vlaneseq
    %v636 = vshrl.u32 %v635, 7
    %v637 = vsub.s32 %v634, %v636
    %v638 = vrot.slane %v624, %v637
    %v639 = vcombine.high %v631, %v631
    %v640 = vcombine.high %v638, %v638
    %v642 = vunpack.c.l.s4 1966171168
    %v643 = vunpack.c.0.s8 %v642
    %v644 = vlaneseq
    %v645 = vshrl.u32 %v644, 7
    %v646 = vsub.s32 %v643, %v645
    %v647 = vrot.slane %v631, %v646
    %v649 = vunpack.c.l.s4 1966171168
    %v650 = vunpack.c.0.s8 %v649
    %v651 = vlaneseq
    %v652 = vshrl.u32 %v651, 7
    %v653 = vsub.s32 %v650, %v652
    %v654 = vrot.slane %v638, %v653
    %v656 = vunpack.c.l.s4 1966171168
    %v657 = vunpack.c.0.s8 %v656
    %v658 = vlaneseq
    %v659 = vshrl.u32 %v658, 7
    %v660 = vsub.s32 %v657, %v659
    %v661 = vrot.slane %v639, %v660
    %v663 = vunpack.c.l.s4 1966171168
    %v664 = vunpack.c.0.s8 %v663
    %v665 = vlaneseq
    %v666 = vshrl.u32 %v665, 7
    %v667 = vsub.s32 %v664, %v666
    %v668 = vrot.slane %v640, %v667
    %v669 = vcombine.high %v647, %v647
    %v670 = vcombine.high %v654, %v654
    %v671 = vcombine.high %v661, %v661
    %v672 = vcombine.high %v668, %v668
    %v673 = vcombine.high %v26, %v26
    %v675 = vunpack.c.l.s4 1966171168
    %v676 = vunpack.c.0.s8 %v675
    %v677 = vlaneseq
    %v678 = vshrl.u32 %v677, 7
    %v679 = vsub.s32 %v676, %v678
    %v680 = vrot.slane %v26, %v679
    %v682 = vunpack.c.l.s4 1966171168
    %v683 = vunpack.c.0.s8 %v682
    %v684 = vlaneseq
    %v685 = vshrl.u32 %v684, 7
    %v686 = vsub.s32 %v683, %v685
    %v687 = vrot.slane %v673, %v686
    %v688 = vcombine.high %v680, %v680
    %v689 = vcombine.high %v687, %v687
    %v691 = vunpack.c.l.s4 1966171168
    %v692 = vunpack.c.0.s8 %v691
    %v693 = vlaneseq
    %v694 = vshrl.u32 %v693, 7
    %v695 = vsub.s32 %v692, %v694
    %v696 = vrot.slane %v680, %v695
    %v698 = vunpack.c.l.s4 1966171168
    %v699 = vunpack.c.0.s8 %v698
    %v700 = vlaneseq
    %v701 = vshrl.u32 %v700, 7
    %v702 = vsub.s32 %v699, %v701
    %v703 = vrot.slane %v687, %v702
    %v705 = vunpack.c.l.s4 1966171168
    %v706 = vunpack.c.0.s8 %v705
    %v707 = vlaneseq
    %v708 = vshrl.u32 %v707, 7
    %v709 = vsub.s32 %v706, %v708
    %v710 = vrot.slane %v688, %v709
    %v712 = vunpack.c.l.s4 1966171168
    %v713 = vunpack.c.0.s8 %v712
    %v714 = vlaneseq
    %v715 = vshrl.u32 %v714, 7
    %v716 = vsub.s32 %v713, %v715
    %v717 = vrot.slane %v689, %v716
    %v718 = vcombine.high %v696, %v696
    %v719 = vcombine.high %v703, %v703
    %v720 = vcombine.high %v710, %v710
    %v721 = vcombine.high %v717, %v717
    %v722 = vcombine.high %v27, %v27
    %v724 = vunpack.c.l.s4 1966171168
    %v725 = vunpack.c.0.s8 %v724
    %v726 = vlaneseq
    %v727 = vshrl.u32 %v726, 7
    %v728 = vsub.s32 %v725, %v727
    %v729 = vrot.slane %v27, %v728
    %v731 = vunpack.c.l.s4 1966171168
    %v732 = vunpack.c.0.s8 %v731
    %v733 = vlaneseq
    %v734 = vshrl.u32 %v733, 7
    %v735 = vsub.s32 %v732, %v734
    %v736 = vrot.slane %v722, %v735
    %v737 = vcombine.high %v729, %v729
    %v738 = vcombine.high %v736, %v736
    %v740 = vunpack.c.l.s4 1966171168
    %v741 = vunpack.c.0.s8 %v740
    %v742 = vlaneseq
    %v743 = vshrl.u32 %v742, 7
    %v744 = vsub.s32 %v741, %v743
    %v745 = vrot.slane %v729, %v744
    %v747 = vunpack.c.l.s4 1966171168
    %v748 = vunpack.c.0.s8 %v747
    %v749 = vlaneseq
    %v750 = vshrl.u32 %v749, 7
    %v751 = vsub.s32 %v748, %v750
    %v752 = vrot.slane %v736, %v751
    %v754 = vunpack.c.l.s4 1966171168
    %v755 = vunpack.c.0.s8 %v754
    %v756 = vlaneseq
    %v757 = vshrl.u32 %v756, 7
    %v758 = vsub.s32 %v755, %v757
    %v759 = vrot.slane %v737, %v758
    %v761 = vunpack.c.l.s4 1966171168
    %v762 = vunpack.c.0.s8 %v761
    %v763 = vlaneseq
    %v764 = vshrl.u32 %v763, 7
    %v765 = vsub.s32 %v762, %v764
    %v766 = vrot.slane %v738, %v765
    %v767 = vcombine.high %v745, %v745
    %v768 = vcombine.high %v752, %v752
    %v769 = vcombine.high %v759, %v759
    %v770 = vcombine.high %v766, %v766
    %v771 = vcombine.high %v28, %v28
    %v773 = vunpack.c.l.s4 1966171168
    %v774 = vunpack.c.0.s8 %v773
    %v775 = vlaneseq
    %v776 = vshrl.u32 %v775, 7
    %v777 = vsub.s32 %v774, %v776
    %v778 = vrot.slane %v28, %v777
    %v780 = vunpack.c.l.s4 1966171168
    %v781 = vunpack.c.0.s8 %v780
    %v782 = vlaneseq
    %v783 = vshrl.u32 %v782, 7
    %v784 = vsub.s32 %v781, %v783
    %v785 = vrot.slane %v771, %v784
    %v786 = vcombine.high %v778, %v778
    %v787 = vcombine.high %v785, %v785
    %v789 = vunpack.c.l.s4 1966171168
    %v790 = vunpack.c.0.s8 %v789
    %v791 = vlaneseq
    %v792 = vshrl.u32 %v791, 7
    %v793 = vsub.s32 %v790, %v792
    %v794 = vrot.slane %v778, %v793
    %v796 = vunpack.c.l.s4 1966171168
    %v797 = vunpack.c.0.s8 %v796
    %v798 = vlaneseq
    %v799 = vshrl.u32 %v798, 7
    %v800 = vsub.s32 %v797, %v799
    %v801 = vrot.slane %v785, %v800
    %v803 = vunpack.c.l.s4 1966171168
    %v804 = vunpack.c.0.s8 %v803
    %v805 = vlaneseq
    %v806 = vshrl.u32 %v805, 7
    %v807 = vsub.s32 %v804, %v806
    %v808 = vrot.slane %v786, %v807
    %v810 = vunpack.c.l.s4 1966171168
    %v811 = vunpack.c.0.s8 %v810
    %v812 = vlaneseq
    %v813 = vshrl.u32 %v812, 7
    %v814 = vsub.s32 %v811, %v813
    %v815 = vrot.slane %v787, %v814
    %v816 = vcombine.high %v794, %v794
    %v817 = vcombine.high %v801, %v801
    %v818 = vcombine.high %v808, %v808
    %v819 = vcombine.high %v815, %v815
    %v820 = vcombine.high %v29, %v29
    %v822 = vunpack.c.l.s4 1966171168
    %v823 = vunpack.c.0.s8 %v822
    %v824 = vlaneseq
    %v825 = vshrl.u32 %v824, 7
    %v826 = vsub.s32 %v823, %v825
    %v827 = vrot.slane %v29, %v826
    %v829 = vunpack.c.l.s4 1966171168
    %v830 = vunpack.c.0.s8 %v829
    %v831 = vlaneseq
    %v832 = vshrl.u32 %v831, 7
    %v833 = vsub.s32 %v830, %v832
    %v834 = vrot.slane %v820, %v833
    %v835 = vcombine.high %v827, %v827
    %v836 = vcombine.high %v834, %v834
    %v838 = vunpack.c.l.s4 1966171168
    %v839 = vunpack.c.0.s8 %v838
    %v840 = vlaneseq
    %v841 = vshrl.u32 %v840, 7
    %v842 = vsub.s32 %v839, %v841
    %v843 = vrot.slane %v827, %v842
    %v845 = vunpack.c.l.s4 1966171168
    %v846 = vunpack.c.0.s8 %v845
    %v847 = vlaneseq
    %v848 = vshrl.u32 %v847, 7
    %v849 = vsub.s32 %v846, %v848
    %v850 = vrot.slane %v834, %v849
    %v852 = vunpack.c.l.s4 1966171168
    %v853 = vunpack.c.0.s8 %v852
    %v854 = vlaneseq
    %v855 = vshrl.u32 %v854, 7
    %v856 = vsub.s32 %v853, %v855
    %v857 = vrot.slane %v835, %v856
    %v859 = vunpack.c.l.s4 1966171168
    %v860 = vunpack.c.0.s8 %v859
    %v861 = vlaneseq
    %v862 = vshrl.u32 %v861, 7
    %v863 = vsub.s32 %v860, %v862
    %v864 = vrot.slane %v836, %v863
    %v865 = vcombine.high %v843, %v843
    %v866 = vcombine.high %v850, %v850
    %v867 = vcombine.high %v857, %v857
    %v868 = vcombine.high %v864, %v864
    %v869 = vcombine.high %v30, %v30
    %v871 = vunpack.c.l.s4 1966171168
    %v872 = vunpack.c.0.s8 %v871
    %v873 = vlaneseq
    %v874 = vshrl.u32 %v873, 7
    %v875 = vsub.s32 %v872, %v874
    %v876 = vrot.slane %v30, %v875
    %v878 = vunpack.c.l.s4 1966171168
    %v879 = vunpack.c.0.s8 %v878
    %v880 = vlaneseq
    %v881 = vshrl.u32 %v880, 7
    %v882 = vsub.s32 %v879, %v881
    %v883 = vrot.slane %v869, %v882
    %v884 = vcombine.high %v876, %v876
    %v885 = vcombine.high %v883, %v883
    %v887 = vunpack.c.l.s4 1966171168
    %v888 = vunpack.c.0.s8 %v887
    %v889 = vlaneseq
    %v890 = vshrl.u32 %v889, 7
    %v891 = vsub.s32 %v888, %v890
    %v892 = vrot.slane %v876, %v891
    %v894 = vunpack.c.l.s4 1966171168
    %v895 = vunpack.c.0.s8 %v894
    %v896 = vlaneseq
    %v897 = vshrl.u32 %v896, 7
    %v898 = vsub.s32 %v895, %v897
    %v899 = vrot.slane %v883, %v898
    %v901 = vunpack.c.l.s4 1966171168
    %v902 = vunpack.c.0.s8 %v901
    %v903 = vlaneseq
    %v904 = vshrl.u32 %v903, 7
    %v905 = vsub.s32 %v902, %v904
    %v906 = vrot.slane %v884, %v905
    %v908 = vunpack.c.l.s4 1966171168
    %v909 = vunpack.c.0.s8 %v908
    %v910 = vlaneseq
    %v911 = vshrl.u32 %v910, 7
    %v912 = vsub.s32 %v909, %v911
    %v913 = vrot.slane %v885, %v912
    %v914 = vcombine.high %v892, %v892
    %v915 = vcombine.high %v899, %v899
    %v916 = vcombine.high %v906, %v906
    %v917 = vcombine.high %v913, %v913
    %v918 = vcombine.high %v31, %v31
    %v920 = vunpack.c.l.s4 1966171168
    %v921 = vunpack.c.0.s8 %v920
    %v922 = vlaneseq
    %v923 = vshrl.u32 %v922, 7
    %v924 = vsub.s32 %v921, %v923
    %v925 = vrot.slane %v31, %v924
    %v927 = vunpack.c.l.s4 1966171168
    %v928 = vunpack.c.0.s8 %v927
    %v929 = vlaneseq
    %v930 = vshrl.u32 %v929, 7
    %v931 = vsub.s32 %v928, %v930
    %v932 = vrot.slane %v918, %v931
    %v933 = vcombine.high %v925, %v925
    %v934 = vcombine.high %v932, %v932
    %v936 = vunpack.c.l.s4 1966171168
    %v937 = vunpack.c.0.s8 %v936
    %v938 = vlaneseq
    %v939 = vshrl.u32 %v938, 7
    %v940 = vsub.s32 %v937, %v939
    %v941 = vrot.slane %v925, %v940
    %v943 = vunpack.c.l.s4 1966171168
    %v944 = vunpack.c.0.s8 %v943
    %v945 = vlaneseq
    %v946 = vshrl.u32 %v945, 7
    %v947 = vsub.s32 %v944, %v946
    %v948 = vrot.slane %v932, %v947
    %v950 = vunpack.c.l.s4 1966171168
    %v951 = vunpack.c.0.s8 %v950
    %v952 = vlaneseq
    %v953 = vshrl.u32 %v952, 7
    %v954 = vsub.s32 %v951, %v953
    %v955 = vrot.slane %v933, %v954
    %v957 = vunpack.c.l.s4 1966171168
    %v958 = vunpack.c.0.s8 %v957
    %v959 = vlaneseq
    %v960 = vshrl.u32 %v959, 7
    %v961 = vsub.s32 %v958, %v960
    %v962 = vrot.slane %v934, %v961
    %v963 = vcombine.high %v941, %v941
    %v964 = vcombine.high %v948, %v948
    %v965 = vcombine.high %v955, %v955
    %v966 = vcombine.high %v962, %v962
    %v1223 = vunpack.c.l.b16 %v32
    %v1224 = vunpack.c.h.b16 %v32
    %v1225 = vunpack.c.l.b16 %v33
    %v1226 = vunpack.c.h.b16 %v33
    %v1227 = vunpack.c.l.b16 %v34
    %v1228 = vunpack.c.h.b16 %v34
    %v1229 = vunpack.c.l.b16 %v35
    %v1230 = vunpack.c.h.b16 %v35
    %v1231 = vunpack.c.l.b16 %v36
    %v1232 = vunpack.c.h.b16 %v36
    %v1233 = vunpack.c.l.b16 %v37
    %v1234 = vunpack.c.h.b16 %v37
    %v1235 = vunpack.c.l.b16 %v38
    %v1236 = vunpack.c.h.b16 %v38
    %v1237 = vunpack.c.l.b16 %v39
    %v1238 = vunpack.c.h.b16 %v39
    %v1239 = vunpack.c.l.b16 %v40
    %v1240 = vunpack.c.h.b16 %v40
    %v1241 = vunpack.c.l.b16 %v41
    %v1242 = vunpack.c.h.b16 %v41
    %v1243 = vunpack.c.l.b16 %v42
    %v1244 = vunpack.c.h.b16 %v42
    %v1245 = vunpack.c.l.b16 %v43
    %v1246 = vunpack.c.h.b16 %v43
    %v1247 = vunpack.c.l.b16 %v44
    %v1248 = vunpack.c.h.b16 %v44
    %v1249 = vunpack.c.l.b16 %v45
    %v1250 = vunpack.c.h.b16 %v45
    %v1251 = vunpack.c.l.b16 %v46
    %v1252 = vunpack.c.h.b16 %v46
    %v1253 = vunpack.c.l.b16 %v47
    %v1254 = vunpack.c.h.b16 %v47
    %v1255 = vunpack.c.l.b16 %v48
    %v1256 = vunpack.c.h.b16 %v48
    %v1257 = vunpack.c.l.b16 %v49
    %v1258 = vunpack.c.h.b16 %v49
    %v1259 = vunpack.c.l.b16 %v50
    %v1260 = vunpack.c.h.b16 %v50
    %v1261 = vunpack.c.l.b16 %v51
    %v1262 = vunpack.c.h.b16 %v51
    %v1263 = vunpack.c.l.b16 %v52
    %v1264 = vunpack.c.h.b16 %v52
    %v1265 = vunpack.c.l.b16 %v53
    %v1266 = vunpack.c.h.b16 %v53
    %v1267 = vunpack.c.l.b16 %v54
    %v1268 = vunpack.c.h.b16 %v54
    %v1269 = vunpack.c.l.b16 %v55
    %v1270 = vunpack.c.h.b16 %v55
    %v1271 = vunpack.c.l.b16 %v56
    %v1272 = vunpack.c.h.b16 %v56
    %v1273 = vunpack.c.l.b16 %v57
    %v1274 = vunpack.c.h.b16 %v57
    %v1275 = vunpack.c.l.b16 %v58
    %v1276 = vunpack.c.h.b16 %v58
    %v1277 = vunpack.c.l.b16 %v59
    %v1278 = vunpack.c.h.b16 %v59
    %v1279 = vunpack.c.l.b16 %v60
    %v1280 = vunpack.c.h.b16 %v60
    %v1281 = vunpack.c.l.b16 %v61
    %v1282 = vunpack.c.h.b16 %v61
    %v1283 = vunpack.c.l.b16 %v62
    %v1284 = vunpack.c.h.b16 %v62
    %v1285 = vunpack.c.l.b16 %v63
    %v1286 = vunpack.c.h.b16 %v63
    %v1287 = vunpack.c.l.b16 %v64
    %v1288 = vunpack.c.h.b16 %v64
    %v1289 = vunpack.c.l.b16 %v65
    %v1290 = vunpack.c.h.b16 %v65
    %v1291 = vunpack.c.l.b16 %v66
    %v1292 = vunpack.c.h.b16 %v66
    %v1293 = vunpack.c.l.b16 %v67
    %v1294 = vunpack.c.h.b16 %v67
    %v1295 = vunpack.c.l.b16 %v68
    %v1296 = vunpack.c.h.b16 %v68
    %v1297 = vunpack.c.l.b16 %v69
    %v1298 = vunpack.c.h.b16 %v69
    %v1299 = vunpack.c.l.b16 %v70
    %v1300 = vunpack.c.h.b16 %v70
    %v1301 = vunpack.c.l.b16 %v71
    %v1302 = vunpack.c.h.b16 %v71
    %v1303 = vunpack.c.l.b16 %v72
    %v1304 = vunpack.c.h.b16 %v72
    %v1305 = vunpack.c.l.b16 %v73
    %v1306 = vunpack.c.h.b16 %v73
    %v1307 = vunpack.c.l.b16 %v74
    %v1308 = vunpack.c.h.b16 %v74
    %v1309 = vunpack.c.l.b16 %v75
    %v1310 = vunpack.c.h.b16 %v75
    %v1311 = vunpack.c.l.b16 %v76
    %v1312 = vunpack.c.h.b16 %v76
    %v1313 = vunpack.c.l.b16 %v77
    %v1314 = vunpack.c.h.b16 %v77
    %v1315 = vunpack.c.l.b16 %v78
    %v1316 = vunpack.c.h.b16 %v78
    %v1317 = vunpack.c.l.b16 %v79
    %v1318 = vunpack.c.h.b16 %v79
    %v1319 = vunpack.c.l.b16 %v80
    %v1320 = vunpack.c.h.b16 %v80
    %v1321 = vunpack.c.l.b16 %v81
    %v1322 = vunpack.c.h.b16 %v81
    %v1323 = vunpack.c.l.b16 %v82
    %v1324 = vunpack.c.h.b16 %v82
    %v1325 = vunpack.c.l.b16 %v83
    %v1326 = vunpack.c.h.b16 %v83
    %v1327 = vunpack.c.l.b16 %v84
    %v1328 = vunpack.c.h.b16 %v84
    %v1329 = vunpack.c.l.b16 %v85
    %v1330 = vunpack.c.h.b16 %v85
    %v1331 = vunpack.c.l.b16 %v86
    %v1332 = vunpack.c.h.b16 %v86
    %v1333 = vunpack.c.l.b16 %v87
    %v1334 = vunpack.c.h.b16 %v87
    %v1335 = vunpack.c.l.b16 %v88
    %v1336 = vunpack.c.h.b16 %v88
    %v1337 = vunpack.c.l.b16 %v89
    %v1338 = vunpack.c.h.b16 %v89
    %v1339 = vunpack.c.l.b16 %v90
    %v1340 = vunpack.c.h.b16 %v90
    %v1341 = vunpack.c.l.b16 %v91
    %v1342 = vunpack.c.h.b16 %v91
    %v1343 = vunpack.c.l.b16 %v92
    %v1344 = vunpack.c.h.b16 %v92
    %v1345 = vunpack.c.l.b16 %v93
    %v1346 = vunpack.c.h.b16 %v93
    %v1347 = vunpack.c.l.b16 %v94
    %v1348 = vunpack.c.h.b16 %v94
    %v1349 = vunpack.c.l.b16 %v95
    %v1350 = vunpack.c.h.b16 %v95
    %v1351 = vunpack.c.l.b16 %v96
    %v1352 = vunpack.c.h.b16 %v96
    %v1353 = vunpack.c.l.b16 %v97
    %v1354 = vunpack.c.h.b16 %v97
    %v1355 = vunpack.c.l.b16 %v98
    %v1356 = vunpack.c.h.b16 %v98
    %v1357 = vunpack.c.l.b16 %v99
    %v1358 = vunpack.c.h.b16 %v99
    %v1359 = vunpack.c.l.b16 %v100
    %v1360 = vunpack.c.h.b16 %v100
    %v1361 = vunpack.c.l.b16 %v101
    %v1362 = vunpack.c.h.b16 %v101
    %v1363 = vunpack.c.l.b16 %v102
    %v1364 = vunpack.c.h.b16 %v102
    %v1365 = vunpack.c.l.b16 %v103
    %v1366 = vunpack.c.h.b16 %v103
    %v1367 = vunpack.c.l.b16 %v104
    %v1368 = vunpack.c.h.b16 %v104
    %v1369 = vunpack.c.l.b16 %v105
    %v1370 = vunpack.c.h.b16 %v105
    %v1371 = vunpack.c.l.b16 %v106
    %v1372 = vunpack.c.h.b16 %v106
    %v1373 = vunpack.c.l.b16 %v107
    %v1374 = vunpack.c.h.b16 %v107
    %v1375 = vunpack.c.l.b16 %v108
    %v1376 = vunpack.c.h.b16 %v108
    %v1377 = vunpack.c.l.b16 %v109
    %v1378 = vunpack.c.h.b16 %v109
    %v1379 = vunpack.c.l.b16 %v110
    %v1380 = vunpack.c.h.b16 %v110
    %v1381 = vunpack.c.l.b16 %v111
    %v1382 = vunpack.c.h.b16 %v111
    %v1383 = vunpack.c.l.b16 %v112
    %v1384 = vunpack.c.h.b16 %v112
    %v1385 = vunpack.c.l.b16 %v113
    %v1386 = vunpack.c.h.b16 %v113
    %v1387 = vunpack.c.l.b16 %v114
    %v1388 = vunpack.c.h.b16 %v114
    %v1389 = vunpack.c.l.b16 %v115
    %v1390 = vunpack.c.h.b16 %v115
    %v1391 = vunpack.c.l.b16 %v116
    %v1392 = vunpack.c.h.b16 %v116
    %v1393 = vunpack.c.l.b16 %v117
    %v1394 = vunpack.c.h.b16 %v117
    %v1395 = vunpack.c.l.b16 %v118
    %v1396 = vunpack.c.h.b16 %v118
    %v1397 = vunpack.c.l.b16 %v119
    %v1398 = vunpack.c.h.b16 %v119
    %v1399 = vunpack.c.l.b16 %v120
    %v1400 = vunpack.c.h.b16 %v120
    %v1401 = vunpack.c.l.b16 %v121
    %v1402 = vunpack.c.h.b16 %v121
    %v1403 = vunpack.c.l.b16 %v122
    %v1404 = vunpack.c.h.b16 %v122
    %v1405 = vunpack.c.l.b16 %v123
    %v1406 = vunpack.c.h.b16 %v123
    %v1407 = vunpack.c.l.b16 %v124
    %v1408 = vunpack.c.h.b16 %v124
    %v1409 = vunpack.c.l.b16 %v125
    %v1410 = vunpack.c.h.b16 %v125
    %v1411 = vunpack.c.l.b16 %v126
    %v1412 = vunpack.c.h.b16 %v126
    %v1413 = vunpack.c.l.b16 %v127
    %v1414 = vunpack.c.h.b16 %v127
    %v1415 = vunpack.c.l.b16 %v128
    %v1416 = vunpack.c.h.b16 %v128
    %v1417 = vunpack.c.l.b16 %v129
    %v1418 = vunpack.c.h.b16 %v129
    %v1419 = vunpack.c.l.b16 %v130
    %v1420 = vunpack.c.h.b16 %v130
    %v1421 = vunpack.c.l.b16 %v131
    %v1422 = vunpack.c.h.b16 %v131
    %v1423 = vunpack.c.l.b16 %v132
    %v1424 = vunpack.c.h.b16 %v132
    %v1425 = vunpack.c.l.b16 %v133
    %v1426 = vunpack.c.h.b16 %v133
    %v1427 = vunpack.c.l.b16 %v134
    %v1428 = vunpack.c.h.b16 %v134
    %v1429 = vunpack.c.l.b16 %v135
    %v1430 = vunpack.c.h.b16 %v135
    %v1431 = vunpack.c.l.b16 %v136
    %v1432 = vunpack.c.h.b16 %v136
    %v1433 = vunpack.c.l.b16 %v137
    %v1434 = vunpack.c.h.b16 %v137
    %v1435 = vunpack.c.l.b16 %v138
    %v1436 = vunpack.c.h.b16 %v138
    %v1437 = vunpack.c.l.b16 %v139
    %v1438 = vunpack.c.h.b16 %v139
    %v1439 = vunpack.c.l.b16 %v140
    %v1440 = vunpack.c.h.b16 %v140
    %v1441 = vunpack.c.l.b16 %v141
    %v1442 = vunpack.c.h.b16 %v141
    %v1443 = vunpack.c.l.b16 %v142
    %v1444 = vunpack.c.h.b16 %v142
    %v1445 = vunpack.c.l.b16 %v143
    %v1446 = vunpack.c.h.b16 %v143
    %v1447 = vunpack.c.l.b16 %v144
    %v1448 = vunpack.c.h.b16 %v144
    %v1449 = vunpack.c.l.b16 %v145
    %v1450 = vunpack.c.h.b16 %v145
    %v1451 = vunpack.c.l.b16 %v146
    %v1452 = vunpack.c.h.b16 %v146
    %v1453 = vunpack.c.l.b16 %v147
    %v1454 = vunpack.c.h.b16 %v147
    %v1455 = vunpack.c.l.b16 %v148
    %v1456 = vunpack.c.h.b16 %v148
    %v1457 = vunpack.c.l.b16 %v149
    %v1458 = vunpack.c.h.b16 %v149
    %v1459 = vunpack.c.l.b16 %v150
    %v1460 = vunpack.c.h.b16 %v150
    %v1461 = vunpack.c.l.b16 %v151
    %v1462 = vunpack.c.h.b16 %v151
    %v1463 = vunpack.c.l.b16 %v152
    %v1464 = vunpack.c.h.b16 %v152
    %v1465 = vunpack.c.l.b16 %v153
    %v1466 = vunpack.c.h.b16 %v153
    %v1467 = vunpack.c.l.b16 %v154
    %v1468 = vunpack.c.h.b16 %v154
    %v1469 = vunpack.c.l.b16 %v155
    %v1470 = vunpack.c.h.b16 %v155
    %v1471 = vunpack.c.l.b16 %v156
    %v1472 = vunpack.c.h.b16 %v156
    %v1473 = vunpack.c.l.b16 %v157
    %v1474 = vunpack.c.h.b16 %v157
    %v1475 = vunpack.c.l.b16 %v158
    %v1476 = vunpack.c.h.b16 %v158
    %v1477 = vunpack.c.l.b16 %v159
    %v1478 = vunpack.c.h.b16 %v159
    %v1479 = vpack.c.b16 %v1351, %v1223
    %v1480 = vpack.c.b16 %v1352, %v1224
    %v1481 = vpack.c.b16 %v1353, %v1225
    %v1482 = vpack.c.b16 %v1354, %v1226
    %v1483 = vpack.c.b16 %v1355, %v1227
    %v1484 = vpack.c.b16 %v1356, %v1228
    %v1485 = vpack.c.b16 %v1357, %v1229
    %v1486 = vpack.c.b16 %v1358, %v1230
    %v1487 = vpack.c.b16 %v1359, %v1231
    %v1488 = vpack.c.b16 %v1360, %v1232
    %v1489 = vpack.c.b16 %v1361, %v1233
    %v1490 = vpack.c.b16 %v1362, %v1234
    %v1491 = vpack.c.b16 %v1363, %v1235
    %v1492 = vpack.c.b16 %v1364, %v1236
    %v1493 = vpack.c.b16 %v1365, %v1237
    %v1494 = vpack.c.b16 %v1366, %v1238
    %v1495 = vpack.c.b16 %v1367, %v1239
    %v1496 = vpack.c.b16 %v1368, %v1240
    %v1497 = vpack.c.b16 %v1369, %v1241
    %v1498 = vpack.c.b16 %v1370, %v1242
    %v1499 = vpack.c.b16 %v1371, %v1243
    %v1500 = vpack.c.b16 %v1372, %v1244
    %v1501 = vpack.c.b16 %v1373, %v1245
    %v1502 = vpack.c.b16 %v1374, %v1246
    %v1503 = vpack.c.b16 %v1375, %v1247
    %v1504 = vpack.c.b16 %v1376, %v1248
    %v1505 = vpack.c.b16 %v1377, %v1249
    %v1506 = vpack.c.b16 %v1378, %v1250
    %v1507 = vpack.c.b16 %v1379, %v1251
    %v1508 = vpack.c.b16 %v1380, %v1252
    %v1509 = vpack.c.b16 %v1381, %v1253
    %v1510 = vpack.c.b16 %v1382, %v1254
    %v1511 = vpack.c.b16 %v1383, %v1255
    %v1512 = vpack.c.b16 %v1384, %v1256
    %v1513 = vpack.c.b16 %v1385, %v1257
    %v1514 = vpack.c.b16 %v1386, %v1258
    %v1515 = vpack.c.b16 %v1387, %v1259
    %v1516 = vpack.c.b16 %v1388, %v1260
    %v1517 = vpack.c.b16 %v1389, %v1261
    %v1518 = vpack.c.b16 %v1390, %v1262
    %v1519 = vpack.c.b16 %v1391, %v1263
    %v1520 = vpack.c.b16 %v1392, %v1264
    %v1521 = vpack.c.b16 %v1393, %v1265
    %v1522 = vpack.c.b16 %v1394, %v1266
    %v1523 = vpack.c.b16 %v1395, %v1267
    %v1524 = vpack.c.b16 %v1396, %v1268
    %v1525 = vpack.c.b16 %v1397, %v1269
    %v1526 = vpack.c.b16 %v1398, %v1270
    %v1527 = vpack.c.b16 %v1399, %v1271
    %v1528 = vpack.c.b16 %v1400, %v1272
    %v1529 = vpack.c.b16 %v1401, %v1273
    %v1530 = vpack.c.b16 %v1402, %v1274
    %v1531 = vpack.c.b16 %v1403, %v1275
    %v1532 = vpack.c.b16 %v1404, %v1276
    %v1533 = vpack.c.b16 %v1405, %v1277
    %v1534 = vpack.c.b16 %v1406, %v1278
    %v1535 = vpack.c.b16 %v1407, %v1279
    %v1536 = vpack.c.b16 %v1408, %v1280
    %v1537 = vpack.c.b16 %v1409, %v1281
    %v1538 = vpack.c.b16 %v1410, %v1282
    %v1539 = vpack.c.b16 %v1411, %v1283
    %v1540 = vpack.c.b16 %v1412, %v1284
    %v1541 = vpack.c.b16 %v1413, %v1285
    %v1542 = vpack.c.b16 %v1414, %v1286
    %v1543 = vpack.c.b16 %v1415, %v1287
    %v1544 = vpack.c.b16 %v1416, %v1288
    %v1545 = vpack.c.b16 %v1417, %v1289
    %v1546 = vpack.c.b16 %v1418, %v1290
    %v1547 = vpack.c.b16 %v1419, %v1291
    %v1548 = vpack.c.b16 %v1420, %v1292
    %v1549 = vpack.c.b16 %v1421, %v1293
    %v1550 = vpack.c.b16 %v1422, %v1294
    %v1551 = vpack.c.b16 %v1423, %v1295
    %v1552 = vpack.c.b16 %v1424, %v1296
    %v1553 = vpack.c.b16 %v1425, %v1297
    %v1554 = vpack.c.b16 %v1426, %v1298
    %v1555 = vpack.c.b16 %v1427, %v1299
    %v1556 = vpack.c.b16 %v1428, %v1300
    %v1557 = vpack.c.b16 %v1429, %v1301
    %v1558 = vpack.c.b16 %v1430, %v1302
    %v1559 = vpack.c.b16 %v1431, %v1303
    %v1560 = vpack.c.b16 %v1432, %v1304
    %v1561 = vpack.c.b16 %v1433, %v1305
    %v1562 = vpack.c.b16 %v1434, %v1306
    %v1563 = vpack.c.b16 %v1435, %v1307
    %v1564 = vpack.c.b16 %v1436, %v1308
    %v1565 = vpack.c.b16 %v1437, %v1309
    %v1566 = vpack.c.b16 %v1438, %v1310
    %v1567 = vpack.c.b16 %v1439, %v1311
    %v1568 = vpack.c.b16 %v1440, %v1312
    %v1569 = vpack.c.b16 %v1441, %v1313
    %v1570 = vpack.c.b16 %v1442, %v1314
    %v1571 = vpack.c.b16 %v1443, %v1315
    %v1572 = vpack.c.b16 %v1444, %v1316
    %v1573 = vpack.c.b16 %v1445, %v1317
    %v1574 = vpack.c.b16 %v1446, %v1318
    %v1575 = vpack.c.b16 %v1447, %v1319
    %v1576 = vpack.c.b16 %v1448, %v1320
    %v1577 = vpack.c.b16 %v1449, %v1321
    %v1578 = vpack.c.b16 %v1450, %v1322
    %v1579 = vpack.c.b16 %v1451, %v1323
    %v1580 = vpack.c.b16 %v1452, %v1324
    %v1581 = vpack.c.b16 %v1453, %v1325
    %v1582 = vpack.c.b16 %v1454, %v1326
    %v1583 = vpack.c.b16 %v1455, %v1327
    %v1584 = vpack.c.b16 %v1456, %v1328
    %v1585 = vpack.c.b16 %v1457, %v1329
    %v1586 = vpack.c.b16 %v1458, %v1330
    %v1587 = vpack.c.b16 %v1459, %v1331
    %v1588 = vpack.c.b16 %v1460, %v1332
    %v1589 = vpack.c.b16 %v1461, %v1333
    %v1590 = vpack.c.b16 %v1462, %v1334
    %v1591 = vpack.c.b16 %v1463, %v1335
    %v1592 = vpack.c.b16 %v1464, %v1336
    %v1593 = vpack.c.b16 %v1465, %v1337
    %v1594 = vpack.c.b16 %v1466, %v1338
    %v1595 = vpack.c.b16 %v1467, %v1339
    %v1596 = vpack.c.b16 %v1468, %v1340
    %v1597 = vpack.c.b16 %v1469, %v1341
    %v1598 = vpack.c.b16 %v1470, %v1342
    %v1599 = vpack.c.b16 %v1471, %v1343
    %v1600 = vpack.c.b16 %v1472, %v1344
    %v1601 = vpack.c.b16 %v1473, %v1345
    %v1602 = vpack.c.b16 %v1474, %v1346
    %v1603 = vpack.c.b16 %v1475, %v1347
    %v1604 = vpack.c.b16 %v1476, %v1348
    %v1605 = vpack.c.b16 %v1477, %v1349
    %v1606 = vpack.c.b16 %v1478, %v1350
    %1735 = vmatprep.subr.bf16.mxu0 %v1480
    %1736 = vmatpush1.bf16.xpose.msra.mxu0 %v1479
    %1737 = vmatprep.subr.bf16.mxu0 0
    %1738 = vmatpush1.bf16.xpose.msra.mxu0 0
    %1739 = vmatprep.subr.bf16.mxu0 0
    %1740 = vmatpush1.bf16.xpose.msra.mxu0 0
    %1741 = vmatprep.subr.bf16.mxu0 0
    %1742 = vmatpush1.bf16.xpose.msra.mxu0 0
    %1743 = vmatprep.subr.bf16.mxu0 0
    %1744 = vmatpush1.bf16.xpose.msra.mxu0 0
    %1745 = vmatprep.subr.bf16.mxu0 0
    %1746 = vmatpush1.bf16.xpose.msra.mxu0 0
    %1747 = vmatprep.subr.bf16.mxu0 0
    %1748 = vmatpush1.bf16.xpose.msra.mxu0 0
    %1749 = vmatprep.subr.bf16.mxu0 0
    %1750 = vmatpush1.bf16.xpose.msra.mxu0 0
    %1751 = vmatprep.subr.bf16.mxu0 0
    %1752 = vmatpush1.bf16.xpose.msra.mxu0 0
    %1753 = vmatprep.subr.bf16.mxu0 0
    %1754 = vmatpush1.bf16.xpose.msra.mxu0 0
    %1755 = vmatprep.subr.bf16.mxu0 0
    %1756 = vmatpush1.bf16.xpose.msra.mxu0 0
    %1757 = vmatprep.subr.bf16.mxu0 0
    %1758 = vmatpush1.bf16.xpose.msra.mxu0 0
    %1759 = vmatprep.subr.bf16.mxu0 0
    %1760 = vmatpush1.bf16.xpose.msra.mxu0 0
    %1761 = vmatprep.subr.bf16.mxu0 0
    %1762 = vmatpush1.bf16.xpose.msra.mxu0 0
    %1763 = vmatprep.subr.bf16.mxu0 0
    %1764 = vmatpush1.bf16.xpose.msra.mxu0 0
    %1765 = vmatprep.subr.bf16.mxu0 0
    %1766 = vmatpush1.bf16.xpose.msra.mxu0 0
    %1767 = vmatprep.mubr.bf16.mxu0 %v220
    %1768 = vmatmul.mubr.bf16.gmra.mrb[0].mxu0 %v206
    %v1769 = vpop.f32.mrb[0].mxu0
    %v1770 = vadd.f32 %v165, %v1769
    %v1771 = vpop.f32.mrb[0].mxu0
    %v1772 = vpop.f32.mrb[0].mxu0
    %v1773 = vpop.f32.mrb[0].mxu0
    %1774 = vdwg.mxu0
    %1775 = vmatprep.subr.bf16.mxu0 %v1482
    %1776 = vmatpush1.bf16.xpose.msra.mxu0 %v1481
    %1777 = vmatprep.subr.bf16.mxu0 0
    %1778 = vmatpush1.bf16.xpose.msra.mxu0 0
    %1779 = vmatprep.subr.bf16.mxu0 0
    %1780 = vmatpush1.bf16.xpose.msra.mxu0 0
    %1781 = vmatprep.subr.bf16.mxu0 0
    %1782 = vmatpush1.bf16.xpose.msra.mxu0 0
    %1783 = vmatprep.subr.bf16.mxu0 0
    %1784 = vmatpush1.bf16.xpose.msra.mxu0 0
    %1785 = vmatprep.subr.bf16.mxu0 0
    %1786 = vmatpush1.bf16.xpose.msra.mxu0 0
    %1787 = vmatprep.subr.bf16.mxu0 0
    %1788 = vmatpush1.bf16.xpose.msra.mxu0 0
    %1789 = vmatprep.subr.bf16.mxu0 0
    %1790 = vmatpush1.bf16.xpose.msra.mxu0 0
    %1791 = vmatprep.subr.bf16.mxu0 0
    %1792 = vmatpush1.bf16.xpose.msra.mxu0 0
    %1793 = vmatprep.subr.bf16.mxu0 0
    %1794 = vmatpush1.bf16.xpose.msra.mxu0 0
    %1795 = vmatprep.subr.bf16.mxu0 0
    %1796 = vmatpush1.bf16.xpose.msra.mxu0 0
    %1797 = vmatprep.subr.bf16.mxu0 0
    %1798 = vmatpush1.bf16.xpose.msra.mxu0 0
    %1799 = vmatprep.subr.bf16.mxu0 0
    %1800 = vmatpush1.bf16.xpose.msra.mxu0 0
    %1801 = vmatprep.subr.bf16.mxu0 0
    %1802 = vmatpush1.bf16.xpose.msra.mxu0 0
    %1803 = vmatprep.subr.bf16.mxu0 0
    %1804 = vmatpush1.bf16.xpose.msra.mxu0 0
    %1805 = vmatprep.subr.bf16.mxu0 0
    %1806 = vmatpush1.bf16.xpose.msra.mxu0 0
    %1807 = vmatprep.mubr.bf16.mxu0 %v230
    %1808 = vmatmul.mubr.bf16.gmra.mrb[0].mxu0 %v228
    %v1809 = vpop.f32.mrb[0].mxu0
    %v1810 = vadd.f32 %v1770, %v1809
    %v1811 = vpop.f32.mrb[0].mxu0
    %v1812 = vpop.f32.mrb[0].mxu0
    %v1813 = vpop.f32.mrb[0].mxu0
    %1814 = vdwg.mxu0
    %1815 = vmatprep.subr.bf16.mxu0 %v1484
    %1816 = vmatpush1.bf16.xpose.msra.mxu0 %v1483
    %1817 = vmatprep.subr.bf16.mxu0 0
    %1818 = vmatpush1.bf16.xpose.msra.mxu0 0
    %1819 = vmatprep.subr.bf16.mxu0 0
    %1820 = vmatpush1.bf16.xpose.msra.mxu0 0
    %1821 = vmatprep.subr.bf16.mxu0 0
    %1822 = vmatpush1.bf16.xpose.msra.mxu0 0
    %1823 = vmatprep.subr.bf16.mxu0 0
    %1824 = vmatpush1.bf16.xpose.msra.mxu0 0
    %1825 = vmatprep.subr.bf16.mxu0 0
    %1826 = vmatpush1.bf16.xpose.msra.mxu0 0
    %1827 = vmatprep.subr.bf16.mxu0 0
    %1828 = vmatpush1.bf16.xpose.msra.mxu0 0
    %1829 = vmatprep.subr.bf16.mxu0 0
    %1830 = vmatpush1.bf16.xpose.msra.mxu0 0
    %1831 = vmatprep.subr.bf16.mxu0 0
    %1832 = vmatpush1.bf16.xpose.msra.mxu0 0
    %1833 = vmatprep.subr.bf16.mxu0 0
    %1834 = vmatpush1.bf16.xpose.msra.mxu0 0
    %1835 = vmatprep.subr.bf16.mxu0 0
    %1836 = vmatpush1.bf16.xpose.msra.mxu0 0
    %1837 = vmatprep.subr.bf16.mxu0 0
    %1838 = vmatpush1.bf16.xpose.msra.mxu0 0
    %1839 = vmatprep.subr.bf16.mxu0 0
    %1840 = vmatpush1.bf16.xpose.msra.mxu0 0
    %1841 = vmatprep.subr.bf16.mxu0 0
    %1842 = vmatpush1.bf16.xpose.msra.mxu0 0
    %1843 = vmatprep.subr.bf16.mxu0 0
    %1844 = vmatpush1.bf16.xpose.msra.mxu0 0
    %1845 = vmatprep.subr.bf16.mxu0 0
    %1846 = vmatpush1.bf16.xpose.msra.mxu0 0
    %1847 = vmatprep.mubr.bf16.mxu0 %v227
    %1848 = vmatmul.mubr.bf16.gmra.mrb[0].mxu0 %v213
    %v1849 = vpop.f32.mrb[0].mxu0
    %v1850 = vadd.f32 %v1810, %v1849
    %v1851 = vpop.f32.mrb[0].mxu0
    %v1852 = vpop.f32.mrb[0].mxu0
    %v1853 = vpop.f32.mrb[0].mxu0
    %1854 = vdwg.mxu0
    %1855 = vmatprep.subr.bf16.mxu0 %v1486
    %1856 = vmatpush1.bf16.xpose.msra.mxu0 %v1485
    %1857 = vmatprep.subr.bf16.mxu0 0
    %1858 = vmatpush1.bf16.xpose.msra.mxu0 0
    %1859 = vmatprep.subr.bf16.mxu0 0
    %1860 = vmatpush1.bf16.xpose.msra.mxu0 0
    %1861 = vmatprep.subr.bf16.mxu0 0
    %1862 = vmatpush1.bf16.xpose.msra.mxu0 0
    %1863 = vmatprep.subr.bf16.mxu0 0
    %1864 = vmatpush1.bf16.xpose.msra.mxu0 0
    %1865 = vmatprep.subr.bf16.mxu0 0
    %1866 = vmatpush1.bf16.xpose.msra.mxu0 0
    %1867 = vmatprep.subr.bf16.mxu0 0
    %1868 = vmatpush1.bf16.xpose.msra.mxu0 0
    %1869 = vmatprep.subr.bf16.mxu0 0
    %1870 = vmatpush1.bf16.xpose.msra.mxu0 0
    %1871 = vmatprep.subr.bf16.mxu0 0
    %1872 = vmatpush1.bf16.xpose.msra.mxu0 0
    %1873 = vmatprep.subr.bf16.mxu0 0
    %1874 = vmatpush1.bf16.xpose.msra.mxu0 0
    %1875 = vmatprep.subr.bf16.mxu0 0
    %1876 = vmatpush1.bf16.xpose.msra.mxu0 0
    %1877 = vmatprep.subr.bf16.mxu0 0
    %1878 = vmatpush1.bf16.xpose.msra.mxu0 0
    %1879 = vmatprep.subr.bf16.mxu0 0
    %1880 = vmatpush1.bf16.xpose.msra.mxu0 0
    %1881 = vmatprep.subr.bf16.mxu0 0
    %1882 = vmatpush1.bf16.xpose.msra.mxu0 0
    %1883 = vmatprep.subr.bf16.mxu0 0
    %1884 = vmatpush1.bf16.xpose.msra.mxu0 0
    %1885 = vmatprep.subr.bf16.mxu0 0
    %1886 = vmatpush1.bf16.xpose.msra.mxu0 0
    %1887 = vmatprep.mubr.bf16.mxu0 %v231
    %1888 = vmatmul.mubr.bf16.gmra.mrb[0].mxu0 %v229
    %v1889 = vpop.f32.mrb[0].mxu0
    %v1890 = vadd.f32 %v1850, %v1889
    %v1891 = vpop.f32.mrb[0].mxu0
    %v1892 = vpop.f32.mrb[0].mxu0
    %v1893 = vpop.f32.mrb[0].mxu0
    %1894 = vdwg.mxu0
    %1895 = vmatprep.subr.bf16.mxu0 %v1488
    %1896 = vmatpush1.bf16.xpose.msra.mxu0 %v1487
    %1897 = vmatprep.subr.bf16.mxu0 0
    %1898 = vmatpush1.bf16.xpose.msra.mxu0 0
    %1899 = vmatprep.subr.bf16.mxu0 0
    %1900 = vmatpush1.bf16.xpose.msra.mxu0 0
    %1901 = vmatprep.subr.bf16.mxu0 0
    %1902 = vmatpush1.bf16.xpose.msra.mxu0 0
    %1903 = vmatprep.subr.bf16.mxu0 0
    %1904 = vmatpush1.bf16.xpose.msra.mxu0 0
    %1905 = vmatprep.subr.bf16.mxu0 0
    %1906 = vmatpush1.bf16.xpose.msra.mxu0 0
    %1907 = vmatprep.subr.bf16.mxu0 0
    %1908 = vmatpush1.bf16.xpose.msra.mxu0 0
    %1909 = vmatprep.subr.bf16.mxu0 0
    %1910 = vmatpush1.bf16.xpose.msra.mxu0 0
    %1911 = vmatprep.subr.bf16.mxu0 0
    %1912 = vmatpush1.bf16.xpose.msra.mxu0 0
    %1913 = vmatprep.subr.bf16.mxu0 0
    %1914 = vmatpush1.bf16.xpose.msra.mxu0 0
    %1915 = vmatprep.subr.bf16.mxu0 0
    %1916 = vmatpush1.bf16.xpose.msra.mxu0 0
    %1917 = vmatprep.subr.bf16.mxu0 0
    %1918 = vmatpush1.bf16.xpose.msra.mxu0 0
    %1919 = vmatprep.subr.bf16.mxu0 0
    %1920 = vmatpush1.bf16.xpose.msra.mxu0 0
    %1921 = vmatprep.subr.bf16.mxu0 0
    %1922 = vmatpush1.bf16.xpose.msra.mxu0 0
    %1923 = vmatprep.subr.bf16.mxu0 0
    %1924 = vmatpush1.bf16.xpose.msra.mxu0 0
    %1925 = vmatprep.subr.bf16.mxu0 0
    %1926 = vmatpush1.bf16.xpose.msra.mxu0 0
    %1927 = vmatprep.mubr.bf16.mxu0 %v269
    %1928 = vmatmul.mubr.bf16.gmra.mrb[0].mxu0 %v255
    %v1929 = vpop.f32.mrb[0].mxu0
    %v1930 = vadd.f32 %v1890, %v1929
    %v1931 = vpop.f32.mrb[0].mxu0
    %v1932 = vpop.f32.mrb[0].mxu0
    %v1933 = vpop.f32.mrb[0].mxu0
    %1934 = vdwg.mxu0
    %1935 = vmatprep.subr.bf16.mxu0 %v1490
    %1936 = vmatpush1.bf16.xpose.msra.mxu0 %v1489
    %1937 = vmatprep.subr.bf16.mxu0 0
    %1938 = vmatpush1.bf16.xpose.msra.mxu0 0
    %1939 = vmatprep.subr.bf16.mxu0 0
    %1940 = vmatpush1.bf16.xpose.msra.mxu0 0
    %1941 = vmatprep.subr.bf16.mxu0 0
    %1942 = vmatpush1.bf16.xpose.msra.mxu0 0
    %1943 = vmatprep.subr.bf16.mxu0 0
    %1944 = vmatpush1.bf16.xpose.msra.mxu0 0
    %1945 = vmatprep.subr.bf16.mxu0 0
    %1946 = vmatpush1.bf16.xpose.msra.mxu0 0
    %1947 = vmatprep.subr.bf16.mxu0 0
    %1948 = vmatpush1.bf16.xpose.msra.mxu0 0
    %1949 = vmatprep.subr.bf16.mxu0 0
    %1950 = vmatpush1.bf16.xpose.msra.mxu0 0
    %1951 = vmatprep.subr.bf16.mxu0 0
    %1952 = vmatpush1.bf16.xpose.msra.mxu0 0
    %1953 = vmatprep.subr.bf16.mxu0 0
    %1954 = vmatpush1.bf16.xpose.msra.mxu0 0
    %1955 = vmatprep.subr.bf16.mxu0 0
    %1956 = vmatpush1.bf16.xpose.msra.mxu0 0
    %1957 = vmatprep.subr.bf16.mxu0 0
    %1958 = vmatpush1.bf16.xpose.msra.mxu0 0
    %1959 = vmatprep.subr.bf16.mxu0 0
    %1960 = vmatpush1.bf16.xpose.msra.mxu0 0
    %1961 = vmatprep.subr.bf16.mxu0 0
    %1962 = vmatpush1.bf16.xpose.msra.mxu0 0
    %1963 = vmatprep.subr.bf16.mxu0 0
    %1964 = vmatpush1.bf16.xpose.msra.mxu0 0
    %1965 = vmatprep.subr.bf16.mxu0 0
    %1966 = vmatpush1.bf16.xpose.msra.mxu0 0
    %1967 = vmatprep.mubr.bf16.mxu0 %v279
    %1968 = vmatmul.mubr.bf16.gmra.mrb[0].mxu0 %v277
    %v1969 = vpop.f32.mrb[0].mxu0
    %v1970 = vadd.f32 %v1930, %v1969
    %v1971 = vpop.f32.mrb[0].mxu0
    %v1972 = vpop.f32.mrb[0].mxu0
    %v1973 = vpop.f32.mrb[0].mxu0
    %1974 = vdwg.mxu0
    %1975 = vmatprep.subr.bf16.mxu0 %v1492
    %1976 = vmatpush1.bf16.xpose.msra.mxu0 %v1491
    %1977 = vmatprep.subr.bf16.mxu0 0
    %1978 = vmatpush1.bf16.xpose.msra.mxu0 0
    %1979 = vmatprep.subr.bf16.mxu0 0
    %1980 = vmatpush1.bf16.xpose.msra.mxu0 0
    %1981 = vmatprep.subr.bf16.mxu0 0
    %1982 = vmatpush1.bf16.xpose.msra.mxu0 0
    %1983 = vmatprep.subr.bf16.mxu0 0
    %1984 = vmatpush1.bf16.xpose.msra.mxu0 0
    %1985 = vmatprep.subr.bf16.mxu0 0
    %1986 = vmatpush1.bf16.xpose.msra.mxu0 0
    %1987 = vmatprep.subr.bf16.mxu0 0
    %1988 = vmatpush1.bf16.xpose.msra.mxu0 0
    %1989 = vmatprep.subr.bf16.mxu0 0
    %1990 = vmatpush1.bf16.xpose.msra.mxu0 0
    %1991 = vmatprep.subr.bf16.mxu0 0
    %1992 = vmatpush1.bf16.xpose.msra.mxu0 0
    %1993 = vmatprep.subr.bf16.mxu0 0
    %1994 = vmatpush1.bf16.xpose.msra.mxu0 0
    %1995 = vmatprep.subr.bf16.mxu0 0
    %1996 = vmatpush1.bf16.xpose.msra.mxu0 0
    %1997 = vmatprep.subr.bf16.mxu0 0
    %1998 = vmatpush1.bf16.xpose.msra.mxu0 0
    %1999 = vmatprep.subr.bf16.mxu0 0
    %2000 = vmatpush1.bf16.xpose.msra.mxu0 0
    %2001 = vmatprep.subr.bf16.mxu0 0
    %2002 = vmatpush1.bf16.xpose.msra.mxu0 0
    %2003 = vmatprep.subr.bf16.mxu0 0
    %2004 = vmatpush1.bf16.xpose.msra.mxu0 0
    %2005 = vmatprep.subr.bf16.mxu0 0
    %2006 = vmatpush1.bf16.xpose.msra.mxu0 0
    %2007 = vmatprep.mubr.bf16.mxu0 %v276
    %2008 = vmatmul.mubr.bf16.gmra.mrb[0].mxu0 %v262
    %v2009 = vpop.f32.mrb[0].mxu0
    %v2010 = vadd.f32 %v1970, %v2009
    %v2011 = vpop.f32.mrb[0].mxu0
    %v2012 = vpop.f32.mrb[0].mxu0
    %v2013 = vpop.f32.mrb[0].mxu0
    %2014 = vdwg.mxu0
    %2015 = vmatprep.subr.bf16.mxu0 %v1494
    %2016 = vmatpush1.bf16.xpose.msra.mxu0 %v1493
    %2017 = vmatprep.subr.bf16.mxu0 0
    %2018 = vmatpush1.bf16.xpose.msra.mxu0 0
    %2019 = vmatprep.subr.bf16.mxu0 0
    %2020 = vmatpush1.bf16.xpose.msra.mxu0 0
    %2021 = vmatprep.subr.bf16.mxu0 0
    %2022 = vmatpush1.bf16.xpose.msra.mxu0 0
    %2023 = vmatprep.subr.bf16.mxu0 0
    %2024 = vmatpush1.bf16.xpose.msra.mxu0 0
    %2025 = vmatprep.subr.bf16.mxu0 0
    %2026 = vmatpush1.bf16.xpose.msra.mxu0 0
    %2027 = vmatprep.subr.bf16.mxu0 0
    %2028 = vmatpush1.bf16.xpose.msra.mxu0 0
    %2029 = vmatprep.subr.bf16.mxu0 0
    %2030 = vmatpush1.bf16.xpose.msra.mxu0 0
    %2031 = vmatprep.subr.bf16.mxu0 0
    %2032 = vmatpush1.bf16.xpose.msra.mxu0 0
    %2033 = vmatprep.subr.bf16.mxu0 0
    %2034 = vmatpush1.bf16.xpose.msra.mxu0 0
    %2035 = vmatprep.subr.bf16.mxu0 0
    %2036 = vmatpush1.bf16.xpose.msra.mxu0 0
    %2037 = vmatprep.subr.bf16.mxu0 0
    %2038 = vmatpush1.bf16.xpose.msra.mxu0 0
    %2039 = vmatprep.subr.bf16.mxu0 0
    %2040 = vmatpush1.bf16.xpose.msra.mxu0 0
    %2041 = vmatprep.subr.bf16.mxu0 0
    %2042 = vmatpush1.bf16.xpose.msra.mxu0 0
    %2043 = vmatprep.subr.bf16.mxu0 0
    %2044 = vmatpush1.bf16.xpose.msra.mxu0 0
    %2045 = vmatprep.subr.bf16.mxu0 0
    %2046 = vmatpush1.bf16.xpose.msra.mxu0 0
    %2047 = vmatprep.mubr.bf16.mxu0 %v280
    %2048 = vmatmul.mubr.bf16.gmra.mrb[0].mxu0 %v278
    %v2049 = vpop.f32.mrb[0].mxu0
    %v2050 = vadd.f32 %v2010, %v2049
    %v2051 = vpop.f32.mrb[0].mxu0
    %v2052 = vpop.f32.mrb[0].mxu0
    %v2053 = vpop.f32.mrb[0].mxu0
    %2054 = vdwg.mxu0
    %2055 = vmatprep.subr.bf16.mxu0 %v1496
    %2056 = vmatpush1.bf16.xpose.msra.mxu0 %v1495
    %2057 = vmatprep.subr.bf16.mxu0 0
    %2058 = vmatpush1.bf16.xpose.msra.mxu0 0
    %2059 = vmatprep.subr.bf16.mxu0 0
    %2060 = vmatpush1.bf16.xpose.msra.mxu0 0
    %2061 = vmatprep.subr.bf16.mxu0 0
    %2062 = vmatpush1.bf16.xpose.msra.mxu0 0
    %2063 = vmatprep.subr.bf16.mxu0 0
    %2064 = vmatpush1.bf16.xpose.msra.mxu0 0
    %2065 = vmatprep.subr.bf16.mxu0 0
    %2066 = vmatpush1.bf16.xpose.msra.mxu0 0
    %2067 = vmatprep.subr.bf16.mxu0 0
    %2068 = vmatpush1.bf16.xpose.msra.mxu0 0
    %2069 = vmatprep.subr.bf16.mxu0 0
    %2070 = vmatpush1.bf16.xpose.msra.mxu0 0
    %2071 = vmatprep.subr.bf16.mxu0 0
    %2072 = vmatpush1.bf16.xpose.msra.mxu0 0
    %2073 = vmatprep.subr.bf16.mxu0 0
    %2074 = vmatpush1.bf16.xpose.msra.mxu0 0
    %2075 = vmatprep.subr.bf16.mxu0 0
    %2076 = vmatpush1.bf16.xpose.msra.mxu0 0
    %2077 = vmatprep.subr.bf16.mxu0 0
    %2078 = vmatpush1.bf16.xpose.msra.mxu0 0
    %2079 = vmatprep.subr.bf16.mxu0 0
    %2080 = vmatpush1.bf16.xpose.msra.mxu0 0
    %2081 = vmatprep.subr.bf16.mxu0 0
    %2082 = vmatpush1.bf16.xpose.msra.mxu0 0
    %2083 = vmatprep.subr.bf16.mxu0 0
    %2084 = vmatpush1.bf16.xpose.msra.mxu0 0
    %2085 = vmatprep.subr.bf16.mxu0 0
    %2086 = vmatpush1.bf16.xpose.msra.mxu0 0
    %2087 = vmatprep.mubr.bf16.mxu0 %v318
    %2088 = vmatmul.mubr.bf16.gmra.mrb[0].mxu0 %v304
    %v2089 = vpop.f32.mrb[0].mxu0
    %v2090 = vadd.f32 %v2050, %v2089
    %v2091 = vpop.f32.mrb[0].mxu0
    %v2092 = vpop.f32.mrb[0].mxu0
    %v2093 = vpop.f32.mrb[0].mxu0
    %2094 = vdwg.mxu0
    %2095 = vmatprep.subr.bf16.mxu0 %v1498
    %2096 = vmatpush1.bf16.xpose.msra.mxu0 %v1497
    %2097 = vmatprep.subr.bf16.mxu0 0
    %2098 = vmatpush1.bf16.xpose.msra.mxu0 0
    %2099 = vmatprep.subr.bf16.mxu0 0
    %2100 = vmatpush1.bf16.xpose.msra.mxu0 0
    %2101 = vmatprep.subr.bf16.mxu0 0
    %2102 = vmatpush1.bf16.xpose.msra.mxu0 0
    %2103 = vmatprep.subr.bf16.mxu0 0
    %2104 = vmatpush1.bf16.xpose.msra.mxu0 0
    %2105 = vmatprep.subr.bf16.mxu0 0
    %2106 = vmatpush1.bf16.xpose.msra.mxu0 0
    %2107 = vmatprep.subr.bf16.mxu0 0
    %2108 = vmatpush1.bf16.xpose.msra.mxu0 0
    %2109 = vmatprep.subr.bf16.mxu0 0
    %2110 = vmatpush1.bf16.xpose.msra.mxu0 0
    %2111 = vmatprep.subr.bf16.mxu0 0
    %2112 = vmatpush1.bf16.xpose.msra.mxu0 0
    %2113 = vmatprep.subr.bf16.mxu0 0
    %2114 = vmatpush1.bf16.xpose.msra.mxu0 0
    %2115 = vmatprep.subr.bf16.mxu0 0
    %2116 = vmatpush1.bf16.xpose.msra.mxu0 0
    %2117 = vmatprep.subr.bf16.mxu0 0
    %2118 = vmatpush1.bf16.xpose.msra.mxu0 0
    %2119 = vmatprep.subr.bf16.mxu0 0
    %2120 = vmatpush1.bf16.xpose.msra.mxu0 0
    %2121 = vmatprep.subr.bf16.mxu0 0
    %2122 = vmatpush1.bf16.xpose.msra.mxu0 0
    %2123 = vmatprep.subr.bf16.mxu0 0
    %2124 = vmatpush1.bf16.xpose.msra.mxu0 0
    %2125 = vmatprep.subr.bf16.mxu0 0
    %2126 = vmatpush1.bf16.xpose.msra.mxu0 0
    %2127 = vmatprep.mubr.bf16.mxu0 %v328
    %2128 = vmatmul.mubr.bf16.gmra.mrb[0].mxu0 %v326
    %v2129 = vpop.f32.mrb[0].mxu0
    %v2130 = vadd.f32 %v2090, %v2129
    %v2131 = vpop.f32.mrb[0].mxu0
    %v2132 = vpop.f32.mrb[0].mxu0
    %v2133 = vpop.f32.mrb[0].mxu0
    %2134 = vdwg.mxu0
    %2135 = vmatprep.subr.bf16.mxu0 %v1500
    %2136 = vmatpush1.bf16.xpose.msra.mxu0 %v1499
    %2137 = vmatprep.subr.bf16.mxu0 0
    %2138 = vmatpush1.bf16.xpose.msra.mxu0 0
    %2139 = vmatprep.subr.bf16.mxu0 0
    %2140 = vmatpush1.bf16.xpose.msra.mxu0 0
    %2141 = vmatprep.subr.bf16.mxu0 0
    %2142 = vmatpush1.bf16.xpose.msra.mxu0 0
    %2143 = vmatprep.subr.bf16.mxu0 0
    %2144 = vmatpush1.bf16.xpose.msra.mxu0 0
    %2145 = vmatprep.subr.bf16.mxu0 0
    %2146 = vmatpush1.bf16.xpose.msra.mxu0 0
    %2147 = vmatprep.subr.bf16.mxu0 0
    %2148 = vmatpush1.bf16.xpose.msra.mxu0 0
    %2149 = vmatprep.subr.bf16.mxu0 0
    %2150 = vmatpush1.bf16.xpose.msra.mxu0 0
    %2151 = vmatprep.subr.bf16.mxu0 0
    %2152 = vmatpush1.bf16.xpose.msra.mxu0 0
    %2153 = vmatprep.subr.bf16.mxu0 0
    %2154 = vmatpush1.bf16.xpose.msra.mxu0 0
    %2155 = vmatprep.subr.bf16.mxu0 0
    %2156 = vmatpush1.bf16.xpose.msra.mxu0 0
    %2157 = vmatprep.subr.bf16.mxu0 0
    %2158 = vmatpush1.bf16.xpose.msra.mxu0 0
    %2159 = vmatprep.subr.bf16.mxu0 0
    %2160 = vmatpush1.bf16.xpose.msra.mxu0 0
    %2161 = vmatprep.subr.bf16.mxu0 0
    %2162 = vmatpush1.bf16.xpose.msra.mxu0 0
    %2163 = vmatprep.subr.bf16.mxu0 0
    %2164 = vmatpush1.bf16.xpose.msra.mxu0 0
    %2165 = vmatprep.subr.bf16.mxu0 0
    %2166 = vmatpush1.bf16.xpose.msra.mxu0 0
    %2167 = vmatprep.mubr.bf16.mxu0 %v325
    %2168 = vmatmul.mubr.bf16.gmra.mrb[0].mxu0 %v311
    %v2169 = vpop.f32.mrb[0].mxu0
    %v2170 = vadd.f32 %v2130, %v2169
    %v2171 = vpop.f32.mrb[0].mxu0
    %v2172 = vpop.f32.mrb[0].mxu0
    %v2173 = vpop.f32.mrb[0].mxu0
    %2174 = vdwg.mxu0
    %2175 = vmatprep.subr.bf16.mxu0 %v1502
    %2176 = vmatpush1.bf16.xpose.msra.mxu0 %v1501
    %2177 = vmatprep.subr.bf16.mxu0 0
    %2178 = vmatpush1.bf16.xpose.msra.mxu0 0
    %2179 = vmatprep.subr.bf16.mxu0 0
    %2180 = vmatpush1.bf16.xpose.msra.mxu0 0
    %2181 = vmatprep.subr.bf16.mxu0 0
    %2182 = vmatpush1.bf16.xpose.msra.mxu0 0
    %2183 = vmatprep.subr.bf16.mxu0 0
    %2184 = vmatpush1.bf16.xpose.msra.mxu0 0
    %2185 = vmatprep.subr.bf16.mxu0 0
    %2186 = vmatpush1.bf16.xpose.msra.mxu0 0
    %2187 = vmatprep.subr.bf16.mxu0 0
    %2188 = vmatpush1.bf16.xpose.msra.mxu0 0
    %2189 = vmatprep.subr.bf16.mxu0 0
    %2190 = vmatpush1.bf16.xpose.msra.mxu0 0
    %2191 = vmatprep.subr.bf16.mxu0 0
    %2192 = vmatpush1.bf16.xpose.msra.mxu0 0
    %2193 = vmatprep.subr.bf16.mxu0 0
    %2194 = vmatpush1.bf16.xpose.msra.mxu0 0
    %2195 = vmatprep.subr.bf16.mxu0 0
    %2196 = vmatpush1.bf16.xpose.msra.mxu0 0
    %2197 = vmatprep.subr.bf16.mxu0 0
    %2198 = vmatpush1.bf16.xpose.msra.mxu0 0
    %2199 = vmatprep.subr.bf16.mxu0 0
    %2200 = vmatpush1.bf16.xpose.msra.mxu0 0
    %2201 = vmatprep.subr.bf16.mxu0 0
    %2202 = vmatpush1.bf16.xpose.msra.mxu0 0
    %2203 = vmatprep.subr.bf16.mxu0 0
    %2204 = vmatpush1.bf16.xpose.msra.mxu0 0
    %2205 = vmatprep.subr.bf16.mxu0 0
    %2206 = vmatpush1.bf16.xpose.msra.mxu0 0
    %2207 = vmatprep.mubr.bf16.mxu0 %v329
    %2208 = vmatmul.mubr.bf16.gmra.mrb[0].mxu0 %v327
    %v2209 = vpop.f32.mrb[0].mxu0
    %v2210 = vadd.f32 %v2170, %v2209
    %v2211 = vpop.f32.mrb[0].mxu0
    %v2212 = vpop.f32.mrb[0].mxu0
    %v2213 = vpop.f32.mrb[0].mxu0
    %2214 = vdwg.mxu0
    %2215 = vmatprep.subr.bf16.mxu0 %v1504
    %2216 = vmatpush1.bf16.xpose.msra.mxu0 %v1503
    %2217 = vmatprep.subr.bf16.mxu0 0
    %2218 = vmatpush1.bf16.xpose.msra.mxu0 0
    %2219 = vmatprep.subr.bf16.mxu0 0
    %2220 = vmatpush1.bf16.xpose.msra.mxu0 0
    %2221 = vmatprep.subr.bf16.mxu0 0
    %2222 = vmatpush1.bf16.xpose.msra.mxu0 0
    %2223 = vmatprep.subr.bf16.mxu0 0
    %2224 = vmatpush1.bf16.xpose.msra.mxu0 0
    %2225 = vmatprep.subr.bf16.mxu0 0
    %2226 = vmatpush1.bf16.xpose.msra.mxu0 0
    %2227 = vmatprep.subr.bf16.mxu0 0
    %2228 = vmatpush1.bf16.xpose.msra.mxu0 0
    %2229 = vmatprep.subr.bf16.mxu0 0
    %2230 = vmatpush1.bf16.xpose.msra.mxu0 0
    %2231 = vmatprep.subr.bf16.mxu0 0
    %2232 = vmatpush1.bf16.xpose.msra.mxu0 0
    %2233 = vmatprep.subr.bf16.mxu0 0
    %2234 = vmatpush1.bf16.xpose.msra.mxu0 0
    %2235 = vmatprep.subr.bf16.mxu0 0
    %2236 = vmatpush1.bf16.xpose.msra.mxu0 0
    %2237 = vmatprep.subr.bf16.mxu0 0
    %2238 = vmatpush1.bf16.xpose.msra.mxu0 0
    %2239 = vmatprep.subr.bf16.mxu0 0
    %2240 = vmatpush1.bf16.xpose.msra.mxu0 0
    %2241 = vmatprep.subr.bf16.mxu0 0
    %2242 = vmatpush1.bf16.xpose.msra.mxu0 0
    %2243 = vmatprep.subr.bf16.mxu0 0
    %2244 = vmatpush1.bf16.xpose.msra.mxu0 0
    %2245 = vmatprep.subr.bf16.mxu0 0
    %2246 = vmatpush1.bf16.xpose.msra.mxu0 0
    %2247 = vmatprep.mubr.bf16.mxu0 %v367
    %2248 = vmatmul.mubr.bf16.gmra.mrb[0].mxu0 %v353
    %v2249 = vpop.f32.mrb[0].mxu0
    %v2250 = vadd.f32 %v2210, %v2249
    %v2251 = vpop.f32.mrb[0].mxu0
    %v2252 = vpop.f32.mrb[0].mxu0
    %v2253 = vpop.f32.mrb[0].mxu0
    %2254 = vdwg.mxu0
    %2255 = vmatprep.subr.bf16.mxu0 %v1506
    %2256 = vmatpush1.bf16.xpose.msra.mxu0 %v1505
    %2257 = vmatprep.subr.bf16.mxu0 0
    %2258 = vmatpush1.bf16.xpose.msra.mxu0 0
    %2259 = vmatprep.subr.bf16.mxu0 0
    %2260 = vmatpush1.bf16.xpose.msra.mxu0 0
    %2261 = vmatprep.subr.bf16.mxu0 0
    %2262 = vmatpush1.bf16.xpose.msra.mxu0 0
    %2263 = vmatprep.subr.bf16.mxu0 0
    %2264 = vmatpush1.bf16.xpose.msra.mxu0 0
    %2265 = vmatprep.subr.bf16.mxu0 0
    %2266 = vmatpush1.bf16.xpose.msra.mxu0 0
    %2267 = vmatprep.subr.bf16.mxu0 0
    %2268 = vmatpush1.bf16.xpose.msra.mxu0 0
    %2269 = vmatprep.subr.bf16.mxu0 0
    %2270 = vmatpush1.bf16.xpose.msra.mxu0 0
    %2271 = vmatprep.subr.bf16.mxu0 0
    %2272 = vmatpush1.bf16.xpose.msra.mxu0 0
    %2273 = vmatprep.subr.bf16.mxu0 0
    %2274 = vmatpush1.bf16.xpose.msra.mxu0 0
    %2275 = vmatprep.subr.bf16.mxu0 0
    %2276 = vmatpush1.bf16.xpose.msra.mxu0 0
    %2277 = vmatprep.subr.bf16.mxu0 0
    %2278 = vmatpush1.bf16.xpose.msra.mxu0 0
    %2279 = vmatprep.subr.bf16.mxu0 0
    %2280 = vmatpush1.bf16.xpose.msra.mxu0 0
    %2281 = vmatprep.subr.bf16.mxu0 0
    %2282 = vmatpush1.bf16.xpose.msra.mxu0 0
    %2283 = vmatprep.subr.bf16.mxu0 0
    %2284 = vmatpush1.bf16.xpose.msra.mxu0 0
    %2285 = vmatprep.subr.bf16.mxu0 0
    %2286 = vmatpush1.bf16.xpose.msra.mxu0 0
    %2287 = vmatprep.mubr.bf16.mxu0 %v377
    %2288 = vmatmul.mubr.bf16.gmra.mrb[0].mxu0 %v375
    %v2289 = vpop.f32.mrb[0].mxu0
    %v2290 = vadd.f32 %v2250, %v2289
    %v2291 = vpop.f32.mrb[0].mxu0
    %v2292 = vpop.f32.mrb[0].mxu0
    %v2293 = vpop.f32.mrb[0].mxu0
    %2294 = vdwg.mxu0
    %2295 = vmatprep.subr.bf16.mxu0 %v1508
    %2296 = vmatpush1.bf16.xpose.msra.mxu0 %v1507
    %2297 = vmatprep.subr.bf16.mxu0 0
    %2298 = vmatpush1.bf16.xpose.msra.mxu0 0
    %2299 = vmatprep.subr.bf16.mxu0 0
    %2300 = vmatpush1.bf16.xpose.msra.mxu0 0
    %2301 = vmatprep.subr.bf16.mxu0 0
    %2302 = vmatpush1.bf16.xpose.msra.mxu0 0
    %2303 = vmatprep.subr.bf16.mxu0 0
    %2304 = vmatpush1.bf16.xpose.msra.mxu0 0
    %2305 = vmatprep.subr.bf16.mxu0 0
    %2306 = vmatpush1.bf16.xpose.msra.mxu0 0
    %2307 = vmatprep.subr.bf16.mxu0 0
    %2308 = vmatpush1.bf16.xpose.msra.mxu0 0
    %2309 = vmatprep.subr.bf16.mxu0 0
    %2310 = vmatpush1.bf16.xpose.msra.mxu0 0
    %2311 = vmatprep.subr.bf16.mxu0 0
    %2312 = vmatpush1.bf16.xpose.msra.mxu0 0
    %2313 = vmatprep.subr.bf16.mxu0 0
    %2314 = vmatpush1.bf16.xpose.msra.mxu0 0
    %2315 = vmatprep.subr.bf16.mxu0 0
    %2316 = vmatpush1.bf16.xpose.msra.mxu0 0
    %2317 = vmatprep.subr.bf16.mxu0 0
    %2318 = vmatpush1.bf16.xpose.msra.mxu0 0
    %2319 = vmatprep.subr.bf16.mxu0 0
    %2320 = vmatpush1.bf16.xpose.msra.mxu0 0
    %2321 = vmatprep.subr.bf16.mxu0 0
    %2322 = vmatpush1.bf16.xpose.msra.mxu0 0
    %2323 = vmatprep.subr.bf16.mxu0 0
    %2324 = vmatpush1.bf16.xpose.msra.mxu0 0
    %2325 = vmatprep.subr.bf16.mxu0 0
    %2326 = vmatpush1.bf16.xpose.msra.mxu0 0
    %2327 = vmatprep.mubr.bf16.mxu0 %v374
    %2328 = vmatmul.mubr.bf16.gmra.mrb[0].mxu0 %v360
    %v2329 = vpop.f32.mrb[0].mxu0
    %v2330 = vadd.f32 %v2290, %v2329
    %v2331 = vpop.f32.mrb[0].mxu0
    %v2332 = vpop.f32.mrb[0].mxu0
    %v2333 = vpop.f32.mrb[0].mxu0
    %2334 = vdwg.mxu0
    %2335 = vmatprep.subr.bf16.mxu0 %v1510
    %2336 = vmatpush1.bf16.xpose.msra.mxu0 %v1509
    %2337 = vmatprep.subr.bf16.mxu0 0
    %2338 = vmatpush1.bf16.xpose.msra.mxu0 0
    %2339 = vmatprep.subr.bf16.mxu0 0
    %2340 = vmatpush1.bf16.xpose.msra.mxu0 0
    %2341 = vmatprep.subr.bf16.mxu0 0
    %2342 = vmatpush1.bf16.xpose.msra.mxu0 0
    %2343 = vmatprep.subr.bf16.mxu0 0
    %2344 = vmatpush1.bf16.xpose.msra.mxu0 0
    %2345 = vmatprep.subr.bf16.mxu0 0
    %2346 = vmatpush1.bf16.xpose.msra.mxu0 0
    %2347 = vmatprep.subr.bf16.mxu0 0
    %2348 = vmatpush1.bf16.xpose.msra.mxu0 0
    %2349 = vmatprep.subr.bf16.mxu0 0
    %2350 = vmatpush1.bf16.xpose.msra.mxu0 0
    %2351 = vmatprep.subr.bf16.mxu0 0
    %2352 = vmatpush1.bf16.xpose.msra.mxu0 0
    %2353 = vmatprep.subr.bf16.mxu0 0
    %2354 = vmatpush1.bf16.xpose.msra.mxu0 0
    %2355 = vmatprep.subr.bf16.mxu0 0
    %2356 = vmatpush1.bf16.xpose.msra.mxu0 0
    %2357 = vmatprep.subr.bf16.mxu0 0
    %2358 = vmatpush1.bf16.xpose.msra.mxu0 0
    %2359 = vmatprep.subr.bf16.mxu0 0
    %2360 = vmatpush1.bf16.xpose.msra.mxu0 0
    %2361 = vmatprep.subr.bf16.mxu0 0
    %2362 = vmatpush1.bf16.xpose.msra.mxu0 0
    %2363 = vmatprep.subr.bf16.mxu0 0
    %2364 = vmatpush1.bf16.xpose.msra.mxu0 0
    %2365 = vmatprep.subr.bf16.mxu0 0
    %2366 = vmatpush1.bf16.xpose.msra.mxu0 0
    %2367 = vmatprep.mubr.bf16.mxu0 %v378
    %2368 = vmatmul.mubr.bf16.gmra.mrb[0].mxu0 %v376
    %v2369 = vpop.f32.mrb[0].mxu0
    %v2370 = vadd.f32 %v2330, %v2369
    %v2371 = vpop.f32.mrb[0].mxu0
    %v2372 = vpop.f32.mrb[0].mxu0
    %v2373 = vpop.f32.mrb[0].mxu0
    %2374 = vdwg.mxu0
    %2375 = vmatprep.subr.bf16.mxu0 %v1512
    %2376 = vmatpush1.bf16.xpose.msra.mxu0 %v1511
    %2377 = vmatprep.subr.bf16.mxu0 0
    %2378 = vmatpush1.bf16.xpose.msra.mxu0 0
    %2379 = vmatprep.subr.bf16.mxu0 0
    %2380 = vmatpush1.bf16.xpose.msra.mxu0 0
    %2381 = vmatprep.subr.bf16.mxu0 0
    %2382 = vmatpush1.bf16.xpose.msra.mxu0 0
    %2383 = vmatprep.subr.bf16.mxu0 0
    %2384 = vmatpush1.bf16.xpose.msra.mxu0 0
    %2385 = vmatprep.subr.bf16.mxu0 0
    %2386 = vmatpush1.bf16.xpose.msra.mxu0 0
    %2387 = vmatprep.subr.bf16.mxu0 0
    %2388 = vmatpush1.bf16.xpose.msra.mxu0 0
    %2389 = vmatprep.subr.bf16.mxu0 0
    %2390 = vmatpush1.bf16.xpose.msra.mxu0 0
    %2391 = vmatprep.subr.bf16.mxu0 0
    %2392 = vmatpush1.bf16.xpose.msra.mxu0 0
    %2393 = vmatprep.subr.bf16.mxu0 0
    %2394 = vmatpush1.bf16.xpose.msra.mxu0 0
    %2395 = vmatprep.subr.bf16.mxu0 0
    %2396 = vmatpush1.bf16.xpose.msra.mxu0 0
    %2397 = vmatprep.subr.bf16.mxu0 0
    %2398 = vmatpush1.bf16.xpose.msra.mxu0 0
    %2399 = vmatprep.subr.bf16.mxu0 0
    %2400 = vmatpush1.bf16.xpose.msra.mxu0 0
    %2401 = vmatprep.subr.bf16.mxu0 0
    %2402 = vmatpush1.bf16.xpose.msra.mxu0 0
    %2403 = vmatprep.subr.bf16.mxu0 0
    %2404 = vmatpush1.bf16.xpose.msra.mxu0 0
    %2405 = vmatprep.subr.bf16.mxu0 0
    %2406 = vmatpush1.bf16.xpose.msra.mxu0 0
    %2407 = vmatprep.mubr.bf16.mxu0 %v416
    %2408 = vmatmul.mubr.bf16.gmra.mrb[0].mxu0 %v402
    %v2409 = vpop.f32.mrb[0].mxu0
    %v2410 = vadd.f32 %v2370, %v2409
    %v2411 = vpop.f32.mrb[0].mxu0
    %v2412 = vpop.f32.mrb[0].mxu0
    %v2413 = vpop.f32.mrb[0].mxu0
    %2414 = vdwg.mxu0
    %2415 = vmatprep.subr.bf16.mxu0 %v1514
    %2416 = vmatpush1.bf16.xpose.msra.mxu0 %v1513
    %2417 = vmatprep.subr.bf16.mxu0 0
    %2418 = vmatpush1.bf16.xpose.msra.mxu0 0
    %2419 = vmatprep.subr.bf16.mxu0 0
    %2420 = vmatpush1.bf16.xpose.msra.mxu0 0
    %2421 = vmatprep.subr.bf16.mxu0 0
    %2422 = vmatpush1.bf16.xpose.msra.mxu0 0
    %2423 = vmatprep.subr.bf16.mxu0 0
    %2424 = vmatpush1.bf16.xpose.msra.mxu0 0
    %2425 = vmatprep.subr.bf16.mxu0 0
    %2426 = vmatpush1.bf16.xpose.msra.mxu0 0
    %2427 = vmatprep.subr.bf16.mxu0 0
    %2428 = vmatpush1.bf16.xpose.msra.mxu0 0
    %2429 = vmatprep.subr.bf16.mxu0 0
    %2430 = vmatpush1.bf16.xpose.msra.mxu0 0
    %2431 = vmatprep.subr.bf16.mxu0 0
    %2432 = vmatpush1.bf16.xpose.msra.mxu0 0
    %2433 = vmatprep.subr.bf16.mxu0 0
    %2434 = vmatpush1.bf16.xpose.msra.mxu0 0
    %2435 = vmatprep.subr.bf16.mxu0 0
    %2436 = vmatpush1.bf16.xpose.msra.mxu0 0
    %2437 = vmatprep.subr.bf16.mxu0 0
    %2438 = vmatpush1.bf16.xpose.msra.mxu0 0
    %2439 = vmatprep.subr.bf16.mxu0 0
    %2440 = vmatpush1.bf16.xpose.msra.mxu0 0
    %2441 = vmatprep.subr.bf16.mxu0 0
    %2442 = vmatpush1.bf16.xpose.msra.mxu0 0
    %2443 = vmatprep.subr.bf16.mxu0 0
    %2444 = vmatpush1.bf16.xpose.msra.mxu0 0
    %2445 = vmatprep.subr.bf16.mxu0 0
    %2446 = vmatpush1.bf16.xpose.msra.mxu0 0
    %2447 = vmatprep.mubr.bf16.mxu0 %v426
    %2448 = vmatmul.mubr.bf16.gmra.mrb[0].mxu0 %v424
    %v2449 = vpop.f32.mrb[0].mxu0
    %v2450 = vadd.f32 %v2410, %v2449
    %v2451 = vpop.f32.mrb[0].mxu0
    %v2452 = vpop.f32.mrb[0].mxu0
    %v2453 = vpop.f32.mrb[0].mxu0
    %2454 = vdwg.mxu0
    %2455 = vmatprep.subr.bf16.mxu0 %v1516
    %2456 = vmatpush1.bf16.xpose.msra.mxu0 %v1515
    %2457 = vmatprep.subr.bf16.mxu0 0
    %2458 = vmatpush1.bf16.xpose.msra.mxu0 0
    %2459 = vmatprep.subr.bf16.mxu0 0
    %2460 = vmatpush1.bf16.xpose.msra.mxu0 0
    %2461 = vmatprep.subr.bf16.mxu0 0
    %2462 = vmatpush1.bf16.xpose.msra.mxu0 0
    %2463 = vmatprep.subr.bf16.mxu0 0
    %2464 = vmatpush1.bf16.xpose.msra.mxu0 0
    %2465 = vmatprep.subr.bf16.mxu0 0
    %2466 = vmatpush1.bf16.xpose.msra.mxu0 0
    %2467 = vmatprep.subr.bf16.mxu0 0
    %2468 = vmatpush1.bf16.xpose.msra.mxu0 0
    %2469 = vmatprep.subr.bf16.mxu0 0
    %2470 = vmatpush1.bf16.xpose.msra.mxu0 0
    %2471 = vmatprep.subr.bf16.mxu0 0
    %2472 = vmatpush1.bf16.xpose.msra.mxu0 0
    %2473 = vmatprep.subr.bf16.mxu0 0
    %2474 = vmatpush1.bf16.xpose.msra.mxu0 0
    %2475 = vmatprep.subr.bf16.mxu0 0
    %2476 = vmatpush1.bf16.xpose.msra.mxu0 0
    %2477 = vmatprep.subr.bf16.mxu0 0
    %2478 = vmatpush1.bf16.xpose.msra.mxu0 0
    %2479 = vmatprep.subr.bf16.mxu0 0
    %2480 = vmatpush1.bf16.xpose.msra.mxu0 0
    %2481 = vmatprep.subr.bf16.mxu0 0
    %2482 = vmatpush1.bf16.xpose.msra.mxu0 0
    %2483 = vmatprep.subr.bf16.mxu0 0
    %2484 = vmatpush1.bf16.xpose.msra.mxu0 0
    %2485 = vmatprep.subr.bf16.mxu0 0
    %2486 = vmatpush1.bf16.xpose.msra.mxu0 0
    %2487 = vmatprep.mubr.bf16.mxu0 %v423
    %2488 = vmatmul.mubr.bf16.gmra.mrb[0].mxu0 %v409
    %v2489 = vpop.f32.mrb[0].mxu0
    %v2490 = vadd.f32 %v2450, %v2489
    %v2491 = vpop.f32.mrb[0].mxu0
    %v2492 = vpop.f32.mrb[0].mxu0
    %v2493 = vpop.f32.mrb[0].mxu0
    %2494 = vdwg.mxu0
    %2495 = vmatprep.subr.bf16.mxu0 %v1518
    %2496 = vmatpush1.bf16.xpose.msra.mxu0 %v1517
    %2497 = vmatprep.subr.bf16.mxu0 0
    %2498 = vmatpush1.bf16.xpose.msra.mxu0 0
    %2499 = vmatprep.subr.bf16.mxu0 0
    %2500 = vmatpush1.bf16.xpose.msra.mxu0 0
    %2501 = vmatprep.subr.bf16.mxu0 0
    %2502 = vmatpush1.bf16.xpose.msra.mxu0 0
    %2503 = vmatprep.subr.bf16.mxu0 0
    %2504 = vmatpush1.bf16.xpose.msra.mxu0 0
    %2505 = vmatprep.subr.bf16.mxu0 0
    %2506 = vmatpush1.bf16.xpose.msra.mxu0 0
    %2507 = vmatprep.subr.bf16.mxu0 0
    %2508 = vmatpush1.bf16.xpose.msra.mxu0 0
    %2509 = vmatprep.subr.bf16.mxu0 0
    %2510 = vmatpush1.bf16.xpose.msra.mxu0 0
    %2511 = vmatprep.subr.bf16.mxu0 0
    %2512 = vmatpush1.bf16.xpose.msra.mxu0 0
    %2513 = vmatprep.subr.bf16.mxu0 0
    %2514 = vmatpush1.bf16.xpose.msra.mxu0 0
    %2515 = vmatprep.subr.bf16.mxu0 0
    %2516 = vmatpush1.bf16.xpose.msra.mxu0 0
    %2517 = vmatprep.subr.bf16.mxu0 0
    %2518 = vmatpush1.bf16.xpose.msra.mxu0 0
    %2519 = vmatprep.subr.bf16.mxu0 0
    %2520 = vmatpush1.bf16.xpose.msra.mxu0 0
    %2521 = vmatprep.subr.bf16.mxu0 0
    %2522 = vmatpush1.bf16.xpose.msra.mxu0 0
    %2523 = vmatprep.subr.bf16.mxu0 0
    %2524 = vmatpush1.bf16.xpose.msra.mxu0 0
    %2525 = vmatprep.subr.bf16.mxu0 0
    %2526 = vmatpush1.bf16.xpose.msra.mxu0 0
    %2527 = vmatprep.mubr.bf16.mxu0 %v427
    %2528 = vmatmul.mubr.bf16.gmra.mrb[0].mxu0 %v425
    %v2529 = vpop.f32.mrb[0].mxu0
    %v2530 = vadd.f32 %v2490, %v2529
    %v2531 = vpop.f32.mrb[0].mxu0
    %v2532 = vpop.f32.mrb[0].mxu0
    %v2533 = vpop.f32.mrb[0].mxu0
    %2534 = vdwg.mxu0
    %2535 = vmatprep.subr.bf16.mxu0 %v1520
    %2536 = vmatpush1.bf16.xpose.msra.mxu0 %v1519
    %2537 = vmatprep.subr.bf16.mxu0 0
    %2538 = vmatpush1.bf16.xpose.msra.mxu0 0
    %2539 = vmatprep.subr.bf16.mxu0 0
    %2540 = vmatpush1.bf16.xpose.msra.mxu0 0
    %2541 = vmatprep.subr.bf16.mxu0 0
    %2542 = vmatpush1.bf16.xpose.msra.mxu0 0
    %2543 = vmatprep.subr.bf16.mxu0 0
    %2544 = vmatpush1.bf16.xpose.msra.mxu0 0
    %2545 = vmatprep.subr.bf16.mxu0 0
    %2546 = vmatpush1.bf16.xpose.msra.mxu0 0
    %2547 = vmatprep.subr.bf16.mxu0 0
    %2548 = vmatpush1.bf16.xpose.msra.mxu0 0
    %2549 = vmatprep.subr.bf16.mxu0 0
    %2550 = vmatpush1.bf16.xpose.msra.mxu0 0
    %2551 = vmatprep.subr.bf16.mxu0 0
    %2552 = vmatpush1.bf16.xpose.msra.mxu0 0
    %2553 = vmatprep.subr.bf16.mxu0 0
    %2554 = vmatpush1.bf16.xpose.msra.mxu0 0
    %2555 = vmatprep.subr.bf16.mxu0 0
    %2556 = vmatpush1.bf16.xpose.msra.mxu0 0
    %2557 = vmatprep.subr.bf16.mxu0 0
    %2558 = vmatpush1.bf16.xpose.msra.mxu0 0
    %2559 = vmatprep.subr.bf16.mxu0 0
    %2560 = vmatpush1.bf16.xpose.msra.mxu0 0
    %2561 = vmatprep.subr.bf16.mxu0 0
    %2562 = vmatpush1.bf16.xpose.msra.mxu0 0
    %2563 = vmatprep.subr.bf16.mxu0 0
    %2564 = vmatpush1.bf16.xpose.msra.mxu0 0
    %2565 = vmatprep.subr.bf16.mxu0 0
    %2566 = vmatpush1.bf16.xpose.msra.mxu0 0
    %2567 = vmatprep.mubr.bf16.mxu0 %v465
    %2568 = vmatmul.mubr.bf16.gmra.mrb[0].mxu0 %v451
    %v2569 = vpop.f32.mrb[0].mxu0
    %v2570 = vadd.f32 %v2530, %v2569
    %v2571 = vpop.f32.mrb[0].mxu0
    %v2572 = vpop.f32.mrb[0].mxu0
    %v2573 = vpop.f32.mrb[0].mxu0
    %2574 = vdwg.mxu0
    %2575 = vmatprep.subr.bf16.mxu0 %v1522
    %2576 = vmatpush1.bf16.xpose.msra.mxu0 %v1521
    %2577 = vmatprep.subr.bf16.mxu0 0
    %2578 = vmatpush1.bf16.xpose.msra.mxu0 0
    %2579 = vmatprep.subr.bf16.mxu0 0
    %2580 = vmatpush1.bf16.xpose.msra.mxu0 0
    %2581 = vmatprep.subr.bf16.mxu0 0
    %2582 = vmatpush1.bf16.xpose.msra.mxu0 0
    %2583 = vmatprep.subr.bf16.mxu0 0
    %2584 = vmatpush1.bf16.xpose.msra.mxu0 0
    %2585 = vmatprep.subr.bf16.mxu0 0
    %2586 = vmatpush1.bf16.xpose.msra.mxu0 0
    %2587 = vmatprep.subr.bf16.mxu0 0
    %2588 = vmatpush1.bf16.xpose.msra.mxu0 0
    %2589 = vmatprep.subr.bf16.mxu0 0
    %2590 = vmatpush1.bf16.xpose.msra.mxu0 0
    %2591 = vmatprep.subr.bf16.mxu0 0
    %2592 = vmatpush1.bf16.xpose.msra.mxu0 0
    %2593 = vmatprep.subr.bf16.mxu0 0
    %2594 = vmatpush1.bf16.xpose.msra.mxu0 0
    %2595 = vmatprep.subr.bf16.mxu0 0
    %2596 = vmatpush1.bf16.xpose.msra.mxu0 0
    %2597 = vmatprep.subr.bf16.mxu0 0
    %2598 = vmatpush1.bf16.xpose.msra.mxu0 0
    %2599 = vmatprep.subr.bf16.mxu0 0
    %2600 = vmatpush1.bf16.xpose.msra.mxu0 0
    %2601 = vmatprep.subr.bf16.mxu0 0
    %2602 = vmatpush1.bf16.xpose.msra.mxu0 0
    %2603 = vmatprep.subr.bf16.mxu0 0
    %2604 = vmatpush1.bf16.xpose.msra.mxu0 0
    %2605 = vmatprep.subr.bf16.mxu0 0
    %2606 = vmatpush1.bf16.xpose.msra.mxu0 0
    %2607 = vmatprep.mubr.bf16.mxu0 %v475
    %2608 = vmatmul.mubr.bf16.gmra.mrb[0].mxu0 %v473
    %v2609 = vpop.f32.mrb[0].mxu0
    %v2610 = vadd.f32 %v2570, %v2609
    %v2611 = vpop.f32.mrb[0].mxu0
    %v2612 = vpop.f32.mrb[0].mxu0
    %v2613 = vpop.f32.mrb[0].mxu0
    %2614 = vdwg.mxu0
    %2615 = vmatprep.subr.bf16.mxu0 %v1524
    %2616 = vmatpush1.bf16.xpose.msra.mxu0 %v1523
    %2617 = vmatprep.subr.bf16.mxu0 0
    %2618 = vmatpush1.bf16.xpose.msra.mxu0 0
    %2619 = vmatprep.subr.bf16.mxu0 0
    %2620 = vmatpush1.bf16.xpose.msra.mxu0 0
    %2621 = vmatprep.subr.bf16.mxu0 0
    %2622 = vmatpush1.bf16.xpose.msra.mxu0 0
    %2623 = vmatprep.subr.bf16.mxu0 0
    %2624 = vmatpush1.bf16.xpose.msra.mxu0 0
    %2625 = vmatprep.subr.bf16.mxu0 0
    %2626 = vmatpush1.bf16.xpose.msra.mxu0 0
    %2627 = vmatprep.subr.bf16.mxu0 0
    %2628 = vmatpush1.bf16.xpose.msra.mxu0 0
    %2629 = vmatprep.subr.bf16.mxu0 0
    %2630 = vmatpush1.bf16.xpose.msra.mxu0 0
    %2631 = vmatprep.subr.bf16.mxu0 0
    %2632 = vmatpush1.bf16.xpose.msra.mxu0 0
    %2633 = vmatprep.subr.bf16.mxu0 0
    %2634 = vmatpush1.bf16.xpose.msra.mxu0 0
    %2635 = vmatprep.subr.bf16.mxu0 0
    %2636 = vmatpush1.bf16.xpose.msra.mxu0 0
    %2637 = vmatprep.subr.bf16.mxu0 0
    %2638 = vmatpush1.bf16.xpose.msra.mxu0 0
    %2639 = vmatprep.subr.bf16.mxu0 0
    %2640 = vmatpush1.bf16.xpose.msra.mxu0 0
    %2641 = vmatprep.subr.bf16.mxu0 0
    %2642 = vmatpush1.bf16.xpose.msra.mxu0 0
    %2643 = vmatprep.subr.bf16.mxu0 0
    %2644 = vmatpush1.bf16.xpose.msra.mxu0 0
    %2645 = vmatprep.subr.bf16.mxu0 0
    %2646 = vmatpush1.bf16.xpose.msra.mxu0 0
    %2647 = vmatprep.mubr.bf16.mxu0 %v472
    %2648 = vmatmul.mubr.bf16.gmra.mrb[0].mxu0 %v458
    %v2649 = vpop.f32.mrb[0].mxu0
    %v2650 = vadd.f32 %v2610, %v2649
    %v2651 = vpop.f32.mrb[0].mxu0
    %v2652 = vpop.f32.mrb[0].mxu0
    %v2653 = vpop.f32.mrb[0].mxu0
    %2654 = vdwg.mxu0
    %2655 = vmatprep.subr.bf16.mxu0 %v1526
    %2656 = vmatpush1.bf16.xpose.msra.mxu0 %v1525
    %2657 = vmatprep.subr.bf16.mxu0 0
    %2658 = vmatpush1.bf16.xpose.msra.mxu0 0
    %2659 = vmatprep.subr.bf16.mxu0 0
    %2660 = vmatpush1.bf16.xpose.msra.mxu0 0
    %2661 = vmatprep.subr.bf16.mxu0 0
    %2662 = vmatpush1.bf16.xpose.msra.mxu0 0
    %2663 = vmatprep.subr.bf16.mxu0 0
    %2664 = vmatpush1.bf16.xpose.msra.mxu0 0
    %2665 = vmatprep.subr.bf16.mxu0 0
    %2666 = vmatpush1.bf16.xpose.msra.mxu0 0
    %2667 = vmatprep.subr.bf16.mxu0 0
    %2668 = vmatpush1.bf16.xpose.msra.mxu0 0
    %2669 = vmatprep.subr.bf16.mxu0 0
    %2670 = vmatpush1.bf16.xpose.msra.mxu0 0
    %2671 = vmatprep.subr.bf16.mxu0 0
    %2672 = vmatpush1.bf16.xpose.msra.mxu0 0
    %2673 = vmatprep.subr.bf16.mxu0 0
    %2674 = vmatpush1.bf16.xpose.msra.mxu0 0
    %2675 = vmatprep.subr.bf16.mxu0 0
    %2676 = vmatpush1.bf16.xpose.msra.mxu0 0
    %2677 = vmatprep.subr.bf16.mxu0 0
    %2678 = vmatpush1.bf16.xpose.msra.mxu0 0
    %2679 = vmatprep.subr.bf16.mxu0 0
    %2680 = vmatpush1.bf16.xpose.msra.mxu0 0
    %2681 = vmatprep.subr.bf16.mxu0 0
    %2682 = vmatpush1.bf16.xpose.msra.mxu0 0
    %2683 = vmatprep.subr.bf16.mxu0 0
    %2684 = vmatpush1.bf16.xpose.msra.mxu0 0
    %2685 = vmatprep.subr.bf16.mxu0 0
    %2686 = vmatpush1.bf16.xpose.msra.mxu0 0
    %2687 = vmatprep.mubr.bf16.mxu0 %v476
    %2688 = vmatmul.mubr.bf16.gmra.mrb[0].mxu0 %v474
    %v2689 = vpop.f32.mrb[0].mxu0
    %v2690 = vadd.f32 %v2650, %v2689
    %v2691 = vpop.f32.mrb[0].mxu0
    %v2692 = vpop.f32.mrb[0].mxu0
    %v2693 = vpop.f32.mrb[0].mxu0
    %2694 = vdwg.mxu0
    %2695 = vmatprep.subr.bf16.mxu0 %v1528
    %2696 = vmatpush1.bf16.xpose.msra.mxu0 %v1527
    %2697 = vmatprep.subr.bf16.mxu0 0
    %2698 = vmatpush1.bf16.xpose.msra.mxu0 0
    %2699 = vmatprep.subr.bf16.mxu0 0
    %2700 = vmatpush1.bf16.xpose.msra.mxu0 0
    %2701 = vmatprep.subr.bf16.mxu0 0
    %2702 = vmatpush1.bf16.xpose.msra.mxu0 0
    %2703 = vmatprep.subr.bf16.mxu0 0
    %2704 = vmatpush1.bf16.xpose.msra.mxu0 0
    %2705 = vmatprep.subr.bf16.mxu0 0
    %2706 = vmatpush1.bf16.xpose.msra.mxu0 0
    %2707 = vmatprep.subr.bf16.mxu0 0
    %2708 = vmatpush1.bf16.xpose.msra.mxu0 0
    %2709 = vmatprep.subr.bf16.mxu0 0
    %2710 = vmatpush1.bf16.xpose.msra.mxu0 0
    %2711 = vmatprep.subr.bf16.mxu0 0
    %2712 = vmatpush1.bf16.xpose.msra.mxu0 0
    %2713 = vmatprep.subr.bf16.mxu0 0
    %2714 = vmatpush1.bf16.xpose.msra.mxu0 0
    %2715 = vmatprep.subr.bf16.mxu0 0
    %2716 = vmatpush1.bf16.xpose.msra.mxu0 0
    %2717 = vmatprep.subr.bf16.mxu0 0
    %2718 = vmatpush1.bf16.xpose.msra.mxu0 0
    %2719 = vmatprep.subr.bf16.mxu0 0
    %2720 = vmatpush1.bf16.xpose.msra.mxu0 0
    %2721 = vmatprep.subr.bf16.mxu0 0
    %2722 = vmatpush1.bf16.xpose.msra.mxu0 0
    %2723 = vmatprep.subr.bf16.mxu0 0
    %2724 = vmatpush1.bf16.xpose.msra.mxu0 0
    %2725 = vmatprep.subr.bf16.mxu0 0
    %2726 = vmatpush1.bf16.xpose.msra.mxu0 0
    %2727 = vmatprep.mubr.bf16.mxu0 %v514
    %2728 = vmatmul.mubr.bf16.gmra.mrb[0].mxu0 %v500
    %v2729 = vpop.f32.mrb[0].mxu0
    %v2730 = vadd.f32 %v2690, %v2729
    %v2731 = vpop.f32.mrb[0].mxu0
    %v2732 = vpop.f32.mrb[0].mxu0
    %v2733 = vpop.f32.mrb[0].mxu0
    %2734 = vdwg.mxu0
    %2735 = vmatprep.subr.bf16.mxu0 %v1530
    %2736 = vmatpush1.bf16.xpose.msra.mxu0 %v1529
    %2737 = vmatprep.subr.bf16.mxu0 0
    %2738 = vmatpush1.bf16.xpose.msra.mxu0 0
    %2739 = vmatprep.subr.bf16.mxu0 0
    %2740 = vmatpush1.bf16.xpose.msra.mxu0 0
    %2741 = vmatprep.subr.bf16.mxu0 0
    %2742 = vmatpush1.bf16.xpose.msra.mxu0 0
    %2743 = vmatprep.subr.bf16.mxu0 0
    %2744 = vmatpush1.bf16.xpose.msra.mxu0 0
    %2745 = vmatprep.subr.bf16.mxu0 0
    %2746 = vmatpush1.bf16.xpose.msra.mxu0 0
    %2747 = vmatprep.subr.bf16.mxu0 0
    %2748 = vmatpush1.bf16.xpose.msra.mxu0 0
    %2749 = vmatprep.subr.bf16.mxu0 0
    %2750 = vmatpush1.bf16.xpose.msra.mxu0 0
    %2751 = vmatprep.subr.bf16.mxu0 0
    %2752 = vmatpush1.bf16.xpose.msra.mxu0 0
    %2753 = vmatprep.subr.bf16.mxu0 0
    %2754 = vmatpush1.bf16.xpose.msra.mxu0 0
    %2755 = vmatprep.subr.bf16.mxu0 0
    %2756 = vmatpush1.bf16.xpose.msra.mxu0 0
    %2757 = vmatprep.subr.bf16.mxu0 0
    %2758 = vmatpush1.bf16.xpose.msra.mxu0 0
    %2759 = vmatprep.subr.bf16.mxu0 0
    %2760 = vmatpush1.bf16.xpose.msra.mxu0 0
    %2761 = vmatprep.subr.bf16.mxu0 0
    %2762 = vmatpush1.bf16.xpose.msra.mxu0 0
    %2763 = vmatprep.subr.bf16.mxu0 0
    %2764 = vmatpush1.bf16.xpose.msra.mxu0 0
    %2765 = vmatprep.subr.bf16.mxu0 0
    %2766 = vmatpush1.bf16.xpose.msra.mxu0 0
    %2767 = vmatprep.mubr.bf16.mxu0 %v524
    %2768 = vmatmul.mubr.bf16.gmra.mrb[0].mxu0 %v522
    %v2769 = vpop.f32.mrb[0].mxu0
    %v2770 = vadd.f32 %v2730, %v2769
    %v2771 = vpop.f32.mrb[0].mxu0
    %v2772 = vpop.f32.mrb[0].mxu0
    %v2773 = vpop.f32.mrb[0].mxu0
    %2774 = vdwg.mxu0
    %2775 = vmatprep.subr.bf16.mxu0 %v1532
    %2776 = vmatpush1.bf16.xpose.msra.mxu0 %v1531
    %2777 = vmatprep.subr.bf16.mxu0 0
    %2778 = vmatpush1.bf16.xpose.msra.mxu0 0
    %2779 = vmatprep.subr.bf16.mxu0 0
    %2780 = vmatpush1.bf16.xpose.msra.mxu0 0
    %2781 = vmatprep.subr.bf16.mxu0 0
    %2782 = vmatpush1.bf16.xpose.msra.mxu0 0
    %2783 = vmatprep.subr.bf16.mxu0 0
    %2784 = vmatpush1.bf16.xpose.msra.mxu0 0
    %2785 = vmatprep.subr.bf16.mxu0 0
    %2786 = vmatpush1.bf16.xpose.msra.mxu0 0
    %2787 = vmatprep.subr.bf16.mxu0 0
    %2788 = vmatpush1.bf16.xpose.msra.mxu0 0
    %2789 = vmatprep.subr.bf16.mxu0 0
    %2790 = vmatpush1.bf16.xpose.msra.mxu0 0
    %2791 = vmatprep.subr.bf16.mxu0 0
    %2792 = vmatpush1.bf16.xpose.msra.mxu0 0
    %2793 = vmatprep.subr.bf16.mxu0 0
    %2794 = vmatpush1.bf16.xpose.msra.mxu0 0
    %2795 = vmatprep.subr.bf16.mxu0 0
    %2796 = vmatpush1.bf16.xpose.msra.mxu0 0
    %2797 = vmatprep.subr.bf16.mxu0 0
    %2798 = vmatpush1.bf16.xpose.msra.mxu0 0
    %2799 = vmatprep.subr.bf16.mxu0 0
    %2800 = vmatpush1.bf16.xpose.msra.mxu0 0
    %2801 = vmatprep.subr.bf16.mxu0 0
    %2802 = vmatpush1.bf16.xpose.msra.mxu0 0
    %2803 = vmatprep.subr.bf16.mxu0 0
    %2804 = vmatpush1.bf16.xpose.msra.mxu0 0
    %2805 = vmatprep.subr.bf16.mxu0 0
    %2806 = vmatpush1.bf16.xpose.msra.mxu0 0
    %2807 = vmatprep.mubr.bf16.mxu0 %v521
    %2808 = vmatmul.mubr.bf16.gmra.mrb[0].mxu0 %v507
    %v2809 = vpop.f32.mrb[0].mxu0
    %v2810 = vadd.f32 %v2770, %v2809
    %v2811 = vpop.f32.mrb[0].mxu0
    %v2812 = vpop.f32.mrb[0].mxu0
    %v2813 = vpop.f32.mrb[0].mxu0
    %2814 = vdwg.mxu0
    %2815 = vmatprep.subr.bf16.mxu0 %v1534
    %2816 = vmatpush1.bf16.xpose.msra.mxu0 %v1533
    %2817 = vmatprep.subr.bf16.mxu0 0
    %2818 = vmatpush1.bf16.xpose.msra.mxu0 0
    %2819 = vmatprep.subr.bf16.mxu0 0
    %2820 = vmatpush1.bf16.xpose.msra.mxu0 0
    %2821 = vmatprep.subr.bf16.mxu0 0
    %2822 = vmatpush1.bf16.xpose.msra.mxu0 0
    %2823 = vmatprep.subr.bf16.mxu0 0
    %2824 = vmatpush1.bf16.xpose.msra.mxu0 0
    %2825 = vmatprep.subr.bf16.mxu0 0
    %2826 = vmatpush1.bf16.xpose.msra.mxu0 0
    %2827 = vmatprep.subr.bf16.mxu0 0
    %2828 = vmatpush1.bf16.xpose.msra.mxu0 0
    %2829 = vmatprep.subr.bf16.mxu0 0
    %2830 = vmatpush1.bf16.xpose.msra.mxu0 0
    %2831 = vmatprep.subr.bf16.mxu0 0
    %2832 = vmatpush1.bf16.xpose.msra.mxu0 0
    %2833 = vmatprep.subr.bf16.mxu0 0
    %2834 = vmatpush1.bf16.xpose.msra.mxu0 0
    %2835 = vmatprep.subr.bf16.mxu0 0
    %2836 = vmatpush1.bf16.xpose.msra.mxu0 0
    %2837 = vmatprep.subr.bf16.mxu0 0
    %2838 = vmatpush1.bf16.xpose.msra.mxu0 0
    %2839 = vmatprep.subr.bf16.mxu0 0
    %2840 = vmatpush1.bf16.xpose.msra.mxu0 0
    %2841 = vmatprep.subr.bf16.mxu0 0
    %2842 = vmatpush1.bf16.xpose.msra.mxu0 0
    %2843 = vmatprep.subr.bf16.mxu0 0
    %2844 = vmatpush1.bf16.xpose.msra.mxu0 0
    %2845 = vmatprep.subr.bf16.mxu0 0
    %2846 = vmatpush1.bf16.xpose.msra.mxu0 0
    %2847 = vmatprep.mubr.bf16.mxu0 %v525
    %2848 = vmatmul.mubr.bf16.gmra.mrb[0].mxu0 %v523
    %v2849 = vpop.f32.mrb[0].mxu0
    %v2850 = vadd.f32 %v2810, %v2849
    %v2851 = vpop.f32.mrb[0].mxu0
    %v2852 = vpop.f32.mrb[0].mxu0
    %v2853 = vpop.f32.mrb[0].mxu0
    %2854 = vdwg.mxu0
    %2855 = vmatprep.subr.bf16.mxu0 %v1536
    %2856 = vmatpush1.bf16.xpose.msra.mxu0 %v1535
    %2857 = vmatprep.subr.bf16.mxu0 0
    %2858 = vmatpush1.bf16.xpose.msra.mxu0 0
    %2859 = vmatprep.subr.bf16.mxu0 0
    %2860 = vmatpush1.bf16.xpose.msra.mxu0 0
    %2861 = vmatprep.subr.bf16.mxu0 0
    %2862 = vmatpush1.bf16.xpose.msra.mxu0 0
    %2863 = vmatprep.subr.bf16.mxu0 0
    %2864 = vmatpush1.bf16.xpose.msra.mxu0 0
    %2865 = vmatprep.subr.bf16.mxu0 0
    %2866 = vmatpush1.bf16.xpose.msra.mxu0 0
    %2867 = vmatprep.subr.bf16.mxu0 0
    %2868 = vmatpush1.bf16.xpose.msra.mxu0 0
    %2869 = vmatprep.subr.bf16.mxu0 0
    %2870 = vmatpush1.bf16.xpose.msra.mxu0 0
    %2871 = vmatprep.subr.bf16.mxu0 0
    %2872 = vmatpush1.bf16.xpose.msra.mxu0 0
    %2873 = vmatprep.subr.bf16.mxu0 0
    %2874 = vmatpush1.bf16.xpose.msra.mxu0 0
    %2875 = vmatprep.subr.bf16.mxu0 0
    %2876 = vmatpush1.bf16.xpose.msra.mxu0 0
    %2877 = vmatprep.subr.bf16.mxu0 0
    %2878 = vmatpush1.bf16.xpose.msra.mxu0 0
    %2879 = vmatprep.subr.bf16.mxu0 0
    %2880 = vmatpush1.bf16.xpose.msra.mxu0 0
    %2881 = vmatprep.subr.bf16.mxu0 0
    %2882 = vmatpush1.bf16.xpose.msra.mxu0 0
    %2883 = vmatprep.subr.bf16.mxu0 0
    %2884 = vmatpush1.bf16.xpose.msra.mxu0 0
    %2885 = vmatprep.subr.bf16.mxu0 0
    %2886 = vmatpush1.bf16.xpose.msra.mxu0 0
    %2887 = vmatprep.mubr.bf16.mxu0 %v563
    %2888 = vmatmul.mubr.bf16.gmra.mrb[0].mxu0 %v549
    %v2889 = vpop.f32.mrb[0].mxu0
    %v2890 = vadd.f32 %v2850, %v2889
    %v2891 = vpop.f32.mrb[0].mxu0
    %v2892 = vpop.f32.mrb[0].mxu0
    %v2893 = vpop.f32.mrb[0].mxu0
    %2894 = vdwg.mxu0
    %2895 = vmatprep.subr.bf16.mxu0 %v1538
    %2896 = vmatpush1.bf16.xpose.msra.mxu0 %v1537
    %2897 = vmatprep.subr.bf16.mxu0 0
    %2898 = vmatpush1.bf16.xpose.msra.mxu0 0
    %2899 = vmatprep.subr.bf16.mxu0 0
    %2900 = vmatpush1.bf16.xpose.msra.mxu0 0
    %2901 = vmatprep.subr.bf16.mxu0 0
    %2902 = vmatpush1.bf16.xpose.msra.mxu0 0
    %2903 = vmatprep.subr.bf16.mxu0 0
    %2904 = vmatpush1.bf16.xpose.msra.mxu0 0
    %2905 = vmatprep.subr.bf16.mxu0 0
    %2906 = vmatpush1.bf16.xpose.msra.mxu0 0
    %2907 = vmatprep.subr.bf16.mxu0 0
    %2908 = vmatpush1.bf16.xpose.msra.mxu0 0
    %2909 = vmatprep.subr.bf16.mxu0 0
    %2910 = vmatpush1.bf16.xpose.msra.mxu0 0
    %2911 = vmatprep.subr.bf16.mxu0 0
    %2912 = vmatpush1.bf16.xpose.msra.mxu0 0
    %2913 = vmatprep.subr.bf16.mxu0 0
    %2914 = vmatpush1.bf16.xpose.msra.mxu0 0
    %2915 = vmatprep.subr.bf16.mxu0 0
    %2916 = vmatpush1.bf16.xpose.msra.mxu0 0
    %2917 = vmatprep.subr.bf16.mxu0 0
    %2918 = vmatpush1.bf16.xpose.msra.mxu0 0
    %2919 = vmatprep.subr.bf16.mxu0 0
    %2920 = vmatpush1.bf16.xpose.msra.mxu0 0
    %2921 = vmatprep.subr.bf16.mxu0 0
    %2922 = vmatpush1.bf16.xpose.msra.mxu0 0
    %2923 = vmatprep.subr.bf16.mxu0 0
    %2924 = vmatpush1.bf16.xpose.msra.mxu0 0
    %2925 = vmatprep.subr.bf16.mxu0 0
    %2926 = vmatpush1.bf16.xpose.msra.mxu0 0
    %2927 = vmatprep.mubr.bf16.mxu0 %v573
    %2928 = vmatmul.mubr.bf16.gmra.mrb[0].mxu0 %v571
    %v2929 = vpop.f32.mrb[0].mxu0
    %v2930 = vadd.f32 %v2890, %v2929
    %v2931 = vpop.f32.mrb[0].mxu0
    %v2932 = vpop.f32.mrb[0].mxu0
    %v2933 = vpop.f32.mrb[0].mxu0
    %2934 = vdwg.mxu0
    %2935 = vmatprep.subr.bf16.mxu0 %v1540
    %2936 = vmatpush1.bf16.xpose.msra.mxu0 %v1539
    %2937 = vmatprep.subr.bf16.mxu0 0
    %2938 = vmatpush1.bf16.xpose.msra.mxu0 0
    %2939 = vmatprep.subr.bf16.mxu0 0
    %2940 = vmatpush1.bf16.xpose.msra.mxu0 0
    %2941 = vmatprep.subr.bf16.mxu0 0
    %2942 = vmatpush1.bf16.xpose.msra.mxu0 0
    %2943 = vmatprep.subr.bf16.mxu0 0
    %2944 = vmatpush1.bf16.xpose.msra.mxu0 0
    %2945 = vmatprep.subr.bf16.mxu0 0
    %2946 = vmatpush1.bf16.xpose.msra.mxu0 0
    %2947 = vmatprep.subr.bf16.mxu0 0
    %2948 = vmatpush1.bf16.xpose.msra.mxu0 0
    %2949 = vmatprep.subr.bf16.mxu0 0
    %2950 = vmatpush1.bf16.xpose.msra.mxu0 0
    %2951 = vmatprep.subr.bf16.mxu0 0
    %2952 = vmatpush1.bf16.xpose.msra.mxu0 0
    %2953 = vmatprep.subr.bf16.mxu0 0
    %2954 = vmatpush1.bf16.xpose.msra.mxu0 0
    %2955 = vmatprep.subr.bf16.mxu0 0
    %2956 = vmatpush1.bf16.xpose.msra.mxu0 0
    %2957 = vmatprep.subr.bf16.mxu0 0
    %2958 = vmatpush1.bf16.xpose.msra.mxu0 0
    %2959 = vmatprep.subr.bf16.mxu0 0
    %2960 = vmatpush1.bf16.xpose.msra.mxu0 0
    %2961 = vmatprep.subr.bf16.mxu0 0
    %2962 = vmatpush1.bf16.xpose.msra.mxu0 0
    %2963 = vmatprep.subr.bf16.mxu0 0
    %2964 = vmatpush1.bf16.xpose.msra.mxu0 0
    %2965 = vmatprep.subr.bf16.mxu0 0
    %2966 = vmatpush1.bf16.xpose.msra.mxu0 0
    %2967 = vmatprep.mubr.bf16.mxu0 %v570
    %2968 = vmatmul.mubr.bf16.gmra.mrb[0].mxu0 %v556
    %v2969 = vpop.f32.mrb[0].mxu0
    %v2970 = vadd.f32 %v2930, %v2969
    %v2971 = vpop.f32.mrb[0].mxu0
    %v2972 = vpop.f32.mrb[0].mxu0
    %v2973 = vpop.f32.mrb[0].mxu0
    %2974 = vdwg.mxu0
    %2975 = vmatprep.subr.bf16.mxu0 %v1542
    %2976 = vmatpush1.bf16.xpose.msra.mxu0 %v1541
    %2977 = vmatprep.subr.bf16.mxu0 0
    %2978 = vmatpush1.bf16.xpose.msra.mxu0 0
    %2979 = vmatprep.subr.bf16.mxu0 0
    %2980 = vmatpush1.bf16.xpose.msra.mxu0 0
    %2981 = vmatprep.subr.bf16.mxu0 0
    %2982 = vmatpush1.bf16.xpose.msra.mxu0 0
    %2983 = vmatprep.subr.bf16.mxu0 0
    %2984 = vmatpush1.bf16.xpose.msra.mxu0 0
    %2985 = vmatprep.subr.bf16.mxu0 0
    %2986 = vmatpush1.bf16.xpose.msra.mxu0 0
    %2987 = vmatprep.subr.bf16.mxu0 0
    %2988 = vmatpush1.bf16.xpose.msra.mxu0 0
    %2989 = vmatprep.subr.bf16.mxu0 0
    %2990 = vmatpush1.bf16.xpose.msra.mxu0 0
    %2991 = vmatprep.subr.bf16.mxu0 0
    %2992 = vmatpush1.bf16.xpose.msra.mxu0 0
    %2993 = vmatprep.subr.bf16.mxu0 0
    %2994 = vmatpush1.bf16.xpose.msra.mxu0 0
    %2995 = vmatprep.subr.bf16.mxu0 0
    %2996 = vmatpush1.bf16.xpose.msra.mxu0 0
    %2997 = vmatprep.subr.bf16.mxu0 0
    %2998 = vmatpush1.bf16.xpose.msra.mxu0 0
    %2999 = vmatprep.subr.bf16.mxu0 0
    %3000 = vmatpush1.bf16.xpose.msra.mxu0 0
    %3001 = vmatprep.subr.bf16.mxu0 0
    %3002 = vmatpush1.bf16.xpose.msra.mxu0 0
    %3003 = vmatprep.subr.bf16.mxu0 0
    %3004 = vmatpush1.bf16.xpose.msra.mxu0 0
    %3005 = vmatprep.subr.bf16.mxu0 0
    %3006 = vmatpush1.bf16.xpose.msra.mxu0 0
    %3007 = vmatprep.mubr.bf16.mxu0 %v574
    %3008 = vmatmul.mubr.bf16.gmra.mrb[0].mxu0 %v572
    %v3009 = vpop.f32.mrb[0].mxu0
    %v3010 = vadd.f32 %v2970, %v3009
    %v3011 = vpop.f32.mrb[0].mxu0
    %v3012 = vpop.f32.mrb[0].mxu0
    %v3013 = vpop.f32.mrb[0].mxu0
    %3014 = vdwg.mxu0
    %3015 = vmatprep.subr.bf16.mxu0 %v1544
    %3016 = vmatpush1.bf16.xpose.msra.mxu0 %v1543
    %3017 = vmatprep.subr.bf16.mxu0 0
    %3018 = vmatpush1.bf16.xpose.msra.mxu0 0
    %3019 = vmatprep.subr.bf16.mxu0 0
    %3020 = vmatpush1.bf16.xpose.msra.mxu0 0
    %3021 = vmatprep.subr.bf16.mxu0 0
    %3022 = vmatpush1.bf16.xpose.msra.mxu0 0
    %3023 = vmatprep.subr.bf16.mxu0 0
    %3024 = vmatpush1.bf16.xpose.msra.mxu0 0
    %3025 = vmatprep.subr.bf16.mxu0 0
    %3026 = vmatpush1.bf16.xpose.msra.mxu0 0
    %3027 = vmatprep.subr.bf16.mxu0 0
    %3028 = vmatpush1.bf16.xpose.msra.mxu0 0
    %3029 = vmatprep.subr.bf16.mxu0 0
    %3030 = vmatpush1.bf16.xpose.msra.mxu0 0
    %3031 = vmatprep.subr.bf16.mxu0 0
    %3032 = vmatpush1.bf16.xpose.msra.mxu0 0
    %3033 = vmatprep.subr.bf16.mxu0 0
    %3034 = vmatpush1.bf16.xpose.msra.mxu0 0
    %3035 = vmatprep.subr.bf16.mxu0 0
    %3036 = vmatpush1.bf16.xpose.msra.mxu0 0
    %3037 = vmatprep.subr.bf16.mxu0 0
    %3038 = vmatpush1.bf16.xpose.msra.mxu0 0
    %3039 = vmatprep.subr.bf16.mxu0 0
    %3040 = vmatpush1.bf16.xpose.msra.mxu0 0
    %3041 = vmatprep.subr.bf16.mxu0 0
    %3042 = vmatpush1.bf16.xpose.msra.mxu0 0
    %3043 = vmatprep.subr.bf16.mxu0 0
    %3044 = vmatpush1.bf16.xpose.msra.mxu0 0
    %3045 = vmatprep.subr.bf16.mxu0 0
    %3046 = vmatpush1.bf16.xpose.msra.mxu0 0
    %3047 = vmatprep.mubr.bf16.mxu0 %v612
    %3048 = vmatmul.mubr.bf16.gmra.mrb[0].mxu0 %v598
    %v3049 = vpop.f32.mrb[0].mxu0
    %v3050 = vadd.f32 %v3010, %v3049
    %v3051 = vpop.f32.mrb[0].mxu0
    %v3052 = vpop.f32.mrb[0].mxu0
    %v3053 = vpop.f32.mrb[0].mxu0
    %3054 = vdwg.mxu0
    %3055 = vmatprep.subr.bf16.mxu0 %v1546
    %3056 = vmatpush1.bf16.xpose.msra.mxu0 %v1545
    %3057 = vmatprep.subr.bf16.mxu0 0
    %3058 = vmatpush1.bf16.xpose.msra.mxu0 0
    %3059 = vmatprep.subr.bf16.mxu0 0
    %3060 = vmatpush1.bf16.xpose.msra.mxu0 0
    %3061 = vmatprep.subr.bf16.mxu0 0
    %3062 = vmatpush1.bf16.xpose.msra.mxu0 0
    %3063 = vmatprep.subr.bf16.mxu0 0
    %3064 = vmatpush1.bf16.xpose.msra.mxu0 0
    %3065 = vmatprep.subr.bf16.mxu0 0
    %3066 = vmatpush1.bf16.xpose.msra.mxu0 0
    %3067 = vmatprep.subr.bf16.mxu0 0
    %3068 = vmatpush1.bf16.xpose.msra.mxu0 0
    %3069 = vmatprep.subr.bf16.mxu0 0
    %3070 = vmatpush1.bf16.xpose.msra.mxu0 0
    %3071 = vmatprep.subr.bf16.mxu0 0
    %3072 = vmatpush1.bf16.xpose.msra.mxu0 0
    %3073 = vmatprep.subr.bf16.mxu0 0
    %3074 = vmatpush1.bf16.xpose.msra.mxu0 0
    %3075 = vmatprep.subr.bf16.mxu0 0
    %3076 = vmatpush1.bf16.xpose.msra.mxu0 0
    %3077 = vmatprep.subr.bf16.mxu0 0
    %3078 = vmatpush1.bf16.xpose.msra.mxu0 0
    %3079 = vmatprep.subr.bf16.mxu0 0
    %3080 = vmatpush1.bf16.xpose.msra.mxu0 0
    %3081 = vmatprep.subr.bf16.mxu0 0
    %3082 = vmatpush1.bf16.xpose.msra.mxu0 0
    %3083 = vmatprep.subr.bf16.mxu0 0
    %3084 = vmatpush1.bf16.xpose.msra.mxu0 0
    %3085 = vmatprep.subr.bf16.mxu0 0
    %3086 = vmatpush1.bf16.xpose.msra.mxu0 0
    %3087 = vmatprep.mubr.bf16.mxu0 %v622
    %3088 = vmatmul.mubr.bf16.gmra.mrb[0].mxu0 %v620
    %v3089 = vpop.f32.mrb[0].mxu0
    %v3090 = vadd.f32 %v3050, %v3089
    %v3091 = vpop.f32.mrb[0].mxu0
    %v3092 = vpop.f32.mrb[0].mxu0
    %v3093 = vpop.f32.mrb[0].mxu0
    %3094 = vdwg.mxu0
    %3095 = vmatprep.subr.bf16.mxu0 %v1548
    %3096 = vmatpush1.bf16.xpose.msra.mxu0 %v1547
    %3097 = vmatprep.subr.bf16.mxu0 0
    %3098 = vmatpush1.bf16.xpose.msra.mxu0 0
    %3099 = vmatprep.subr.bf16.mxu0 0
    %3100 = vmatpush1.bf16.xpose.msra.mxu0 0
    %3101 = vmatprep.subr.bf16.mxu0 0
    %3102 = vmatpush1.bf16.xpose.msra.mxu0 0
    %3103 = vmatprep.subr.bf16.mxu0 0
    %3104 = vmatpush1.bf16.xpose.msra.mxu0 0
    %3105 = vmatprep.subr.bf16.mxu0 0
    %3106 = vmatpush1.bf16.xpose.msra.mxu0 0
    %3107 = vmatprep.subr.bf16.mxu0 0
    %3108 = vmatpush1.bf16.xpose.msra.mxu0 0
    %3109 = vmatprep.subr.bf16.mxu0 0
    %3110 = vmatpush1.bf16.xpose.msra.mxu0 0
    %3111 = vmatprep.subr.bf16.mxu0 0
    %3112 = vmatpush1.bf16.xpose.msra.mxu0 0
    %3113 = vmatprep.subr.bf16.mxu0 0
    %3114 = vmatpush1.bf16.xpose.msra.mxu0 0
    %3115 = vmatprep.subr.bf16.mxu0 0
    %3116 = vmatpush1.bf16.xpose.msra.mxu0 0
    %3117 = vmatprep.subr.bf16.mxu0 0
    %3118 = vmatpush1.bf16.xpose.msra.mxu0 0
    %3119 = vmatprep.subr.bf16.mxu0 0
    %3120 = vmatpush1.bf16.xpose.msra.mxu0 0
    %3121 = vmatprep.subr.bf16.mxu0 0
    %3122 = vmatpush1.bf16.xpose.msra.mxu0 0
    %3123 = vmatprep.subr.bf16.mxu0 0
    %3124 = vmatpush1.bf16.xpose.msra.mxu0 0
    %3125 = vmatprep.subr.bf16.mxu0 0
    %3126 = vmatpush1.bf16.xpose.msra.mxu0 0
    %3127 = vmatprep.mubr.bf16.mxu0 %v619
    %3128 = vmatmul.mubr.bf16.gmra.mrb[0].mxu0 %v605
    %v3129 = vpop.f32.mrb[0].mxu0
    %v3130 = vadd.f32 %v3090, %v3129
    %v3131 = vpop.f32.mrb[0].mxu0
    %v3132 = vpop.f32.mrb[0].mxu0
    %v3133 = vpop.f32.mrb[0].mxu0
    %3134 = vdwg.mxu0
    %3135 = vmatprep.subr.bf16.mxu0 %v1550
    %3136 = vmatpush1.bf16.xpose.msra.mxu0 %v1549
    %3137 = vmatprep.subr.bf16.mxu0 0
    %3138 = vmatpush1.bf16.xpose.msra.mxu0 0
    %3139 = vmatprep.subr.bf16.mxu0 0
    %3140 = vmatpush1.bf16.xpose.msra.mxu0 0
    %3141 = vmatprep.subr.bf16.mxu0 0
    %3142 = vmatpush1.bf16.xpose.msra.mxu0 0
    %3143 = vmatprep.subr.bf16.mxu0 0
    %3144 = vmatpush1.bf16.xpose.msra.mxu0 0
    %3145 = vmatprep.subr.bf16.mxu0 0
    %3146 = vmatpush1.bf16.xpose.msra.mxu0 0
    %3147 = vmatprep.subr.bf16.mxu0 0
    %3148 = vmatpush1.bf16.xpose.msra.mxu0 0
    %3149 = vmatprep.subr.bf16.mxu0 0
    %3150 = vmatpush1.bf16.xpose.msra.mxu0 0
    %3151 = vmatprep.subr.bf16.mxu0 0
    %3152 = vmatpush1.bf16.xpose.msra.mxu0 0
    %3153 = vmatprep.subr.bf16.mxu0 0
    %3154 = vmatpush1.bf16.xpose.msra.mxu0 0
    %3155 = vmatprep.subr.bf16.mxu0 0
    %3156 = vmatpush1.bf16.xpose.msra.mxu0 0
    %3157 = vmatprep.subr.bf16.mxu0 0
    %3158 = vmatpush1.bf16.xpose.msra.mxu0 0
    %3159 = vmatprep.subr.bf16.mxu0 0
    %3160 = vmatpush1.bf16.xpose.msra.mxu0 0
    %3161 = vmatprep.subr.bf16.mxu0 0
    %3162 = vmatpush1.bf16.xpose.msra.mxu0 0
    %3163 = vmatprep.subr.bf16.mxu0 0
    %3164 = vmatpush1.bf16.xpose.msra.mxu0 0
    %3165 = vmatprep.subr.bf16.mxu0 0
    %3166 = vmatpush1.bf16.xpose.msra.mxu0 0
    %3167 = vmatprep.mubr.bf16.mxu0 %v623
    %3168 = vmatmul.mubr.bf16.gmra.mrb[0].mxu0 %v621
    %v3169 = vpop.f32.mrb[0].mxu0
    %v3170 = vadd.f32 %v3130, %v3169
    %v3171 = vpop.f32.mrb[0].mxu0
    %v3172 = vpop.f32.mrb[0].mxu0
    %v3173 = vpop.f32.mrb[0].mxu0
    %3174 = vdwg.mxu0
    %3175 = vmatprep.subr.bf16.mxu0 %v1552
    %3176 = vmatpush1.bf16.xpose.msra.mxu0 %v1551
    %3177 = vmatprep.subr.bf16.mxu0 0
    %3178 = vmatpush1.bf16.xpose.msra.mxu0 0
    %3179 = vmatprep.subr.bf16.mxu0 0
    %3180 = vmatpush1.bf16.xpose.msra.mxu0 0
    %3181 = vmatprep.subr.bf16.mxu0 0
    %3182 = vmatpush1.bf16.xpose.msra.mxu0 0
    %3183 = vmatprep.subr.bf16.mxu0 0
    %3184 = vmatpush1.bf16.xpose.msra.mxu0 0
    %3185 = vmatprep.subr.bf16.mxu0 0
    %3186 = vmatpush1.bf16.xpose.msra.mxu0 0
    %3187 = vmatprep.subr.bf16.mxu0 0
    %3188 = vmatpush1.bf16.xpose.msra.mxu0 0
    %3189 = vmatprep.subr.bf16.mxu0 0
    %3190 = vmatpush1.bf16.xpose.msra.mxu0 0
    %3191 = vmatprep.subr.bf16.mxu0 0
    %3192 = vmatpush1.bf16.xpose.msra.mxu0 0
    %3193 = vmatprep.subr.bf16.mxu0 0
    %3194 = vmatpush1.bf16.xpose.msra.mxu0 0
    %3195 = vmatprep.subr.bf16.mxu0 0
    %3196 = vmatpush1.bf16.xpose.msra.mxu0 0
    %3197 = vmatprep.subr.bf16.mxu0 0
    %3198 = vmatpush1.bf16.xpose.msra.mxu0 0
    %3199 = vmatprep.subr.bf16.mxu0 0
    %3200 = vmatpush1.bf16.xpose.msra.mxu0 0
    %3201 = vmatprep.subr.bf16.mxu0 0
    %3202 = vmatpush1.bf16.xpose.msra.mxu0 0
    %3203 = vmatprep.subr.bf16.mxu0 0
    %3204 = vmatpush1.bf16.xpose.msra.mxu0 0
    %3205 = vmatprep.subr.bf16.mxu0 0
    %3206 = vmatpush1.bf16.xpose.msra.mxu0 0
    %3207 = vmatprep.mubr.bf16.mxu0 %v661
    %3208 = vmatmul.mubr.bf16.gmra.mrb[0].mxu0 %v647
    %v3209 = vpop.f32.mrb[0].mxu0
    %v3210 = vadd.f32 %v3170, %v3209
    %v3211 = vpop.f32.mrb[0].mxu0
    %v3212 = vpop.f32.mrb[0].mxu0
    %v3213 = vpop.f32.mrb[0].mxu0
    %3214 = vdwg.mxu0
    %3215 = vmatprep.subr.bf16.mxu0 %v1554
    %3216 = vmatpush1.bf16.xpose.msra.mxu0 %v1553
    %3217 = vmatprep.subr.bf16.mxu0 0
    %3218 = vmatpush1.bf16.xpose.msra.mxu0 0
    %3219 = vmatprep.subr.bf16.mxu0 0
    %3220 = vmatpush1.bf16.xpose.msra.mxu0 0
    %3221 = vmatprep.subr.bf16.mxu0 0
    %3222 = vmatpush1.bf16.xpose.msra.mxu0 0
    %3223 = vmatprep.subr.bf16.mxu0 0
    %3224 = vmatpush1.bf16.xpose.msra.mxu0 0
    %3225 = vmatprep.subr.bf16.mxu0 0
    %3226 = vmatpush1.bf16.xpose.msra.mxu0 0
    %3227 = vmatprep.subr.bf16.mxu0 0
    %3228 = vmatpush1.bf16.xpose.msra.mxu0 0
    %3229 = vmatprep.subr.bf16.mxu0 0
    %3230 = vmatpush1.bf16.xpose.msra.mxu0 0
    %3231 = vmatprep.subr.bf16.mxu0 0
    %3232 = vmatpush1.bf16.xpose.msra.mxu0 0
    %3233 = vmatprep.subr.bf16.mxu0 0
    %3234 = vmatpush1.bf16.xpose.msra.mxu0 0
    %3235 = vmatprep.subr.bf16.mxu0 0
    %3236 = vmatpush1.bf16.xpose.msra.mxu0 0
    %3237 = vmatprep.subr.bf16.mxu0 0
    %3238 = vmatpush1.bf16.xpose.msra.mxu0 0
    %3239 = vmatprep.subr.bf16.mxu0 0
    %3240 = vmatpush1.bf16.xpose.msra.mxu0 0
    %3241 = vmatprep.subr.bf16.mxu0 0
    %3242 = vmatpush1.bf16.xpose.msra.mxu0 0
    %3243 = vmatprep.subr.bf16.mxu0 0
    %3244 = vmatpush1.bf16.xpose.msra.mxu0 0
    %3245 = vmatprep.subr.bf16.mxu0 0
    %3246 = vmatpush1.bf16.xpose.msra.mxu0 0
    %3247 = vmatprep.mubr.bf16.mxu0 %v671
    %3248 = vmatmul.mubr.bf16.gmra.mrb[0].mxu0 %v669
    %v3249 = vpop.f32.mrb[0].mxu0
    %v3250 = vadd.f32 %v3210, %v3249
    %v3251 = vpop.f32.mrb[0].mxu0
    %v3252 = vpop.f32.mrb[0].mxu0
    %v3253 = vpop.f32.mrb[0].mxu0
    %3254 = vdwg.mxu0
    %3255 = vmatprep.subr.bf16.mxu0 %v1556
    %3256 = vmatpush1.bf16.xpose.msra.mxu0 %v1555
    %3257 = vmatprep.subr.bf16.mxu0 0
    %3258 = vmatpush1.bf16.xpose.msra.mxu0 0
    %3259 = vmatprep.subr.bf16.mxu0 0
    %3260 = vmatpush1.bf16.xpose.msra.mxu0 0
    %3261 = vmatprep.subr.bf16.mxu0 0
    %3262 = vmatpush1.bf16.xpose.msra.mxu0 0
    %3263 = vmatprep.subr.bf16.mxu0 0
    %3264 = vmatpush1.bf16.xpose.msra.mxu0 0
    %3265 = vmatprep.subr.bf16.mxu0 0
    %3266 = vmatpush1.bf16.xpose.msra.mxu0 0
    %3267 = vmatprep.subr.bf16.mxu0 0
    %3268 = vmatpush1.bf16.xpose.msra.mxu0 0
    %3269 = vmatprep.subr.bf16.mxu0 0
    %3270 = vmatpush1.bf16.xpose.msra.mxu0 0
    %3271 = vmatprep.subr.bf16.mxu0 0
    %3272 = vmatpush1.bf16.xpose.msra.mxu0 0
    %3273 = vmatprep.subr.bf16.mxu0 0
    %3274 = vmatpush1.bf16.xpose.msra.mxu0 0
    %3275 = vmatprep.subr.bf16.mxu0 0
    %3276 = vmatpush1.bf16.xpose.msra.mxu0 0
    %3277 = vmatprep.subr.bf16.mxu0 0
    %3278 = vmatpush1.bf16.xpose.msra.mxu0 0
    %3279 = vmatprep.subr.bf16.mxu0 0
    %3280 = vmatpush1.bf16.xpose.msra.mxu0 0
    %3281 = vmatprep.subr.bf16.mxu0 0
    %3282 = vmatpush1.bf16.xpose.msra.mxu0 0
    %3283 = vmatprep.subr.bf16.mxu0 0
    %3284 = vmatpush1.bf16.xpose.msra.mxu0 0
    %3285 = vmatprep.subr.bf16.mxu0 0
    %3286 = vmatpush1.bf16.xpose.msra.mxu0 0
    %3287 = vmatprep.mubr.bf16.mxu0 %v668
    %3288 = vmatmul.mubr.bf16.gmra.mrb[0].mxu0 %v654
    %v3289 = vpop.f32.mrb[0].mxu0
    %v3290 = vadd.f32 %v3250, %v3289
    %v3291 = vpop.f32.mrb[0].mxu0
    %v3292 = vpop.f32.mrb[0].mxu0
    %v3293 = vpop.f32.mrb[0].mxu0
    %3294 = vdwg.mxu0
    %3295 = vmatprep.subr.bf16.mxu0 %v1558
    %3296 = vmatpush1.bf16.xpose.msra.mxu0 %v1557
    %3297 = vmatprep.subr.bf16.mxu0 0
    %3298 = vmatpush1.bf16.xpose.msra.mxu0 0
    %3299 = vmatprep.subr.bf16.mxu0 0
    %3300 = vmatpush1.bf16.xpose.msra.mxu0 0
    %3301 = vmatprep.subr.bf16.mxu0 0
    %3302 = vmatpush1.bf16.xpose.msra.mxu0 0
    %3303 = vmatprep.subr.bf16.mxu0 0
    %3304 = vmatpush1.bf16.xpose.msra.mxu0 0
    %3305 = vmatprep.subr.bf16.mxu0 0
    %3306 = vmatpush1.bf16.xpose.msra.mxu0 0
    %3307 = vmatprep.subr.bf16.mxu0 0
    %3308 = vmatpush1.bf16.xpose.msra.mxu0 0
    %3309 = vmatprep.subr.bf16.mxu0 0
    %3310 = vmatpush1.bf16.xpose.msra.mxu0 0
    %3311 = vmatprep.subr.bf16.mxu0 0
    %3312 = vmatpush1.bf16.xpose.msra.mxu0 0
    %3313 = vmatprep.subr.bf16.mxu0 0
    %3314 = vmatpush1.bf16.xpose.msra.mxu0 0
    %3315 = vmatprep.subr.bf16.mxu0 0
    %3316 = vmatpush1.bf16.xpose.msra.mxu0 0
    %3317 = vmatprep.subr.bf16.mxu0 0
    %3318 = vmatpush1.bf16.xpose.msra.mxu0 0
    %3319 = vmatprep.subr.bf16.mxu0 0
    %3320 = vmatpush1.bf16.xpose.msra.mxu0 0
    %3321 = vmatprep.subr.bf16.mxu0 0
    %3322 = vmatpush1.bf16.xpose.msra.mxu0 0
    %3323 = vmatprep.subr.bf16.mxu0 0
    %3324 = vmatpush1.bf16.xpose.msra.mxu0 0
    %3325 = vmatprep.subr.bf16.mxu0 0
    %3326 = vmatpush1.bf16.xpose.msra.mxu0 0
    %3327 = vmatprep.mubr.bf16.mxu0 %v672
    %3328 = vmatmul.mubr.bf16.gmra.mrb[0].mxu0 %v670
    %v3329 = vpop.f32.mrb[0].mxu0
    %v3330 = vadd.f32 %v3290, %v3329
    %v3331 = vpop.f32.mrb[0].mxu0
    %v3332 = vpop.f32.mrb[0].mxu0
    %v3333 = vpop.f32.mrb[0].mxu0
    %3334 = vdwg.mxu0
    %3335 = vmatprep.subr.bf16.mxu0 %v1560
    %3336 = vmatpush1.bf16.xpose.msra.mxu0 %v1559
    %3337 = vmatprep.subr.bf16.mxu0 0
    %3338 = vmatpush1.bf16.xpose.msra.mxu0 0
    %3339 = vmatprep.subr.bf16.mxu0 0
    %3340 = vmatpush1.bf16.xpose.msra.mxu0 0
    %3341 = vmatprep.subr.bf16.mxu0 0
    %3342 = vmatpush1.bf16.xpose.msra.mxu0 0
    %3343 = vmatprep.subr.bf16.mxu0 0
    %3344 = vmatpush1.bf16.xpose.msra.mxu0 0
    %3345 = vmatprep.subr.bf16.mxu0 0
    %3346 = vmatpush1.bf16.xpose.msra.mxu0 0
    %3347 = vmatprep.subr.bf16.mxu0 0
    %3348 = vmatpush1.bf16.xpose.msra.mxu0 0
    %3349 = vmatprep.subr.bf16.mxu0 0
    %3350 = vmatpush1.bf16.xpose.msra.mxu0 0
    %3351 = vmatprep.subr.bf16.mxu0 0
    %3352 = vmatpush1.bf16.xpose.msra.mxu0 0
    %3353 = vmatprep.subr.bf16.mxu0 0
    %3354 = vmatpush1.bf16.xpose.msra.mxu0 0
    %3355 = vmatprep.subr.bf16.mxu0 0
    %3356 = vmatpush1.bf16.xpose.msra.mxu0 0
    %3357 = vmatprep.subr.bf16.mxu0 0
    %3358 = vmatpush1.bf16.xpose.msra.mxu0 0
    %3359 = vmatprep.subr.bf16.mxu0 0
    %3360 = vmatpush1.bf16.xpose.msra.mxu0 0
    %3361 = vmatprep.subr.bf16.mxu0 0
    %3362 = vmatpush1.bf16.xpose.msra.mxu0 0
    %3363 = vmatprep.subr.bf16.mxu0 0
    %3364 = vmatpush1.bf16.xpose.msra.mxu0 0
    %3365 = vmatprep.subr.bf16.mxu0 0
    %3366 = vmatpush1.bf16.xpose.msra.mxu0 0
    %3367 = vmatprep.mubr.bf16.mxu0 %v710
    %3368 = vmatmul.mubr.bf16.gmra.mrb[0].mxu0 %v696
    %v3369 = vpop.f32.mrb[0].mxu0
    %v3370 = vadd.f32 %v3330, %v3369
    %v3371 = vpop.f32.mrb[0].mxu0
    %v3372 = vpop.f32.mrb[0].mxu0
    %v3373 = vpop.f32.mrb[0].mxu0
    %3374 = vdwg.mxu0
    %3375 = vmatprep.subr.bf16.mxu0 %v1562
    %3376 = vmatpush1.bf16.xpose.msra.mxu0 %v1561
    %3377 = vmatprep.subr.bf16.mxu0 0
    %3378 = vmatpush1.bf16.xpose.msra.mxu0 0
    %3379 = vmatprep.subr.bf16.mxu0 0
    %3380 = vmatpush1.bf16.xpose.msra.mxu0 0
    %3381 = vmatprep.subr.bf16.mxu0 0
    %3382 = vmatpush1.bf16.xpose.msra.mxu0 0
    %3383 = vmatprep.subr.bf16.mxu0 0
    %3384 = vmatpush1.bf16.xpose.msra.mxu0 0
    %3385 = vmatprep.subr.bf16.mxu0 0
    %3386 = vmatpush1.bf16.xpose.msra.mxu0 0
    %3387 = vmatprep.subr.bf16.mxu0 0
    %3388 = vmatpush1.bf16.xpose.msra.mxu0 0
    %3389 = vmatprep.subr.bf16.mxu0 0
    %3390 = vmatpush1.bf16.xpose.msra.mxu0 0
    %3391 = vmatprep.subr.bf16.mxu0 0
    %3392 = vmatpush1.bf16.xpose.msra.mxu0 0
    %3393 = vmatprep.subr.bf16.mxu0 0
    %3394 = vmatpush1.bf16.xpose.msra.mxu0 0
    %3395 = vmatprep.subr.bf16.mxu0 0
    %3396 = vmatpush1.bf16.xpose.msra.mxu0 0
    %3397 = vmatprep.subr.bf16.mxu0 0
    %3398 = vmatpush1.bf16.xpose.msra.mxu0 0
    %3399 = vmatprep.subr.bf16.mxu0 0
    %3400 = vmatpush1.bf16.xpose.msra.mxu0 0
    %3401 = vmatprep.subr.bf16.mxu0 0
    %3402 = vmatpush1.bf16.xpose.msra.mxu0 0
    %3403 = vmatprep.subr.bf16.mxu0 0
    %3404 = vmatpush1.bf16.xpose.msra.mxu0 0
    %3405 = vmatprep.subr.bf16.mxu0 0
    %3406 = vmatpush1.bf16.xpose.msra.mxu0 0
    %3407 = vmatprep.mubr.bf16.mxu0 %v720
    %3408 = vmatmul.mubr.bf16.gmra.mrb[0].mxu0 %v718
    %v3409 = vpop.f32.mrb[0].mxu0
    %v3410 = vadd.f32 %v3370, %v3409
    %v3411 = vpop.f32.mrb[0].mxu0
    %v3412 = vpop.f32.mrb[0].mxu0
    %v3413 = vpop.f32.mrb[0].mxu0
    %3414 = vdwg.mxu0
    %3415 = vmatprep.subr.bf16.mxu0 %v1564
    %3416 = vmatpush1.bf16.xpose.msra.mxu0 %v1563
    %3417 = vmatprep.subr.bf16.mxu0 0
    %3418 = vmatpush1.bf16.xpose.msra.mxu0 0
    %3419 = vmatprep.subr.bf16.mxu0 0
    %3420 = vmatpush1.bf16.xpose.msra.mxu0 0
    %3421 = vmatprep.subr.bf16.mxu0 0
    %3422 = vmatpush1.bf16.xpose.msra.mxu0 0
    %3423 = vmatprep.subr.bf16.mxu0 0
    %3424 = vmatpush1.bf16.xpose.msra.mxu0 0
    %3425 = vmatprep.subr.bf16.mxu0 0
    %3426 = vmatpush1.bf16.xpose.msra.mxu0 0
    %3427 = vmatprep.subr.bf16.mxu0 0
    %3428 = vmatpush1.bf16.xpose.msra.mxu0 0
    %3429 = vmatprep.subr.bf16.mxu0 0
    %3430 = vmatpush1.bf16.xpose.msra.mxu0 0
    %3431 = vmatprep.subr.bf16.mxu0 0
    %3432 = vmatpush1.bf16.xpose.msra.mxu0 0
    %3433 = vmatprep.subr.bf16.mxu0 0
    %3434 = vmatpush1.bf16.xpose.msra.mxu0 0
    %3435 = vmatprep.subr.bf16.mxu0 0
    %3436 = vmatpush1.bf16.xpose.msra.mxu0 0
    %3437 = vmatprep.subr.bf16.mxu0 0
    %3438 = vmatpush1.bf16.xpose.msra.mxu0 0
    %3439 = vmatprep.subr.bf16.mxu0 0
    %3440 = vmatpush1.bf16.xpose.msra.mxu0 0
    %3441 = vmatprep.subr.bf16.mxu0 0
    %3442 = vmatpush1.bf16.xpose.msra.mxu0 0
    %3443 = vmatprep.subr.bf16.mxu0 0
    %3444 = vmatpush1.bf16.xpose.msra.mxu0 0
    %3445 = vmatprep.subr.bf16.mxu0 0
    %3446 = vmatpush1.bf16.xpose.msra.mxu0 0
    %3447 = vmatprep.mubr.bf16.mxu0 %v717
    %3448 = vmatmul.mubr.bf16.gmra.mrb[0].mxu0 %v703
    %v3449 = vpop.f32.mrb[0].mxu0
    %v3450 = vadd.f32 %v3410, %v3449
    %v3451 = vpop.f32.mrb[0].mxu0
    %v3452 = vpop.f32.mrb[0].mxu0
    %v3453 = vpop.f32.mrb[0].mxu0
    %3454 = vdwg.mxu0
    %3455 = vmatprep.subr.bf16.mxu0 %v1566
    %3456 = vmatpush1.bf16.xpose.msra.mxu0 %v1565
    %3457 = vmatprep.subr.bf16.mxu0 0
    %3458 = vmatpush1.bf16.xpose.msra.mxu0 0
    %3459 = vmatprep.subr.bf16.mxu0 0
    %3460 = vmatpush1.bf16.xpose.msra.mxu0 0
    %3461 = vmatprep.subr.bf16.mxu0 0
    %3462 = vmatpush1.bf16.xpose.msra.mxu0 0
    %3463 = vmatprep.subr.bf16.mxu0 0
    %3464 = vmatpush1.bf16.xpose.msra.mxu0 0
    %3465 = vmatprep.subr.bf16.mxu0 0
    %3466 = vmatpush1.bf16.xpose.msra.mxu0 0
    %3467 = vmatprep.subr.bf16.mxu0 0
    %3468 = vmatpush1.bf16.xpose.msra.mxu0 0
    %3469 = vmatprep.subr.bf16.mxu0 0
    %3470 = vmatpush1.bf16.xpose.msra.mxu0 0
    %3471 = vmatprep.subr.bf16.mxu0 0
    %3472 = vmatpush1.bf16.xpose.msra.mxu0 0
    %3473 = vmatprep.subr.bf16.mxu0 0
    %3474 = vmatpush1.bf16.xpose.msra.mxu0 0
    %3475 = vmatprep.subr.bf16.mxu0 0
    %3476 = vmatpush1.bf16.xpose.msra.mxu0 0
    %3477 = vmatprep.subr.bf16.mxu0 0
    %3478 = vmatpush1.bf16.xpose.msra.mxu0 0
    %3479 = vmatprep.subr.bf16.mxu0 0
    %3480 = vmatpush1.bf16.xpose.msra.mxu0 0
    %3481 = vmatprep.subr.bf16.mxu0 0
    %3482 = vmatpush1.bf16.xpose.msra.mxu0 0
    %3483 = vmatprep.subr.bf16.mxu0 0
    %3484 = vmatpush1.bf16.xpose.msra.mxu0 0
    %3485 = vmatprep.subr.bf16.mxu0 0
    %3486 = vmatpush1.bf16.xpose.msra.mxu0 0
    %3487 = vmatprep.mubr.bf16.mxu0 %v721
    %3488 = vmatmul.mubr.bf16.gmra.mrb[0].mxu0 %v719
    %v3489 = vpop.f32.mrb[0].mxu0
    %v3490 = vadd.f32 %v3450, %v3489
    %v3491 = vpop.f32.mrb[0].mxu0
    %v3492 = vpop.f32.mrb[0].mxu0
    %v3493 = vpop.f32.mrb[0].mxu0
    %3494 = vdwg.mxu0
    %3495 = vmatprep.subr.bf16.mxu0 %v1568
    %3496 = vmatpush1.bf16.xpose.msra.mxu0 %v1567
    %3497 = vmatprep.subr.bf16.mxu0 0
    %3498 = vmatpush1.bf16.xpose.msra.mxu0 0
    %3499 = vmatprep.subr.bf16.mxu0 0
    %3500 = vmatpush1.bf16.xpose.msra.mxu0 0
    %3501 = vmatprep.subr.bf16.mxu0 0
    %3502 = vmatpush1.bf16.xpose.msra.mxu0 0
    %3503 = vmatprep.subr.bf16.mxu0 0
    %3504 = vmatpush1.bf16.xpose.msra.mxu0 0
    %3505 = vmatprep.subr.bf16.mxu0 0
    %3506 = vmatpush1.bf16.xpose.msra.mxu0 0
    %3507 = vmatprep.subr.bf16.mxu0 0
    %3508 = vmatpush1.bf16.xpose.msra.mxu0 0
    %3509 = vmatprep.subr.bf16.mxu0 0
    %3510 = vmatpush1.bf16.xpose.msra.mxu0 0
    %3511 = vmatprep.subr.bf16.mxu0 0
    %3512 = vmatpush1.bf16.xpose.msra.mxu0 0
    %3513 = vmatprep.subr.bf16.mxu0 0
    %3514 = vmatpush1.bf16.xpose.msra.mxu0 0
    %3515 = vmatprep.subr.bf16.mxu0 0
    %3516 = vmatpush1.bf16.xpose.msra.mxu0 0
    %3517 = vmatprep.subr.bf16.mxu0 0
    %3518 = vmatpush1.bf16.xpose.msra.mxu0 0
    %3519 = vmatprep.subr.bf16.mxu0 0
    %3520 = vmatpush1.bf16.xpose.msra.mxu0 0
    %3521 = vmatprep.subr.bf16.mxu0 0
    %3522 = vmatpush1.bf16.xpose.msra.mxu0 0
    %3523 = vmatprep.subr.bf16.mxu0 0
    %3524 = vmatpush1.bf16.xpose.msra.mxu0 0
    %3525 = vmatprep.subr.bf16.mxu0 0
    %3526 = vmatpush1.bf16.xpose.msra.mxu0 0
    %3527 = vmatprep.mubr.bf16.mxu0 %v759
    %3528 = vmatmul.mubr.bf16.gmra.mrb[0].mxu0 %v745
    %v3529 = vpop.f32.mrb[0].mxu0
    %v3530 = vadd.f32 %v3490, %v3529
    %v3531 = vpop.f32.mrb[0].mxu0
    %v3532 = vpop.f32.mrb[0].mxu0
    %v3533 = vpop.f32.mrb[0].mxu0
    %3534 = vdwg.mxu0
    %3535 = vmatprep.subr.bf16.mxu0 %v1570
    %3536 = vmatpush1.bf16.xpose.msra.mxu0 %v1569
    %3537 = vmatprep.subr.bf16.mxu0 0
    %3538 = vmatpush1.bf16.xpose.msra.mxu0 0
    %3539 = vmatprep.subr.bf16.mxu0 0
    %3540 = vmatpush1.bf16.xpose.msra.mxu0 0
    %3541 = vmatprep.subr.bf16.mxu0 0
    %3542 = vmatpush1.bf16.xpose.msra.mxu0 0
    %3543 = vmatprep.subr.bf16.mxu0 0
    %3544 = vmatpush1.bf16.xpose.msra.mxu0 0
    %3545 = vmatprep.subr.bf16.mxu0 0
    %3546 = vmatpush1.bf16.xpose.msra.mxu0 0
    %3547 = vmatprep.subr.bf16.mxu0 0
    %3548 = vmatpush1.bf16.xpose.msra.mxu0 0
    %3549 = vmatprep.subr.bf16.mxu0 0
    %3550 = vmatpush1.bf16.xpose.msra.mxu0 0
    %3551 = vmatprep.subr.bf16.mxu0 0
    %3552 = vmatpush1.bf16.xpose.msra.mxu0 0
    %3553 = vmatprep.subr.bf16.mxu0 0
    %3554 = vmatpush1.bf16.xpose.msra.mxu0 0
    %3555 = vmatprep.subr.bf16.mxu0 0
    %3556 = vmatpush1.bf16.xpose.msra.mxu0 0
    %3557 = vmatprep.subr.bf16.mxu0 0
    %3558 = vmatpush1.bf16.xpose.msra.mxu0 0
    %3559 = vmatprep.subr.bf16.mxu0 0
    %3560 = vmatpush1.bf16.xpose.msra.mxu0 0
    %3561 = vmatprep.subr.bf16.mxu0 0
    %3562 = vmatpush1.bf16.xpose.msra.mxu0 0
    %3563 = vmatprep.subr.bf16.mxu0 0
    %3564 = vmatpush1.bf16.xpose.msra.mxu0 0
    %3565 = vmatprep.subr.bf16.mxu0 0
    %3566 = vmatpush1.bf16.xpose.msra.mxu0 0
    %3567 = vmatprep.mubr.bf16.mxu0 %v769
    %3568 = vmatmul.mubr.bf16.gmra.mrb[0].mxu0 %v767
    %v3569 = vpop.f32.mrb[0].mxu0
    %v3570 = vadd.f32 %v3530, %v3569
    %v3571 = vpop.f32.mrb[0].mxu0
    %v3572 = vpop.f32.mrb[0].mxu0
    %v3573 = vpop.f32.mrb[0].mxu0
    %3574 = vdwg.mxu0
    %3575 = vmatprep.subr.bf16.mxu0 %v1572
    %3576 = vmatpush1.bf16.xpose.msra.mxu0 %v1571
    %3577 = vmatprep.subr.bf16.mxu0 0
    %3578 = vmatpush1.bf16.xpose.msra.mxu0 0
    %3579 = vmatprep.subr.bf16.mxu0 0
    %3580 = vmatpush1.bf16.xpose.msra.mxu0 0
    %3581 = vmatprep.subr.bf16.mxu0 0
    %3582 = vmatpush1.bf16.xpose.msra.mxu0 0
    %3583 = vmatprep.subr.bf16.mxu0 0
    %3584 = vmatpush1.bf16.xpose.msra.mxu0 0
    %3585 = vmatprep.subr.bf16.mxu0 0
    %3586 = vmatpush1.bf16.xpose.msra.mxu0 0
    %3587 = vmatprep.subr.bf16.mxu0 0
    %3588 = vmatpush1.bf16.xpose.msra.mxu0 0
    %3589 = vmatprep.subr.bf16.mxu0 0
    %3590 = vmatpush1.bf16.xpose.msra.mxu0 0
    %3591 = vmatprep.subr.bf16.mxu0 0
    %3592 = vmatpush1.bf16.xpose.msra.mxu0 0
    %3593 = vmatprep.subr.bf16.mxu0 0
    %3594 = vmatpush1.bf16.xpose.msra.mxu0 0
    %3595 = vmatprep.subr.bf16.mxu0 0
    %3596 = vmatpush1.bf16.xpose.msra.mxu0 0
    %3597 = vmatprep.subr.bf16.mxu0 0
    %3598 = vmatpush1.bf16.xpose.msra.mxu0 0
    %3599 = vmatprep.subr.bf16.mxu0 0
    %3600 = vmatpush1.bf16.xpose.msra.mxu0 0
    %3601 = vmatprep.subr.bf16.mxu0 0
    %3602 = vmatpush1.bf16.xpose.msra.mxu0 0
    %3603 = vmatprep.subr.bf16.mxu0 0
    %3604 = vmatpush1.bf16.xpose.msra.mxu0 0
    %3605 = vmatprep.subr.bf16.mxu0 0
    %3606 = vmatpush1.bf16.xpose.msra.mxu0 0
    %3607 = vmatprep.mubr.bf16.mxu0 %v766
    %3608 = vmatmul.mubr.bf16.gmra.mrb[0].mxu0 %v752
    %v3609 = vpop.f32.mrb[0].mxu0
    %v3610 = vadd.f32 %v3570, %v3609
    %v3611 = vpop.f32.mrb[0].mxu0
    %v3612 = vpop.f32.mrb[0].mxu0
    %v3613 = vpop.f32.mrb[0].mxu0
    %3614 = vdwg.mxu0
    %3615 = vmatprep.subr.bf16.mxu0 %v1574
    %3616 = vmatpush1.bf16.xpose.msra.mxu0 %v1573
    %3617 = vmatprep.subr.bf16.mxu0 0
    %3618 = vmatpush1.bf16.xpose.msra.mxu0 0
    %3619 = vmatprep.subr.bf16.mxu0 0
    %3620 = vmatpush1.bf16.xpose.msra.mxu0 0
    %3621 = vmatprep.subr.bf16.mxu0 0
    %3622 = vmatpush1.bf16.xpose.msra.mxu0 0
    %3623 = vmatprep.subr.bf16.mxu0 0
    %3624 = vmatpush1.bf16.xpose.msra.mxu0 0
    %3625 = vmatprep.subr.bf16.mxu0 0
    %3626 = vmatpush1.bf16.xpose.msra.mxu0 0
    %3627 = vmatprep.subr.bf16.mxu0 0
    %3628 = vmatpush1.bf16.xpose.msra.mxu0 0
    %3629 = vmatprep.subr.bf16.mxu0 0
    %3630 = vmatpush1.bf16.xpose.msra.mxu0 0
    %3631 = vmatprep.subr.bf16.mxu0 0
    %3632 = vmatpush1.bf16.xpose.msra.mxu0 0
    %3633 = vmatprep.subr.bf16.mxu0 0
    %3634 = vmatpush1.bf16.xpose.msra.mxu0 0
    %3635 = vmatprep.subr.bf16.mxu0 0
    %3636 = vmatpush1.bf16.xpose.msra.mxu0 0
    %3637 = vmatprep.subr.bf16.mxu0 0
    %3638 = vmatpush1.bf16.xpose.msra.mxu0 0
    %3639 = vmatprep.subr.bf16.mxu0 0
    %3640 = vmatpush1.bf16.xpose.msra.mxu0 0
    %3641 = vmatprep.subr.bf16.mxu0 0
    %3642 = vmatpush1.bf16.xpose.msra.mxu0 0
    %3643 = vmatprep.subr.bf16.mxu0 0
    %3644 = vmatpush1.bf16.xpose.msra.mxu0 0
    %3645 = vmatprep.subr.bf16.mxu0 0
    %3646 = vmatpush1.bf16.xpose.msra.mxu0 0
    %3647 = vmatprep.mubr.bf16.mxu0 %v770
    %3648 = vmatmul.mubr.bf16.gmra.mrb[0].mxu0 %v768
    %v3649 = vpop.f32.mrb[0].mxu0
    %v3650 = vadd.f32 %v3610, %v3649
    %v3651 = vpop.f32.mrb[0].mxu0
    %v3652 = vpop.f32.mrb[0].mxu0
    %v3653 = vpop.f32.mrb[0].mxu0
    %3654 = vdwg.mxu0
    %3655 = vmatprep.subr.bf16.mxu0 %v1576
    %3656 = vmatpush1.bf16.xpose.msra.mxu0 %v1575
    %3657 = vmatprep.subr.bf16.mxu0 0
    %3658 = vmatpush1.bf16.xpose.msra.mxu0 0
    %3659 = vmatprep.subr.bf16.mxu0 0
    %3660 = vmatpush1.bf16.xpose.msra.mxu0 0
    %3661 = vmatprep.subr.bf16.mxu0 0
    %3662 = vmatpush1.bf16.xpose.msra.mxu0 0
    %3663 = vmatprep.subr.bf16.mxu0 0
    %3664 = vmatpush1.bf16.xpose.msra.mxu0 0
    %3665 = vmatprep.subr.bf16.mxu0 0
    %3666 = vmatpush1.bf16.xpose.msra.mxu0 0
    %3667 = vmatprep.subr.bf16.mxu0 0
    %3668 = vmatpush1.bf16.xpose.msra.mxu0 0
    %3669 = vmatprep.subr.bf16.mxu0 0
    %3670 = vmatpush1.bf16.xpose.msra.mxu0 0
    %3671 = vmatprep.subr.bf16.mxu0 0
    %3672 = vmatpush1.bf16.xpose.msra.mxu0 0
    %3673 = vmatprep.subr.bf16.mxu0 0
    %3674 = vmatpush1.bf16.xpose.msra.mxu0 0
    %3675 = vmatprep.subr.bf16.mxu0 0
    %3676 = vmatpush1.bf16.xpose.msra.mxu0 0
    %3677 = vmatprep.subr.bf16.mxu0 0
    %3678 = vmatpush1.bf16.xpose.msra.mxu0 0
    %3679 = vmatprep.subr.bf16.mxu0 0
    %3680 = vmatpush1.bf16.xpose.msra.mxu0 0
    %3681 = vmatprep.subr.bf16.mxu0 0
    %3682 = vmatpush1.bf16.xpose.msra.mxu0 0
    %3683 = vmatprep.subr.bf16.mxu0 0
    %3684 = vmatpush1.bf16.xpose.msra.mxu0 0
    %3685 = vmatprep.subr.bf16.mxu0 0
    %3686 = vmatpush1.bf16.xpose.msra.mxu0 0
    %3687 = vmatprep.mubr.bf16.mxu0 %v808
    %3688 = vmatmul.mubr.bf16.gmra.mrb[0].mxu0 %v794
    %v3689 = vpop.f32.mrb[0].mxu0
    %v3690 = vadd.f32 %v3650, %v3689
    %v3691 = vpop.f32.mrb[0].mxu0
    %v3692 = vpop.f32.mrb[0].mxu0
    %v3693 = vpop.f32.mrb[0].mxu0
    %3694 = vdwg.mxu0
    %3695 = vmatprep.subr.bf16.mxu0 %v1578
    %3696 = vmatpush1.bf16.xpose.msra.mxu0 %v1577
    %3697 = vmatprep.subr.bf16.mxu0 0
    %3698 = vmatpush1.bf16.xpose.msra.mxu0 0
    %3699 = vmatprep.subr.bf16.mxu0 0
    %3700 = vmatpush1.bf16.xpose.msra.mxu0 0
    %3701 = vmatprep.subr.bf16.mxu0 0
    %3702 = vmatpush1.bf16.xpose.msra.mxu0 0
    %3703 = vmatprep.subr.bf16.mxu0 0
    %3704 = vmatpush1.bf16.xpose.msra.mxu0 0
    %3705 = vmatprep.subr.bf16.mxu0 0
    %3706 = vmatpush1.bf16.xpose.msra.mxu0 0
    %3707 = vmatprep.subr.bf16.mxu0 0
    %3708 = vmatpush1.bf16.xpose.msra.mxu0 0
    %3709 = vmatprep.subr.bf16.mxu0 0
    %3710 = vmatpush1.bf16.xpose.msra.mxu0 0
    %3711 = vmatprep.subr.bf16.mxu0 0
    %3712 = vmatpush1.bf16.xpose.msra.mxu0 0
    %3713 = vmatprep.subr.bf16.mxu0 0
    %3714 = vmatpush1.bf16.xpose.msra.mxu0 0
    %3715 = vmatprep.subr.bf16.mxu0 0
    %3716 = vmatpush1.bf16.xpose.msra.mxu0 0
    %3717 = vmatprep.subr.bf16.mxu0 0
    %3718 = vmatpush1.bf16.xpose.msra.mxu0 0
    %3719 = vmatprep.subr.bf16.mxu0 0
    %3720 = vmatpush1.bf16.xpose.msra.mxu0 0
    %3721 = vmatprep.subr.bf16.mxu0 0
    %3722 = vmatpush1.bf16.xpose.msra.mxu0 0
    %3723 = vmatprep.subr.bf16.mxu0 0
    %3724 = vmatpush1.bf16.xpose.msra.mxu0 0
    %3725 = vmatprep.subr.bf16.mxu0 0
    %3726 = vmatpush1.bf16.xpose.msra.mxu0 0
    %3727 = vmatprep.mubr.bf16.mxu0 %v818
    %3728 = vmatmul.mubr.bf16.gmra.mrb[0].mxu0 %v816
    %v3729 = vpop.f32.mrb[0].mxu0
    %v3730 = vadd.f32 %v3690, %v3729
    %v3731 = vpop.f32.mrb[0].mxu0
    %v3732 = vpop.f32.mrb[0].mxu0
    %v3733 = vpop.f32.mrb[0].mxu0
    %3734 = vdwg.mxu0
    %3735 = vmatprep.subr.bf16.mxu0 %v1580
    %3736 = vmatpush1.bf16.xpose.msra.mxu0 %v1579
    %3737 = vmatprep.subr.bf16.mxu0 0
    %3738 = vmatpush1.bf16.xpose.msra.mxu0 0
    %3739 = vmatprep.subr.bf16.mxu0 0
    %3740 = vmatpush1.bf16.xpose.msra.mxu0 0
    %3741 = vmatprep.subr.bf16.mxu0 0
    %3742 = vmatpush1.bf16.xpose.msra.mxu0 0
    %3743 = vmatprep.subr.bf16.mxu0 0
    %3744 = vmatpush1.bf16.xpose.msra.mxu0 0
    %3745 = vmatprep.subr.bf16.mxu0 0
    %3746 = vmatpush1.bf16.xpose.msra.mxu0 0
    %3747 = vmatprep.subr.bf16.mxu0 0
    %3748 = vmatpush1.bf16.xpose.msra.mxu0 0
    %3749 = vmatprep.subr.bf16.mxu0 0
    %3750 = vmatpush1.bf16.xpose.msra.mxu0 0
    %3751 = vmatprep.subr.bf16.mxu0 0
    %3752 = vmatpush1.bf16.xpose.msra.mxu0 0
    %3753 = vmatprep.subr.bf16.mxu0 0
    %3754 = vmatpush1.bf16.xpose.msra.mxu0 0
    %3755 = vmatprep.subr.bf16.mxu0 0
    %3756 = vmatpush1.bf16.xpose.msra.mxu0 0
    %3757 = vmatprep.subr.bf16.mxu0 0
    %3758 = vmatpush1.bf16.xpose.msra.mxu0 0
    %3759 = vmatprep.subr.bf16.mxu0 0
    %3760 = vmatpush1.bf16.xpose.msra.mxu0 0
    %3761 = vmatprep.subr.bf16.mxu0 0
    %3762 = vmatpush1.bf16.xpose.msra.mxu0 0
    %3763 = vmatprep.subr.bf16.mxu0 0
    %3764 = vmatpush1.bf16.xpose.msra.mxu0 0
    %3765 = vmatprep.subr.bf16.mxu0 0
    %3766 = vmatpush1.bf16.xpose.msra.mxu0 0
    %3767 = vmatprep.mubr.bf16.mxu0 %v815
    %3768 = vmatmul.mubr.bf16.gmra.mrb[0].mxu0 %v801
    %v3769 = vpop.f32.mrb[0].mxu0
    %v3770 = vadd.f32 %v3730, %v3769
    %v3771 = vpop.f32.mrb[0].mxu0
    %v3772 = vpop.f32.mrb[0].mxu0
    %v3773 = vpop.f32.mrb[0].mxu0
    %3774 = vdwg.mxu0
    %3775 = vmatprep.subr.bf16.mxu0 %v1582
    %3776 = vmatpush1.bf16.xpose.msra.mxu0 %v1581
    %3777 = vmatprep.subr.bf16.mxu0 0
    %3778 = vmatpush1.bf16.xpose.msra.mxu0 0
    %3779 = vmatprep.subr.bf16.mxu0 0
    %3780 = vmatpush1.bf16.xpose.msra.mxu0 0
    %3781 = vmatprep.subr.bf16.mxu0 0
    %3782 = vmatpush1.bf16.xpose.msra.mxu0 0
    %3783 = vmatprep.subr.bf16.mxu0 0
    %3784 = vmatpush1.bf16.xpose.msra.mxu0 0
    %3785 = vmatprep.subr.bf16.mxu0 0
    %3786 = vmatpush1.bf16.xpose.msra.mxu0 0
    %3787 = vmatprep.subr.bf16.mxu0 0
    %3788 = vmatpush1.bf16.xpose.msra.mxu0 0
    %3789 = vmatprep.subr.bf16.mxu0 0
    %3790 = vmatpush1.bf16.xpose.msra.mxu0 0
    %3791 = vmatprep.subr.bf16.mxu0 0
    %3792 = vmatpush1.bf16.xpose.msra.mxu0 0
    %3793 = vmatprep.subr.bf16.mxu0 0
    %3794 = vmatpush1.bf16.xpose.msra.mxu0 0
    %3795 = vmatprep.subr.bf16.mxu0 0
    %3796 = vmatpush1.bf16.xpose.msra.mxu0 0
    %3797 = vmatprep.subr.bf16.mxu0 0
    %3798 = vmatpush1.bf16.xpose.msra.mxu0 0
    %3799 = vmatprep.subr.bf16.mxu0 0
    %3800 = vmatpush1.bf16.xpose.msra.mxu0 0
    %3801 = vmatprep.subr.bf16.mxu0 0
    %3802 = vmatpush1.bf16.xpose.msra.mxu0 0
    %3803 = vmatprep.subr.bf16.mxu0 0
    %3804 = vmatpush1.bf16.xpose.msra.mxu0 0
    %3805 = vmatprep.subr.bf16.mxu0 0
    %3806 = vmatpush1.bf16.xpose.msra.mxu0 0
    %3807 = vmatprep.mubr.bf16.mxu0 %v819
    %3808 = vmatmul.mubr.bf16.gmra.mrb[0].mxu0 %v817
    %v3809 = vpop.f32.mrb[0].mxu0
    %v3810 = vadd.f32 %v3770, %v3809
    %v3811 = vpop.f32.mrb[0].mxu0
    %v3812 = vpop.f32.mrb[0].mxu0
    %v3813 = vpop.f32.mrb[0].mxu0
    %3814 = vdwg.mxu0
    %3815 = vmatprep.subr.bf16.mxu0 %v1584
    %3816 = vmatpush1.bf16.xpose.msra.mxu0 %v1583
    %3817 = vmatprep.subr.bf16.mxu0 0
    %3818 = vmatpush1.bf16.xpose.msra.mxu0 0
    %3819 = vmatprep.subr.bf16.mxu0 0
    %3820 = vmatpush1.bf16.xpose.msra.mxu0 0
    %3821 = vmatprep.subr.bf16.mxu0 0
    %3822 = vmatpush1.bf16.xpose.msra.mxu0 0
    %3823 = vmatprep.subr.bf16.mxu0 0
    %3824 = vmatpush1.bf16.xpose.msra.mxu0 0
    %3825 = vmatprep.subr.bf16.mxu0 0
    %3826 = vmatpush1.bf16.xpose.msra.mxu0 0
    %3827 = vmatprep.subr.bf16.mxu0 0
    %3828 = vmatpush1.bf16.xpose.msra.mxu0 0
    %3829 = vmatprep.subr.bf16.mxu0 0
    %3830 = vmatpush1.bf16.xpose.msra.mxu0 0
    %3831 = vmatprep.subr.bf16.mxu0 0
    %3832 = vmatpush1.bf16.xpose.msra.mxu0 0
    %3833 = vmatprep.subr.bf16.mxu0 0
    %3834 = vmatpush1.bf16.xpose.msra.mxu0 0
    %3835 = vmatprep.subr.bf16.mxu0 0
    %3836 = vmatpush1.bf16.xpose.msra.mxu0 0
    %3837 = vmatprep.subr.bf16.mxu0 0
    %3838 = vmatpush1.bf16.xpose.msra.mxu0 0
    %3839 = vmatprep.subr.bf16.mxu0 0
    %3840 = vmatpush1.bf16.xpose.msra.mxu0 0
    %3841 = vmatprep.subr.bf16.mxu0 0
    %3842 = vmatpush1.bf16.xpose.msra.mxu0 0
    %3843 = vmatprep.subr.bf16.mxu0 0
    %3844 = vmatpush1.bf16.xpose.msra.mxu0 0
    %3845 = vmatprep.subr.bf16.mxu0 0
    %3846 = vmatpush1.bf16.xpose.msra.mxu0 0
    %3847 = vmatprep.mubr.bf16.mxu0 %v857
    %3848 = vmatmul.mubr.bf16.gmra.mrb[0].mxu0 %v843
    %v3849 = vpop.f32.mrb[0].mxu0
    %v3850 = vadd.f32 %v3810, %v3849
    %v3851 = vpop.f32.mrb[0].mxu0
    %v3852 = vpop.f32.mrb[0].mxu0
    %v3853 = vpop.f32.mrb[0].mxu0
    %3854 = vdwg.mxu0
    %3855 = vmatprep.subr.bf16.mxu0 %v1586
    %3856 = vmatpush1.bf16.xpose.msra.mxu0 %v1585
    %3857 = vmatprep.subr.bf16.mxu0 0
    %3858 = vmatpush1.bf16.xpose.msra.mxu0 0
    %3859 = vmatprep.subr.bf16.mxu0 0
    %3860 = vmatpush1.bf16.xpose.msra.mxu0 0
    %3861 = vmatprep.subr.bf16.mxu0 0
    %3862 = vmatpush1.bf16.xpose.msra.mxu0 0
    %3863 = vmatprep.subr.bf16.mxu0 0
    %3864 = vmatpush1.bf16.xpose.msra.mxu0 0
    %3865 = vmatprep.subr.bf16.mxu0 0
    %3866 = vmatpush1.bf16.xpose.msra.mxu0 0
    %3867 = vmatprep.subr.bf16.mxu0 0
    %3868 = vmatpush1.bf16.xpose.msra.mxu0 0
    %3869 = vmatprep.subr.bf16.mxu0 0
    %3870 = vmatpush1.bf16.xpose.msra.mxu0 0
    %3871 = vmatprep.subr.bf16.mxu0 0
    %3872 = vmatpush1.bf16.xpose.msra.mxu0 0
    %3873 = vmatprep.subr.bf16.mxu0 0
    %3874 = vmatpush1.bf16.xpose.msra.mxu0 0
    %3875 = vmatprep.subr.bf16.mxu0 0
    %3876 = vmatpush1.bf16.xpose.msra.mxu0 0
    %3877 = vmatprep.subr.bf16.mxu0 0
    %3878 = vmatpush1.bf16.xpose.msra.mxu0 0
    %3879 = vmatprep.subr.bf16.mxu0 0
    %3880 = vmatpush1.bf16.xpose.msra.mxu0 0
    %3881 = vmatprep.subr.bf16.mxu0 0
    %3882 = vmatpush1.bf16.xpose.msra.mxu0 0
    %3883 = vmatprep.subr.bf16.mxu0 0
    %3884 = vmatpush1.bf16.xpose.msra.mxu0 0
    %3885 = vmatprep.subr.bf16.mxu0 0
    %3886 = vmatpush1.bf16.xpose.msra.mxu0 0
    %3887 = vmatprep.mubr.bf16.mxu0 %v867
    %3888 = vmatmul.mubr.bf16.gmra.mrb[0].mxu0 %v865
    %v3889 = vpop.f32.mrb[0].mxu0
    %v3890 = vadd.f32 %v3850, %v3889
    %v3891 = vpop.f32.mrb[0].mxu0
    %v3892 = vpop.f32.mrb[0].mxu0
    %v3893 = vpop.f32.mrb[0].mxu0
    %3894 = vdwg.mxu0
    %3895 = vmatprep.subr.bf16.mxu0 %v1588
    %3896 = vmatpush1.bf16.xpose.msra.mxu0 %v1587
    %3897 = vmatprep.subr.bf16.mxu0 0
    %3898 = vmatpush1.bf16.xpose.msra.mxu0 0
    %3899 = vmatprep.subr.bf16.mxu0 0
    %3900 = vmatpush1.bf16.xpose.msra.mxu0 0
    %3901 = vmatprep.subr.bf16.mxu0 0
    %3902 = vmatpush1.bf16.xpose.msra.mxu0 0
    %3903 = vmatprep.subr.bf16.mxu0 0
    %3904 = vmatpush1.bf16.xpose.msra.mxu0 0
    %3905 = vmatprep.subr.bf16.mxu0 0
    %3906 = vmatpush1.bf16.xpose.msra.mxu0 0
    %3907 = vmatprep.subr.bf16.mxu0 0
    %3908 = vmatpush1.bf16.xpose.msra.mxu0 0
    %3909 = vmatprep.subr.bf16.mxu0 0
    %3910 = vmatpush1.bf16.xpose.msra.mxu0 0
    %3911 = vmatprep.subr.bf16.mxu0 0
    %3912 = vmatpush1.bf16.xpose.msra.mxu0 0
    %3913 = vmatprep.subr.bf16.mxu0 0
    %3914 = vmatpush1.bf16.xpose.msra.mxu0 0
    %3915 = vmatprep.subr.bf16.mxu0 0
    %3916 = vmatpush1.bf16.xpose.msra.mxu0 0
    %3917 = vmatprep.subr.bf16.mxu0 0
    %3918 = vmatpush1.bf16.xpose.msra.mxu0 0
    %3919 = vmatprep.subr.bf16.mxu0 0
    %3920 = vmatpush1.bf16.xpose.msra.mxu0 0
    %3921 = vmatprep.subr.bf16.mxu0 0
    %3922 = vmatpush1.bf16.xpose.msra.mxu0 0
    %3923 = vmatprep.subr.bf16.mxu0 0
    %3924 = vmatpush1.bf16.xpose.msra.mxu0 0
    %3925 = vmatprep.subr.bf16.mxu0 0
    %3926 = vmatpush1.bf16.xpose.msra.mxu0 0
    %3927 = vmatprep.mubr.bf16.mxu0 %v864
    %3928 = vmatmul.mubr.bf16.gmra.mrb[0].mxu0 %v850
    %v3929 = vpop.f32.mrb[0].mxu0
    %v3930 = vadd.f32 %v3890, %v3929
    %v3931 = vpop.f32.mrb[0].mxu0
    %v3932 = vpop.f32.mrb[0].mxu0
    %v3933 = vpop.f32.mrb[0].mxu0
    %3934 = vdwg.mxu0
    %3935 = vmatprep.subr.bf16.mxu0 %v1590
    %3936 = vmatpush1.bf16.xpose.msra.mxu0 %v1589
    %3937 = vmatprep.subr.bf16.mxu0 0
    %3938 = vmatpush1.bf16.xpose.msra.mxu0 0
    %3939 = vmatprep.subr.bf16.mxu0 0
    %3940 = vmatpush1.bf16.xpose.msra.mxu0 0
    %3941 = vmatprep.subr.bf16.mxu0 0
    %3942 = vmatpush1.bf16.xpose.msra.mxu0 0
    %3943 = vmatprep.subr.bf16.mxu0 0
    %3944 = vmatpush1.bf16.xpose.msra.mxu0 0
    %3945 = vmatprep.subr.bf16.mxu0 0
    %3946 = vmatpush1.bf16.xpose.msra.mxu0 0
    %3947 = vmatprep.subr.bf16.mxu0 0
    %3948 = vmatpush1.bf16.xpose.msra.mxu0 0
    %3949 = vmatprep.subr.bf16.mxu0 0
    %3950 = vmatpush1.bf16.xpose.msra.mxu0 0
    %3951 = vmatprep.subr.bf16.mxu0 0
    %3952 = vmatpush1.bf16.xpose.msra.mxu0 0
    %3953 = vmatprep.subr.bf16.mxu0 0
    %3954 = vmatpush1.bf16.xpose.msra.mxu0 0
    %3955 = vmatprep.subr.bf16.mxu0 0
    %3956 = vmatpush1.bf16.xpose.msra.mxu0 0
    %3957 = vmatprep.subr.bf16.mxu0 0
    %3958 = vmatpush1.bf16.xpose.msra.mxu0 0
    %3959 = vmatprep.subr.bf16.mxu0 0
    %3960 = vmatpush1.bf16.xpose.msra.mxu0 0
    %3961 = vmatprep.subr.bf16.mxu0 0
    %3962 = vmatpush1.bf16.xpose.msra.mxu0 0
    %3963 = vmatprep.subr.bf16.mxu0 0
    %3964 = vmatpush1.bf16.xpose.msra.mxu0 0
    %3965 = vmatprep.subr.bf16.mxu0 0
    %3966 = vmatpush1.bf16.xpose.msra.mxu0 0
    %3967 = vmatprep.mubr.bf16.mxu0 %v868
    %3968 = vmatmul.mubr.bf16.gmra.mrb[0].mxu0 %v866
    %v3969 = vpop.f32.mrb[0].mxu0
    %v3970 = vadd.f32 %v3930, %v3969
    %v3971 = vpop.f32.mrb[0].mxu0
    %v3972 = vpop.f32.mrb[0].mxu0
    %v3973 = vpop.f32.mrb[0].mxu0
    %3974 = vdwg.mxu0
    %3975 = vmatprep.subr.bf16.mxu0 %v1592
    %3976 = vmatpush1.bf16.xpose.msra.mxu0 %v1591
    %3977 = vmatprep.subr.bf16.mxu0 0
    %3978 = vmatpush1.bf16.xpose.msra.mxu0 0
    %3979 = vmatprep.subr.bf16.mxu0 0
    %3980 = vmatpush1.bf16.xpose.msra.mxu0 0
    %3981 = vmatprep.subr.bf16.mxu0 0
    %3982 = vmatpush1.bf16.xpose.msra.mxu0 0
    %3983 = vmatprep.subr.bf16.mxu0 0
    %3984 = vmatpush1.bf16.xpose.msra.mxu0 0
    %3985 = vmatprep.subr.bf16.mxu0 0
    %3986 = vmatpush1.bf16.xpose.msra.mxu0 0
    %3987 = vmatprep.subr.bf16.mxu0 0
    %3988 = vmatpush1.bf16.xpose.msra.mxu0 0
    %3989 = vmatprep.subr.bf16.mxu0 0
    %3990 = vmatpush1.bf16.xpose.msra.mxu0 0
    %3991 = vmatprep.subr.bf16.mxu0 0
    %3992 = vmatpush1.bf16.xpose.msra.mxu0 0
    %3993 = vmatprep.subr.bf16.mxu0 0
    %3994 = vmatpush1.bf16.xpose.msra.mxu0 0
    %3995 = vmatprep.subr.bf16.mxu0 0
    %3996 = vmatpush1.bf16.xpose.msra.mxu0 0
    %3997 = vmatprep.subr.bf16.mxu0 0
    %3998 = vmatpush1.bf16.xpose.msra.mxu0 0
    %3999 = vmatprep.subr.bf16.mxu0 0
    %4000 = vmatpush1.bf16.xpose.msra.mxu0 0
    %4001 = vmatprep.subr.bf16.mxu0 0
    %4002 = vmatpush1.bf16.xpose.msra.mxu0 0
    %4003 = vmatprep.subr.bf16.mxu0 0
    %4004 = vmatpush1.bf16.xpose.msra.mxu0 0
    %4005 = vmatprep.subr.bf16.mxu0 0
    %4006 = vmatpush1.bf16.xpose.msra.mxu0 0
    %4007 = vmatprep.mubr.bf16.mxu0 %v906
    %4008 = vmatmul.mubr.bf16.gmra.mrb[0].mxu0 %v892
    %v4009 = vpop.f32.mrb[0].mxu0
    %v4010 = vadd.f32 %v3970, %v4009
    %v4011 = vpop.f32.mrb[0].mxu0
    %v4012 = vpop.f32.mrb[0].mxu0
    %v4013 = vpop.f32.mrb[0].mxu0
    %4014 = vdwg.mxu0
    %4015 = vmatprep.subr.bf16.mxu0 %v1594
    %4016 = vmatpush1.bf16.xpose.msra.mxu0 %v1593
    %4017 = vmatprep.subr.bf16.mxu0 0
    %4018 = vmatpush1.bf16.xpose.msra.mxu0 0
    %4019 = vmatprep.subr.bf16.mxu0 0
    %4020 = vmatpush1.bf16.xpose.msra.mxu0 0
    %4021 = vmatprep.subr.bf16.mxu0 0
    %4022 = vmatpush1.bf16.xpose.msra.mxu0 0
    %4023 = vmatprep.subr.bf16.mxu0 0
    %4024 = vmatpush1.bf16.xpose.msra.mxu0 0
    %4025 = vmatprep.subr.bf16.mxu0 0
    %4026 = vmatpush1.bf16.xpose.msra.mxu0 0
    %4027 = vmatprep.subr.bf16.mxu0 0
    %4028 = vmatpush1.bf16.xpose.msra.mxu0 0
    %4029 = vmatprep.subr.bf16.mxu0 0
    %4030 = vmatpush1.bf16.xpose.msra.mxu0 0
    %4031 = vmatprep.subr.bf16.mxu0 0
    %4032 = vmatpush1.bf16.xpose.msra.mxu0 0
    %4033 = vmatprep.subr.bf16.mxu0 0
    %4034 = vmatpush1.bf16.xpose.msra.mxu0 0
    %4035 = vmatprep.subr.bf16.mxu0 0
    %4036 = vmatpush1.bf16.xpose.msra.mxu0 0
    %4037 = vmatprep.subr.bf16.mxu0 0
    %4038 = vmatpush1.bf16.xpose.msra.mxu0 0
    %4039 = vmatprep.subr.bf16.mxu0 0
    %4040 = vmatpush1.bf16.xpose.msra.mxu0 0
    %4041 = vmatprep.subr.bf16.mxu0 0
    %4042 = vmatpush1.bf16.xpose.msra.mxu0 0
    %4043 = vmatprep.subr.bf16.mxu0 0
    %4044 = vmatpush1.bf16.xpose.msra.mxu0 0
    %4045 = vmatprep.subr.bf16.mxu0 0
    %4046 = vmatpush1.bf16.xpose.msra.mxu0 0
    %4047 = vmatprep.mubr.bf16.mxu0 %v916
    %4048 = vmatmul.mubr.bf16.gmra.mrb[0].mxu0 %v914
    %v4049 = vpop.f32.mrb[0].mxu0
    %v4050 = vadd.f32 %v4010, %v4049
    %v4051 = vpop.f32.mrb[0].mxu0
    %v4052 = vpop.f32.mrb[0].mxu0
    %v4053 = vpop.f32.mrb[0].mxu0
    %4054 = vdwg.mxu0
    %4055 = vmatprep.subr.bf16.mxu0 %v1596
    %4056 = vmatpush1.bf16.xpose.msra.mxu0 %v1595
    %4057 = vmatprep.subr.bf16.mxu0 0
    %4058 = vmatpush1.bf16.xpose.msra.mxu0 0
    %4059 = vmatprep.subr.bf16.mxu0 0
    %4060 = vmatpush1.bf16.xpose.msra.mxu0 0
    %4061 = vmatprep.subr.bf16.mxu0 0
    %4062 = vmatpush1.bf16.xpose.msra.mxu0 0
    %4063 = vmatprep.subr.bf16.mxu0 0
    %4064 = vmatpush1.bf16.xpose.msra.mxu0 0
    %4065 = vmatprep.subr.bf16.mxu0 0
    %4066 = vmatpush1.bf16.xpose.msra.mxu0 0
    %4067 = vmatprep.subr.bf16.mxu0 0
    %4068 = vmatpush1.bf16.xpose.msra.mxu0 0
    %4069 = vmatprep.subr.bf16.mxu0 0
    %4070 = vmatpush1.bf16.xpose.msra.mxu0 0
    %4071 = vmatprep.subr.bf16.mxu0 0
    %4072 = vmatpush1.bf16.xpose.msra.mxu0 0
    %4073 = vmatprep.subr.bf16.mxu0 0
    %4074 = vmatpush1.bf16.xpose.msra.mxu0 0
    %4075 = vmatprep.subr.bf16.mxu0 0
    %4076 = vmatpush1.bf16.xpose.msra.mxu0 0
    %4077 = vmatprep.subr.bf16.mxu0 0
    %4078 = vmatpush1.bf16.xpose.msra.mxu0 0
    %4079 = vmatprep.subr.bf16.mxu0 0
    %4080 = vmatpush1.bf16.xpose.msra.mxu0 0
    %4081 = vmatprep.subr.bf16.mxu0 0
    %4082 = vmatpush1.bf16.xpose.msra.mxu0 0
    %4083 = vmatprep.subr.bf16.mxu0 0
    %4084 = vmatpush1.bf16.xpose.msra.mxu0 0
    %4085 = vmatprep.subr.bf16.mxu0 0
    %4086 = vmatpush1.bf16.xpose.msra.mxu0 0
    %4087 = vmatprep.mubr.bf16.mxu0 %v913
    %4088 = vmatmul.mubr.bf16.gmra.mrb[0].mxu0 %v899
    %v4089 = vpop.f32.mrb[0].mxu0
    %v4090 = vadd.f32 %v4050, %v4089
    %v4091 = vpop.f32.mrb[0].mxu0
    %v4092 = vpop.f32.mrb[0].mxu0
    %v4093 = vpop.f32.mrb[0].mxu0
    %4094 = vdwg.mxu0
    %4095 = vmatprep.subr.bf16.mxu0 %v1598
    %4096 = vmatpush1.bf16.xpose.msra.mxu0 %v1597
    %4097 = vmatprep.subr.bf16.mxu0 0
    %4098 = vmatpush1.bf16.xpose.msra.mxu0 0
    %4099 = vmatprep.subr.bf16.mxu0 0
    %4100 = vmatpush1.bf16.xpose.msra.mxu0 0
    %4101 = vmatprep.subr.bf16.mxu0 0
    %4102 = vmatpush1.bf16.xpose.msra.mxu0 0
    %4103 = vmatprep.subr.bf16.mxu0 0
    %4104 = vmatpush1.bf16.xpose.msra.mxu0 0
    %4105 = vmatprep.subr.bf16.mxu0 0
    %4106 = vmatpush1.bf16.xpose.msra.mxu0 0
    %4107 = vmatprep.subr.bf16.mxu0 0
    %4108 = vmatpush1.bf16.xpose.msra.mxu0 0
    %4109 = vmatprep.subr.bf16.mxu0 0
    %4110 = vmatpush1.bf16.xpose.msra.mxu0 0
    %4111 = vmatprep.subr.bf16.mxu0 0
    %4112 = vmatpush1.bf16.xpose.msra.mxu0 0
    %4113 = vmatprep.subr.bf16.mxu0 0
    %4114 = vmatpush1.bf16.xpose.msra.mxu0 0
    %4115 = vmatprep.subr.bf16.mxu0 0
    %4116 = vmatpush1.bf16.xpose.msra.mxu0 0
    %4117 = vmatprep.subr.bf16.mxu0 0
    %4118 = vmatpush1.bf16.xpose.msra.mxu0 0
    %4119 = vmatprep.subr.bf16.mxu0 0
    %4120 = vmatpush1.bf16.xpose.msra.mxu0 0
    %4121 = vmatprep.subr.bf16.mxu0 0
    %4122 = vmatpush1.bf16.xpose.msra.mxu0 0
    %4123 = vmatprep.subr.bf16.mxu0 0
    %4124 = vmatpush1.bf16.xpose.msra.mxu0 0
    %4125 = vmatprep.subr.bf16.mxu0 0
    %4126 = vmatpush1.bf16.xpose.msra.mxu0 0
    %4127 = vmatprep.mubr.bf16.mxu0 %v917
    %4128 = vmatmul.mubr.bf16.gmra.mrb[0].mxu0 %v915
    %v4129 = vpop.f32.mrb[0].mxu0
    %v4130 = vadd.f32 %v4090, %v4129
    %v4131 = vpop.f32.mrb[0].mxu0
    %v4132 = vpop.f32.mrb[0].mxu0
    %v4133 = vpop.f32.mrb[0].mxu0
    %4134 = vdwg.mxu0
    %4135 = vmatprep.subr.bf16.mxu0 %v1600
    %4136 = vmatpush1.bf16.xpose.msra.mxu0 %v1599
    %4137 = vmatprep.subr.bf16.mxu0 0
    %4138 = vmatpush1.bf16.xpose.msra.mxu0 0
    %4139 = vmatprep.subr.bf16.mxu0 0
    %4140 = vmatpush1.bf16.xpose.msra.mxu0 0
    %4141 = vmatprep.subr.bf16.mxu0 0
    %4142 = vmatpush1.bf16.xpose.msra.mxu0 0
    %4143 = vmatprep.subr.bf16.mxu0 0
    %4144 = vmatpush1.bf16.xpose.msra.mxu0 0
    %4145 = vmatprep.subr.bf16.mxu0 0
    %4146 = vmatpush1.bf16.xpose.msra.mxu0 0
    %4147 = vmatprep.subr.bf16.mxu0 0
    %4148 = vmatpush1.bf16.xpose.msra.mxu0 0
    %4149 = vmatprep.subr.bf16.mxu0 0
    %4150 = vmatpush1.bf16.xpose.msra.mxu0 0
    %4151 = vmatprep.subr.bf16.mxu0 0
    %4152 = vmatpush1.bf16.xpose.msra.mxu0 0
    %4153 = vmatprep.subr.bf16.mxu0 0
    %4154 = vmatpush1.bf16.xpose.msra.mxu0 0
    %4155 = vmatprep.subr.bf16.mxu0 0
    %4156 = vmatpush1.bf16.xpose.msra.mxu0 0
    %4157 = vmatprep.subr.bf16.mxu0 0
    %4158 = vmatpush1.bf16.xpose.msra.mxu0 0
    %4159 = vmatprep.subr.bf16.mxu0 0
    %4160 = vmatpush1.bf16.xpose.msra.mxu0 0
    %4161 = vmatprep.subr.bf16.mxu0 0
    %4162 = vmatpush1.bf16.xpose.msra.mxu0 0
    %4163 = vmatprep.subr.bf16.mxu0 0
    %4164 = vmatpush1.bf16.xpose.msra.mxu0 0
    %4165 = vmatprep.subr.bf16.mxu0 0
    %4166 = vmatpush1.bf16.xpose.msra.mxu0 0
    %4167 = vmatprep.mubr.bf16.mxu0 %v955
    %4168 = vmatmul.mubr.bf16.gmra.mrb[0].mxu0 %v941
    %v4169 = vpop.f32.mrb[0].mxu0
    %v4170 = vadd.f32 %v4130, %v4169
    %v4171 = vpop.f32.mrb[0].mxu0
    %v4172 = vpop.f32.mrb[0].mxu0
    %v4173 = vpop.f32.mrb[0].mxu0
    %4174 = vdwg.mxu0
    %4175 = vmatprep.subr.bf16.mxu0 %v1602
    %4176 = vmatpush1.bf16.xpose.msra.mxu0 %v1601
    %4177 = vmatprep.subr.bf16.mxu0 0
    %4178 = vmatpush1.bf16.xpose.msra.mxu0 0
    %4179 = vmatprep.subr.bf16.mxu0 0
    %4180 = vmatpush1.bf16.xpose.msra.mxu0 0
    %4181 = vmatprep.subr.bf16.mxu0 0
    %4182 = vmatpush1.bf16.xpose.msra.mxu0 0
    %4183 = vmatprep.subr.bf16.mxu0 0
    %4184 = vmatpush1.bf16.xpose.msra.mxu0 0
    %4185 = vmatprep.subr.bf16.mxu0 0
    %4186 = vmatpush1.bf16.xpose.msra.mxu0 0
    %4187 = vmatprep.subr.bf16.mxu0 0
    %4188 = vmatpush1.bf16.xpose.msra.mxu0 0
    %4189 = vmatprep.subr.bf16.mxu0 0
    %4190 = vmatpush1.bf16.xpose.msra.mxu0 0
    %4191 = vmatprep.subr.bf16.mxu0 0
    %4192 = vmatpush1.bf16.xpose.msra.mxu0 0
    %4193 = vmatprep.subr.bf16.mxu0 0
    %4194 = vmatpush1.bf16.xpose.msra.mxu0 0
    %4195 = vmatprep.subr.bf16.mxu0 0
    %4196 = vmatpush1.bf16.xpose.msra.mxu0 0
    %4197 = vmatprep.subr.bf16.mxu0 0
    %4198 = vmatpush1.bf16.xpose.msra.mxu0 0
    %4199 = vmatprep.subr.bf16.mxu0 0
    %4200 = vmatpush1.bf16.xpose.msra.mxu0 0
    %4201 = vmatprep.subr.bf16.mxu0 0
    %4202 = vmatpush1.bf16.xpose.msra.mxu0 0
    %4203 = vmatprep.subr.bf16.mxu0 0
    %4204 = vmatpush1.bf16.xpose.msra.mxu0 0
    %4205 = vmatprep.subr.bf16.mxu0 0
    %4206 = vmatpush1.bf16.xpose.msra.mxu0 0
    %4207 = vmatprep.mubr.bf16.mxu0 %v965
    %4208 = vmatmul.mubr.bf16.gmra.mrb[0].mxu0 %v963
    %v4209 = vpop.f32.mrb[0].mxu0
    %v4210 = vadd.f32 %v4170, %v4209
    %v4211 = vpop.f32.mrb[0].mxu0
    %v4212 = vpop.f32.mrb[0].mxu0
    %v4213 = vpop.f32.mrb[0].mxu0
    %4214 = vdwg.mxu0
    %4215 = vmatprep.subr.bf16.mxu0 %v1604
    %4216 = vmatpush1.bf16.xpose.msra.mxu0 %v1603
    %4217 = vmatprep.subr.bf16.mxu0 0
    %4218 = vmatpush1.bf16.xpose.msra.mxu0 0
    %4219 = vmatprep.subr.bf16.mxu0 0
    %4220 = vmatpush1.bf16.xpose.msra.mxu0 0
    %4221 = vmatprep.subr.bf16.mxu0 0
    %4222 = vmatpush1.bf16.xpose.msra.mxu0 0
    %4223 = vmatprep.subr.bf16.mxu0 0
    %4224 = vmatpush1.bf16.xpose.msra.mxu0 0
    %4225 = vmatprep.subr.bf16.mxu0 0
    %4226 = vmatpush1.bf16.xpose.msra.mxu0 0
    %4227 = vmatprep.subr.bf16.mxu0 0
    %4228 = vmatpush1.bf16.xpose.msra.mxu0 0
    %4229 = vmatprep.subr.bf16.mxu0 0
    %4230 = vmatpush1.bf16.xpose.msra.mxu0 0
    %4231 = vmatprep.subr.bf16.mxu0 0
    %4232 = vmatpush1.bf16.xpose.msra.mxu0 0
    %4233 = vmatprep.subr.bf16.mxu0 0
    %4234 = vmatpush1.bf16.xpose.msra.mxu0 0
    %4235 = vmatprep.subr.bf16.mxu0 0
    %4236 = vmatpush1.bf16.xpose.msra.mxu0 0
    %4237 = vmatprep.subr.bf16.mxu0 0
    %4238 = vmatpush1.bf16.xpose.msra.mxu0 0
    %4239 = vmatprep.subr.bf16.mxu0 0
    %4240 = vmatpush1.bf16.xpose.msra.mxu0 0
    %4241 = vmatprep.subr.bf16.mxu0 0
    %4242 = vmatpush1.bf16.xpose.msra.mxu0 0
    %4243 = vmatprep.subr.bf16.mxu0 0
    %4244 = vmatpush1.bf16.xpose.msra.mxu0 0
    %4245 = vmatprep.subr.bf16.mxu0 0
    %4246 = vmatpush1.bf16.xpose.msra.mxu0 0
    %4247 = vmatprep.mubr.bf16.mxu0 %v962
    %4248 = vmatmul.mubr.bf16.gmra.mrb[0].mxu0 %v948
    %v4249 = vpop.f32.mrb[0].mxu0
    %v4250 = vadd.f32 %v4210, %v4249
    %v4251 = vpop.f32.mrb[0].mxu0
    %v4252 = vpop.f32.mrb[0].mxu0
    %v4253 = vpop.f32.mrb[0].mxu0
    %4254 = vdwg.mxu0
    %4255 = vmatprep.subr.bf16.mxu0 %v1606
    %4256 = vmatpush1.bf16.xpose.msra.mxu0 %v1605
    %4257 = vmatprep.subr.bf16.mxu0 0
    %4258 = vmatpush1.bf16.xpose.msra.mxu0 0
    %4259 = vmatprep.subr.bf16.mxu0 0
    %4260 = vmatpush1.bf16.xpose.msra.mxu0 0
    %4261 = vmatprep.subr.bf16.mxu0 0
    %4262 = vmatpush1.bf16.xpose.msra.mxu0 0
    %4263 = vmatprep.subr.bf16.mxu0 0
    %4264 = vmatpush1.bf16.xpose.msra.mxu0 0
    %4265 = vmatprep.subr.bf16.mxu0 0
    %4266 = vmatpush1.bf16.xpose.msra.mxu0 0
    %4267 = vmatprep.subr.bf16.mxu0 0
    %4268 = vmatpush1.bf16.xpose.msra.mxu0 0
    %4269 = vmatprep.subr.bf16.mxu0 0
    %4270 = vmatpush1.bf16.xpose.msra.mxu0 0
    %4271 = vmatprep.subr.bf16.mxu0 0
    %4272 = vmatpush1.bf16.xpose.msra.mxu0 0
    %4273 = vmatprep.subr.bf16.mxu0 0
    %4274 = vmatpush1.bf16.xpose.msra.mxu0 0
    %4275 = vmatprep.subr.bf16.mxu0 0
    %4276 = vmatpush1.bf16.xpose.msra.mxu0 0
    %4277 = vmatprep.subr.bf16.mxu0 0
    %4278 = vmatpush1.bf16.xpose.msra.mxu0 0
    %4279 = vmatprep.subr.bf16.mxu0 0
    %4280 = vmatpush1.bf16.xpose.msra.mxu0 0
    %4281 = vmatprep.subr.bf16.mxu0 0
    %4282 = vmatpush1.bf16.xpose.msra.mxu0 0
    %4283 = vmatprep.subr.bf16.mxu0 0
    %4284 = vmatpush1.bf16.xpose.msra.mxu0 0
    %4285 = vmatprep.subr.bf16.mxu0 0
    %4286 = vmatpush1.bf16.xpose.msra.mxu0 0
    %4287 = vmatprep.mubr.bf16.mxu0 %v966
    %4288 = vmatmul.mubr.bf16.gmra.mrb[0].mxu0 %v964
    %v4289 = vpop.f32.mrb[0].mxu0
    %v4290 = vadd.f32 %v4250, %v4289
    %v4291 = vpop.f32.mrb[0].mxu0
    %v4292 = vpop.f32.mrb[0].mxu0
    %v4293 = vpop.f32.mrb[0].mxu0
    %4294 = vdwg.mxu0
    %vm4295 = vcmask 74752
    %4296 = vst.msk [vmem:[#allocation2] sm:$0x3] %vm4295, %v4290
    // Predicated region
    $region14: #{conv_dann_forward.3} parent=1 // pred_check
      _
    $region15: #{conv_dann_forward.3} parent=1 // pred_check_branch
      %4298 = sbr.rel (0) target = $region17
    $region16: #{conv_dann_forward.3} parent=1 // pred_region
      %s4300 = ssub.s32 32, 32
      %4301 = vsyncadd [#allocation3], %s4300
      %s4303 = sshll.u32 [#allocation2], 4
      %s4304 = int_to_ptr.vmem [resolvable:$true] %s4303
      %4306 = dma.vmem_to_hbm [thread:$0]  %s4304, 32, %s3, [#allocation3]
    $region17: #{conv_dann_forward.3} parent=1 // pred_fallthru
      _
    // Predicated region
    $region18: #{conv_dann_forward.3} parent=1 // pred_check
      _
    $region19: #{conv_dann_forward.3} parent=1 // pred_check_branch
      %4308 = sbr.rel (0) target = $region21
    $region20: #{conv_dann_forward.3} parent=1 // pred_region
      %4309 = dma.done [#allocation3], 32
    $region21: #{conv_dann_forward.3} parent=1 // pred_fallthru
      _
    %4310 = vsyncpa [#allocation3], 1

</llo_original>
